<compile_context>
chip_gen: v7x
topology: tpu7x:2x2x1
jax: 0.10.0
libtpu: 0.0.40
codegen_flags: <defaults>
</compile_context>

<pallas_src>
import jax
import jax.numpy as jnp
from jax.experimental import pallas as pl
from jax.experimental.pallas import tpu as pltpu


def _resnet_block_kernel(x_ref, xp_ref, w1_ref, w2_ref, o_ref, acc_ref, hp_ref):
    """One batch image per grid step.  Requires H >= 3 and W >= 3.

    x_ref  : (1, H, W, C)    f32   unpadded input (residual, aligned read)
    xp_ref : (1, H+2, Wp, C) bf16  reflect-padded input (Wp = W+2 rounded up to 8)
    w*_ref : (3, 3*C, C)     bf16  conv weights with the dw tap folded into K
    o_ref  : (1, H, W, C)    f32   output block
    acc_ref: (H*W, C)        f32   VMEM conv accumulator (reused by both convs)
    hp_ref : (H+2, Wp, C)    bf16  VMEM scratch for conv2's reflect-padded input
    """
    _, H, W, C = o_ref.shape
    eps = jnp.float32(1e-5)
    inv_n = jnp.float32(1.0 / (H * W))

    def conv3x3(slab_fn, w_ref):
        # 3 MXU calls: per dh one (H*W, 3C) @ (3C, C) bf16 matmul, f32 accumulate.
        # No bias: InstanceNorm(affine=False) cancels a per-channel bias exactly.
        for dh in range(3):
            slab = slab_fn(dh)  # (H, Wp, C) bf16; only columns [0, W+2) are used
            patch = jnp.concatenate(
                [slab[:, 0:W, :], slab[:, 1:W + 1, :], slab[:, 2:W + 2, :]],
                axis=-1).reshape(H * W, 3 * C)          # bf16, never f32
            contrib = jnp.dot(patch, w_ref[dh],
                              preferred_element_type=jnp.float32)
            if dh == 0:
                acc_ref[...] = contrib
            else:
                acc_ref[...] += contrib
        return acc_ref[...]

    def instance_norm(y):
        # single traversal: sum + sum-of-squares, biased variance, rsqrt on EUP
        mean = jnp.sum(y, axis=0, keepdims=True) * inv_n
        msq = jnp.sum(y * y, axis=0, keepdims=True) * inv_n
        var = jnp.maximum(msq - mean * mean, 0.0)
        return (y - mean) * jax.lax.rsqrt(var + eps)

    # ---- conv1 (reflect pad already applied in the wrapper) + IN + ReLU ----
    def slab1(dh):
        return xp_ref[0, dh:dh + H, :, :]

    h = jnp.maximum(instance_norm(conv3x3(slab1, w1_ref)), 0.0)   # (H*W, C) f32
    # TODO(synk): use_dropout branch (nn.Dropout(0.5)) not implemented
    # (module is used with use_dropout=False / eval mode).

    # ---- conv2: assemble ReflectionPad2d(1)(h) in bf16 into the pre-padded,
    #      sublane-aligned (H+2, Wp, C) scratch: interior + 4 edge strips.
    hb = h.astype(jnp.bfloat16).reshape(H, W, C)
    hp_ref[1:H + 1, 1:W + 1, :] = hb                       # interior
    hp_ref[0, 1:W + 1, :] = hb[1]                          # top reflected row
    hp_ref[H + 1, 1:W + 1, :] = hb[H - 2]                  # bottom reflected row
    hp_ref[:, 0:1, :] = hp_ref[:, 2:3, :]                  # left reflected col
    hp_ref[:, W + 1:W + 2, :] = hp_ref[:, W - 1:W, :]      # right reflected col
    # columns [W+2, Wp) are dead padding, never read by slab2.

    def slab2(dh):
        return hp_ref[dh:dh + H, :, :]

    y = instance_norm(conv3x3(slab2, w2_ref))

    # ---- residual: aligned f32 input block (no misaligned interior slice) ----
    o_ref[0] = (x_ref[0] + y.reshape(H, W, C)).astype(o_ref.dtype)


@jax.jit
def resnet_block(x_nchw, w1, b1, w2, b2):
    """x_nchw: (B, C, H, W) f32; w*: (3, 3, C, C) HWIO; b*: (C,) — unused (see below)."""
    B, C, H, W = x_nchw.shape
    x = jnp.transpose(x_nchw, (0, 2, 3, 1)).astype(jnp.float32)   # NHWC f32 (residual)

    # Conv biases are exactly cancelled by InstanceNorm2d(affine=False) (the norm
    # subtracts the per-channel spatial mean), so they are not fed to the kernel.
    # b1 / b2 are accepted only for API parity with the PyTorch module.

    # Hoist conv1's ReflectionPad2d(1); round the padded width up to a multiple
    # of 8 (sublane alignment) with dead zero columns; store bf16 (matmul operand).
    xp = jnp.pad(x, ((0, 0), (1, 1), (1, 1), (0, 0)), mode="reflect")
    Wp = ((W + 2 + 7) // 8) * 8
    if Wp > W + 2:
        xp = jnp.pad(xp, ((0, 0), (0, 0), (0, Wp - (W + 2)), (0, 0)))
    xp = xp.astype(jnp.bfloat16)

    # Fold the dw taps into the contraction axis: (3,3,C,C) -> (3, 3C, C), bf16.
    w1k = w1.astype(jnp.bfloat16).reshape(3, 3 * C, C)
    w2k = w2.astype(jnp.bfloat16).reshape(3, 3 * C, C)

    flops = 2 * 2 * 9 * H * W * C * C * B                  # 2 convs, 2 flops/MAC
    bytes_accessed = (x.size * 4 + xp.size * 2
                      + (w1k.size + w2k.size) * 2 + B * H * W * C * 4)

    # VMEM sizing: double-buffered in/out blocks + weights + scratch + headroom
    # for body temps; clamp to [32, 48] MiB (headroom under v7x's 64 MiB VMEM).
    # TODO(synk): on v6e (128 MiB physical) this could be raised to ~64 MiB.
    blk_bytes = (2 * H * W * C * 4              # x in (double-buffered)
                 + 2 * (H + 2) * Wp * C * 2     # xp in
                 + 2 * H * W * C * 4            # out
                 + 2 * 2 * 9 * C * C * 2        # w1k, w2k (double-buffered)
                 + H * W * C * 4                # acc scratch
                 + (H + 2) * Wp * C * 2)        # hp scratch
    temp_bytes = 3 * H * W * 3 * C * 2 + 3 * H * W * C * 4   # im2col + f32 temps
    vmem_limit = max(32 * 1024 * 1024,
                     min(int(1.25 * (blk_bytes + temp_bytes)), 48 * 1024 * 1024))

    out = pl.pallas_call(
        _resnet_block_kernel,
        out_shape=jax.ShapeDtypeStruct((B, H, W, C), jnp.float32),
        grid_spec=pltpu.PrefetchScalarGridSpec(
            num_scalar_prefetch=0,
            grid=(B,),
            in_specs=[
                pl.BlockSpec((1, H, W, C), lambda b: (b, 0, 0, 0)),        # x (f32)
                pl.BlockSpec((1, H + 2, Wp, C), lambda b: (b, 0, 0, 0)),   # xp (bf16)
                pl.BlockSpec((3, 3 * C, C), lambda b: (0, 0, 0)),          # w1 (bf16)
                pl.BlockSpec((3, 3 * C, C), lambda b: (0, 0, 0)),          # w2 (bf16)
            ],
            out_specs=pl.BlockSpec((1, H, W, C), lambda b: (b, 0, 0, 0)),
            scratch_shapes=[
                pltpu.VMEM((H * W, C), jnp.float32),          # conv accumulator
                pltpu.VMEM((H + 2, Wp, C), jnp.bfloat16),     # conv2 padded input
            ],
        ),
        compiler_params=pltpu.CompilerParams(
            dimension_semantics=("parallel",),       # shard batch across TCs (v7x)
            vmem_limit_bytes=vmem_limit),
        cost_estimate=pl.CostEstimate(
            flops=flops, transcendentals=0, bytes_accessed=bytes_accessed),
    )(x, xp, w1k, w2k)

    return jnp.transpose(out, (0, 3, 1, 2))  # -> NCHW


def _reference(x_nchw, w1, b1, w2, b2):
    """Pure-JAX f32 reference (same math as the PyTorch module, biases kept)."""
    x = jnp.transpose(x_nchw, (0, 2, 3, 1))

    def conv(h, w, b):
        hp = jnp.pad(h, ((0, 0), (1, 1), (1, 1), (0, 0)), mode="reflect")
        y = jax.lax.conv_general_dilated(
            hp, w, (1, 1), "VALID",
            dimension_numbers=("NHWC", "HWIO", "NHWC"))
        return y + b.reshape(1, 1, 1, -1)

    def inorm(y):
        m = jnp.mean(y, axis=(1, 2), keepdims=True)
        v = jnp.mean((y - m) ** 2, axis=(1, 2), keepdims=True)
        return (y - m) / jnp.sqrt(v + 1e-5)

    h = jax.nn.relu(inorm(conv(x, w1, b1)))
    y = inorm(conv(h, w2, b2))
    return jnp.transpose(x + y, (0, 3, 1, 2))


if __name__ == "__main__":
    B, C, H, W = 2, 4, 16, 16
    key = jax.random.PRNGKey(0)
    kx, kw1, kb1, kw2, kb2 = jax.random.split(key, 5)

    x = jax.random.normal(kx, (B, C, H, W), jnp.float32)
    scale = 1.0 / jnp.sqrt(9.0 * C)
    w1 = jax.random.normal(kw1, (3, 3, C, C), jnp.float32) * scale
    b1 = jax.random.normal(kb1, (C,), jnp.float32) * 0.1
    w2 = jax.random.normal(kw2, (3, 3, C, C), jnp.float32) * scale
    b2 = jax.random.normal(kb2, (C,), jnp.float32) * 0.1

    out = jax.block_until_ready(resnet_block(x, w1, b1, w2, b2))
    ref = jax.block_until_ready(_reference(x, w1, b1, w2, b2))

    assert out.shape == (B, C, H, W)
    # bf16 matmul operands (f32 accumulation / norms / residual) -> looser tol vs f32 ref.
    # The reference keeps the conv biases; matching it also validates that dropping
    # the IN-cancelled biases in the kernel preserves the module semantics.
    assert jnp.allclose(out, ref, atol=5e-2, rtol=5e-2), "mismatch vs reference"
    print("KERNEL_OK")
</pallas_src>

<mosaic_0001>
module attributes {stable_mosaic.version = 11 : i64} {
  func.func @_resnet_block_kernel(%arg0: i32, %arg1: memref<1x16x16x4xf32, #tpu.memory_space<vmem>>, %arg2: memref<1x18x24x4xbf16, #tpu.memory_space<vmem>>, %arg3: memref<3x12x4xbf16, #tpu.memory_space<vmem>>, %arg4: memref<3x12x4xbf16, #tpu.memory_space<vmem>>, %arg5: memref<1x16x16x4xf32, #tpu.memory_space<vmem>>, %arg6: memref<256x4xf32, #tpu.memory_space<vmem>>, %arg7: memref<18x24x4xbf16, #tpu.memory_space<vmem>>) attributes {dimension_semantics = [#tpu.dimension_semantics<parallel>], iteration_bounds = array<i64: 2>, scalar_prefetch = 0 : i64, scratch_operands = 2 : i64, tpu.core_type = #tpu.core_type<tc>, window_params = [{transform_indices = @transform_0, window_bounds = array<i64: 1, 16, 16, 4>}, {transform_indices = @transform_1, window_bounds = array<i64: 1, 18, 24, 4>}, {pipeline_mode = #tpu.pipeline_mode<synchronous>, transform_indices = @transform_2, window_bounds = array<i64: 3, 12, 4>}, {pipeline_mode = #tpu.pipeline_mode<synchronous>, transform_indices = @transform_3, window_bounds = array<i64: 3, 12, 4>}, {transform_indices = @transform_4, window_bounds = array<i64: 1, 16, 16, 4>}]} {
    %c0 = arith.constant 0 : index
    %c0_0 = arith.constant 0 : index
    %c0_1 = arith.constant 0 : index
    %c0_2 = arith.constant 0 : index
    %0 = vector.load %arg2[%c0, %c0_0, %c0_1, %c0_2] : memref<1x18x24x4xbf16, #tpu.memory_space<vmem>>, vector<1x16x24x4xbf16>
    %1 = vector.shape_cast %0 : vector<1x16x24x4xbf16> to vector<16x24x4xbf16>
    %2 = vector.extract_strided_slice %1 {offsets = [0, 0, 0], sizes = [16, 16, 4], strides = [1, 1, 1]} : vector<16x24x4xbf16> to vector<16x16x4xbf16>
    %3 = vector.extract_strided_slice %1 {offsets = [0, 1, 0], sizes = [16, 16, 4], strides = [1, 1, 1]} : vector<16x24x4xbf16> to vector<16x16x4xbf16>
    %4 = vector.extract_strided_slice %1 {offsets = [0, 2, 0], sizes = [16, 16, 4], strides = [1, 1, 1]} : vector<16x24x4xbf16> to vector<16x16x4xbf16>
    %5 = tpu.concatenate %2, %3, %4 in 2 : vector<16x16x4xbf16>, vector<16x16x4xbf16>, vector<16x16x4xbf16> -> vector<16x16x12xbf16>
    %6 = vector.shape_cast %5 : vector<16x16x12xbf16> to vector<256x12xbf16>
    %c0_3 = arith.constant 0 : index
    %c0_4 = arith.constant 0 : index
    %c0_5 = arith.constant 0 : index
    %7 = vector.load %arg3[%c0_3, %c0_4, %c0_5] : memref<3x12x4xbf16, #tpu.memory_space<vmem>>, vector<1x12x4xbf16>
    %8 = vector.shape_cast %7 : vector<1x12x4xbf16> to vector<12x4xbf16>
    %cst = arith.constant dense<0.000000e+00> : vector<256x4xf32>
    %9 = tpu.matmul %6, %8, %cst {dimension_numbers = #tpu.dot_dimension_numbers<[1], [0], [0], [1], [0, 0, 1, 1], [], []>} : vector<256x12xbf16>, vector<12x4xbf16>, vector<256x4xf32> -> vector<256x4xf32>
    %c0_6 = arith.constant 0 : index
    %c0_7 = arith.constant 0 : index
    %10 = vector.load %arg6[%c0_6, %c0_7] : memref<256x4xf32, #tpu.memory_space<vmem>>, vector<256x4xf32>
    tpu.vector_store %arg6[%c0_6, %c0_7], %9 {strides = array<i32>} : memref<256x4xf32, #tpu.memory_space<vmem>>, vector<256x4xf32>,
    %c0_8 = arith.constant 0 : index
    %c1 = arith.constant 1 : index
    %c0_9 = arith.constant 0 : index
    %c0_10 = arith.constant 0 : index
    %11 = vector.load %arg2[%c0_8, %c1, %c0_9, %c0_10] : memref<1x18x24x4xbf16, #tpu.memory_space<vmem>>, vector<1x16x24x4xbf16>
    %12 = vector.shape_cast %11 : vector<1x16x24x4xbf16> to vector<16x24x4xbf16>
    %13 = vector.extract_strided_slice %12 {offsets = [0, 0, 0], sizes = [16, 16, 4], strides = [1, 1, 1]} : vector<16x24x4xbf16> to vector<16x16x4xbf16>
    %14 = vector.extract_strided_slice %12 {offsets = [0, 1, 0], sizes = [16, 16, 4], strides = [1, 1, 1]} : vector<16x24x4xbf16> to vector<16x16x4xbf16>
    %15 = vector.extract_strided_slice %12 {offsets = [0, 2, 0], sizes = [16, 16, 4], strides = [1, 1, 1]} : vector<16x24x4xbf16> to vector<16x16x4xbf16>
    %16 = tpu.concatenate %13, %14, %15 in 2 : vector<16x16x4xbf16>, vector<16x16x4xbf16>, vector<16x16x4xbf16> -> vector<16x16x12xbf16>
    %17 = vector.shape_cast %16 : vector<16x16x12xbf16> to vector<256x12xbf16>
    %c1_11 = arith.constant 1 : index
    %c0_12 = arith.constant 0 : index
    %c0_13 = arith.constant 0 : index
    %18 = vector.load %arg3[%c1_11, %c0_12, %c0_13] : memref<3x12x4xbf16, #tpu.memory_space<vmem>>, vector<1x12x4xbf16>
    %19 = vector.shape_cast %18 : vector<1x12x4xbf16> to vector<12x4xbf16>
    %cst_14 = arith.constant dense<0.000000e+00> : vector<256x4xf32>
    %20 = tpu.matmul %17, %19, %cst_14 {dimension_numbers = #tpu.dot_dimension_numbers<[1], [0], [0], [1], [0, 0, 1, 1], [], []>} : vector<256x12xbf16>, vector<12x4xbf16>, vector<256x4xf32> -> vector<256x4xf32>
    %c0_15 = arith.constant 0 : index
    %c0_16 = arith.constant 0 : index
    %21 = vector.load %arg6[%c0_15, %c0_16] : memref<256x4xf32, #tpu.memory_space<vmem>>, vector<256x4xf32>
    %22 = arith.addf %21, %20 : vector<256x4xf32>
    %c0_17 = arith.constant 0 : index
    %c0_18 = arith.constant 0 : index
    %23 = vector.load %arg6[%c0_17, %c0_18] : memref<256x4xf32, #tpu.memory_space<vmem>>, vector<256x4xf32>
    tpu.vector_store %arg6[%c0_17, %c0_18], %22 {strides = array<i32>} : memref<256x4xf32, #tpu.memory_space<vmem>>, vector<256x4xf32>,
    %c0_19 = arith.constant 0 : index
    %c2 = arith.constant 2 : index
    %c0_20 = arith.constant 0 : index
    %c0_21 = arith.constant 0 : index
    %24 = vector.load %arg2[%c0_19, %c2, %c0_20, %c0_21] : memref<1x18x24x4xbf16, #tpu.memory_space<vmem>>, vector<1x16x24x4xbf16>
    %25 = vector.shape_cast %24 : vector<1x16x24x4xbf16> to vector<16x24x4xbf16>
    %26 = vector.extract_strided_slice %25 {offsets = [0, 0, 0], sizes = [16, 16, 4], strides = [1, 1, 1]} : vector<16x24x4xbf16> to vector<16x16x4xbf16>
    %27 = vector.extract_strided_slice %25 {offsets = [0, 1, 0], sizes = [16, 16, 4], strides = [1, 1, 1]} : vector<16x24x4xbf16> to vector<16x16x4xbf16>
    %28 = vector.extract_strided_slice %25 {offsets = [0, 2, 0], sizes = [16, 16, 4], strides = [1, 1, 1]} : vector<16x24x4xbf16> to vector<16x16x4xbf16>
    %29 = tpu.concatenate %26, %27, %28 in 2 : vector<16x16x4xbf16>, vector<16x16x4xbf16>, vector<16x16x4xbf16> -> vector<16x16x12xbf16>
    %30 = vector.shape_cast %29 : vector<16x16x12xbf16> to vector<256x12xbf16>
    %c2_22 = arith.constant 2 : index
    %c0_23 = arith.constant 0 : index
    %c0_24 = arith.constant 0 : index
    %31 = vector.load %arg3[%c2_22, %c0_23, %c0_24] : memref<3x12x4xbf16, #tpu.memory_space<vmem>>, vector<1x12x4xbf16>
    %32 = vector.shape_cast %31 : vector<1x12x4xbf16> to vector<12x4xbf16>
    %cst_25 = arith.constant dense<0.000000e+00> : vector<256x4xf32>
    %33 = tpu.matmul %30, %32, %cst_25 {dimension_numbers = #tpu.dot_dimension_numbers<[1], [0], [0], [1], [0, 0, 1, 1], [], []>} : vector<256x12xbf16>, vector<12x4xbf16>, vector<256x4xf32> -> vector<256x4xf32>
    %c0_26 = arith.constant 0 : index
    %c0_27 = arith.constant 0 : index
    %34 = vector.load %arg6[%c0_26, %c0_27] : memref<256x4xf32, #tpu.memory_space<vmem>>, vector<256x4xf32>
    %35 = arith.addf %34, %33 : vector<256x4xf32>
    %c0_28 = arith.constant 0 : index
    %c0_29 = arith.constant 0 : index
    %36 = vector.load %arg6[%c0_28, %c0_29] : memref<256x4xf32, #tpu.memory_space<vmem>>, vector<256x4xf32>
    tpu.vector_store %arg6[%c0_28, %c0_29], %35 {strides = array<i32>} : memref<256x4xf32, #tpu.memory_space<vmem>>, vector<256x4xf32>,
    %c0_30 = arith.constant 0 : index
    %c0_31 = arith.constant 0 : index
    %37 = vector.load %arg6[%c0_30, %c0_31] : memref<256x4xf32, #tpu.memory_space<vmem>>, vector<256x4xf32>
    %cst_32 = arith.constant dense<0.000000e+00> : vector<4xf32>
    %38 = vector.multi_reduction <add>, %37, %cst_32 [0] : vector<256x4xf32> to vector<4xf32>
    %39 = vector.shape_cast %38 : vector<4xf32> to vector<1x4xf32>
    %cst_33 = arith.constant 3.906250e-03 : f32
    %40 = vector.broadcast %cst_33 : f32 to vector<1x4xf32>
    %41 = arith.mulf %39, %40 : vector<1x4xf32>
    %42 = arith.mulf %37, %37 : vector<256x4xf32>
    %cst_34 = arith.constant dense<0.000000e+00> : vector<4xf32>
    %43 = vector.multi_reduction <add>, %42, %cst_34 [0] : vector<256x4xf32> to vector<4xf32>
    %44 = vector.shape_cast %43 : vector<4xf32> to vector<1x4xf32>
    %cst_35 = arith.constant 3.906250e-03 : f32
    %45 = vector.broadcast %cst_35 : f32 to vector<1x4xf32>
    %46 = arith.mulf %44, %45 : vector<1x4xf32>
    %47 = arith.mulf %41, %41 : vector<1x4xf32>
    %48 = arith.subf %46, %47 : vector<1x4xf32>
    %cst_36 = arith.constant 0.000000e+00 : f32
    %49 = vector.broadcast %cst_36 : f32 to vector<1x4xf32>
    %50 = arith.maximumf %48, %49 : vector<1x4xf32>
    %51 = vector.broadcast %41 : vector<1x4xf32> to vector<256x4xf32>
    %52 = arith.subf %37, %51 : vector<256x4xf32>
    %cst_37 = arith.constant 9.99999974E-6 : f32
    %53 = vector.broadcast %cst_37 : f32 to vector<1x4xf32>
    %54 = arith.addf %50, %53 : vector<1x4xf32>
    %55 = math.rsqrt %54 : vector<1x4xf32>
    %56 = vector.broadcast %55 : vector<1x4xf32> to vector<256x4xf32>
    %57 = arith.mulf %52, %56 : vector<256x4xf32>
    %cst_38 = arith.constant 0.000000e+00 : f32
    %58 = vector.broadcast %cst_38 : f32 to vector<256x4xf32>
    %59 = arith.maximumf %57, %58 : vector<256x4xf32>
    %60 = arith.truncf %59 : vector<256x4xf32> to vector<256x4xbf16>
    %61 = vector.shape_cast %60 : vector<256x4xbf16> to vector<16x16x4xbf16>
    %c1_39 = arith.constant 1 : index
    %c1_40 = arith.constant 1 : index
    %c0_41 = arith.constant 0 : index
    %62 = vector.load %arg7[%c1_39, %c1_40, %c0_41] : memref<18x24x4xbf16, #tpu.memory_space<vmem>>, vector<16x16x4xbf16>
    tpu.vector_store %arg7[%c1_39, %c1_40, %c0_41], %61 {strides = array<i32>} : memref<18x24x4xbf16, #tpu.memory_space<vmem>>, vector<16x16x4xbf16>,
    %63 = vector.extract_strided_slice %61 {offsets = [1, 0, 0], sizes = [1, 16, 4], strides = [1, 1, 1]} : vector<16x16x4xbf16> to vector<1x16x4xbf16>
    %64 = vector.shape_cast %63 : vector<1x16x4xbf16> to vector<16x4xbf16>
    %c0_42 = arith.constant 0 : index
    %c1_43 = arith.constant 1 : index
    %c0_44 = arith.constant 0 : index
    %65 = vector.load %arg7[%c0_42, %c1_43, %c0_44] : memref<18x24x4xbf16, #tpu.memory_space<vmem>>, vector<1x16x4xbf16>
    %66 = vector.shape_cast %65 : vector<1x16x4xbf16> to vector<16x4xbf16>
    %67 = vector.shape_cast %64 : vector<16x4xbf16> to vector<1x16x4xbf16>
    tpu.vector_store %arg7[%c0_42, %c1_43, %c0_44], %67 {strides = array<i32>} : memref<18x24x4xbf16, #tpu.memory_space<vmem>>, vector<1x16x4xbf16>,
    %68 = vector.extract_strided_slice %61 {offsets = [14, 0, 0], sizes = [1, 16, 4], strides = [1, 1, 1]} : vector<16x16x4xbf16> to vector<1x16x4xbf16>
    %69 = vector.shape_cast %68 : vector<1x16x4xbf16> to vector<16x4xbf16>
    %c17 = arith.constant 17 : index
    %c1_45 = arith.constant 1 : index
    %c0_46 = arith.constant 0 : index
    %70 = vector.load %arg7[%c17, %c1_45, %c0_46] : memref<18x24x4xbf16, #tpu.memory_space<vmem>>, vector<1x16x4xbf16>
    %71 = vector.shape_cast %70 : vector<1x16x4xbf16> to vector<16x4xbf16>
    %72 = vector.shape_cast %69 : vector<16x4xbf16> to vector<1x16x4xbf16>
    tpu.vector_store %arg7[%c17, %c1_45, %c0_46], %72 {strides = array<i32>} : memref<18x24x4xbf16, #tpu.memory_space<vmem>>, vector<1x16x4xbf16>,
    %c0_47 = arith.constant 0 : index
    %c2_48 = arith.constant 2 : index
    %c0_49 = arith.constant 0 : index
    %73 = vector.load %arg7[%c0_47, %c2_48, %c0_49] : memref<18x24x4xbf16, #tpu.memory_space<vmem>>, vector<18x1x4xbf16>
    %c0_50 = arith.constant 0 : index
    %c0_51 = arith.constant 0 : index
    %c0_52 = arith.constant 0 : index
    %74 = vector.load %arg7[%c0_50, %c0_51, %c0_52] : memref<18x24x4xbf16, #tpu.memory_space<vmem>>, vector<18x1x4xbf16>
    tpu.vector_store %arg7[%c0_50, %c0_51, %c0_52], %73 {strides = array<i32>} : memref<18x24x4xbf16, #tpu.memory_space<vmem>>, vector<18x1x4xbf16>,
    %c0_53 = arith.constant 0 : index
    %c15 = arith.constant 15 : index
    %c0_54 = arith.constant 0 : index
    %75 = vector.load %arg7[%c0_53, %c15, %c0_54] : memref<18x24x4xbf16, #tpu.memory_space<vmem>>, vector<18x1x4xbf16>
    %c0_55 = arith.constant 0 : index
    %c17_56 = arith.constant 17 : index
    %c0_57 = arith.constant 0 : index
    %76 = vector.load %arg7[%c0_55, %c17_56, %c0_57] : memref<18x24x4xbf16, #tpu.memory_space<vmem>>, vector<18x1x4xbf16>
    tpu.vector_store %arg7[%c0_55, %c17_56, %c0_57], %75 {strides = array<i32>} : memref<18x24x4xbf16, #tpu.memory_space<vmem>>, vector<18x1x4xbf16>,
    %c0_58 = arith.constant 0 : index
    %c0_59 = arith.constant 0 : index
    %c0_60 = arith.constant 0 : index
    %77 = vector.load %arg7[%c0_58, %c0_59, %c0_60] : memref<18x24x4xbf16, #tpu.memory_space<vmem>>, vector<16x24x4xbf16>
    %78 = vector.extract_strided_slice %77 {offsets = [0, 0, 0], sizes = [16, 16, 4], strides = [1, 1, 1]} : vector<16x24x4xbf16> to vector<16x16x4xbf16>
    %79 = vector.extract_strided_slice %77 {offsets = [0, 1, 0], sizes = [16, 16, 4], strides = [1, 1, 1]} : vector<16x24x4xbf16> to vector<16x16x4xbf16>
    %80 = vector.extract_strided_slice %77 {offsets = [0, 2, 0], sizes = [16, 16, 4], strides = [1, 1, 1]} : vector<16x24x4xbf16> to vector<16x16x4xbf16>
    %81 = tpu.concatenate %78, %79, %80 in 2 : vector<16x16x4xbf16>, vector<16x16x4xbf16>, vector<16x16x4xbf16> -> vector<16x16x12xbf16>
    %82 = vector.shape_cast %81 : vector<16x16x12xbf16> to vector<256x12xbf16>
    %c0_61 = arith.constant 0 : index
    %c0_62 = arith.constant 0 : index
    %c0_63 = arith.constant 0 : index
    %83 = vector.load %arg4[%c0_61, %c0_62, %c0_63] : memref<3x12x4xbf16, #tpu.memory_space<vmem>>, vector<1x12x4xbf16>
    %84 = vector.shape_cast %83 : vector<1x12x4xbf16> to vector<12x4xbf16>
    %cst_64 = arith.constant dense<0.000000e+00> : vector<256x4xf32>
    %85 = tpu.matmul %82, %84, %cst_64 {dimension_numbers = #tpu.dot_dimension_numbers<[1], [0], [0], [1], [0, 0, 1, 1], [], []>} : vector<256x12xbf16>, vector<12x4xbf16>, vector<256x4xf32> -> vector<256x4xf32>
    %c0_65 = arith.constant 0 : index
    %c0_66 = arith.constant 0 : index
    %86 = vector.load %arg6[%c0_65, %c0_66] : memref<256x4xf32, #tpu.memory_space<vmem>>, vector<256x4xf32>
    tpu.vector_store %arg6[%c0_65, %c0_66], %85 {strides = array<i32>} : memref<256x4xf32, #tpu.memory_space<vmem>>, vector<256x4xf32>,
    %c1_67 = arith.constant 1 : index
    %c0_68 = arith.constant 0 : index
    %c0_69 = arith.constant 0 : index
    %87 = vector.load %arg7[%c1_67, %c0_68, %c0_69] : memref<18x24x4xbf16, #tpu.memory_space<vmem>>, vector<16x24x4xbf16>
    %88 = vector.extract_strided_slice %87 {offsets = [0, 0, 0], sizes = [16, 16, 4], strides = [1, 1, 1]} : vector<16x24x4xbf16> to vector<16x16x4xbf16>
    %89 = vector.extract_strided_slice %87 {offsets = [0, 1, 0], sizes = [16, 16, 4], strides = [1, 1, 1]} : vector<16x24x4xbf16> to vector<16x16x4xbf16>
    %90 = vector.extract_strided_slice %87 {offsets = [0, 2, 0], sizes = [16, 16, 4], strides = [1, 1, 1]} : vector<16x24x4xbf16> to vector<16x16x4xbf16>
    %91 = tpu.concatenate %88, %89, %90 in 2 : vector<16x16x4xbf16>, vector<16x16x4xbf16>, vector<16x16x4xbf16> -> vector<16x16x12xbf16>
    %92 = vector.shape_cast %91 : vector<16x16x12xbf16> to vector<256x12xbf16>
    %c1_70 = arith.constant 1 : index
    %c0_71 = arith.constant 0 : index
    %c0_72 = arith.constant 0 : index
    %93 = vector.load %arg4[%c1_70, %c0_71, %c0_72] : memref<3x12x4xbf16, #tpu.memory_space<vmem>>, vector<1x12x4xbf16>
    %94 = vector.shape_cast %93 : vector<1x12x4xbf16> to vector<12x4xbf16>
    %cst_73 = arith.constant dense<0.000000e+00> : vector<256x4xf32>
    %95 = tpu.matmul %92, %94, %cst_73 {dimension_numbers = #tpu.dot_dimension_numbers<[1], [0], [0], [1], [0, 0, 1, 1], [], []>} : vector<256x12xbf16>, vector<12x4xbf16>, vector<256x4xf32> -> vector<256x4xf32>
    %c0_74 = arith.constant 0 : index
    %c0_75 = arith.constant 0 : index
    %96 = vector.load %arg6[%c0_74, %c0_75] : memref<256x4xf32, #tpu.memory_space<vmem>>, vector<256x4xf32>
    %97 = arith.addf %96, %95 : vector<256x4xf32>
    %c0_76 = arith.constant 0 : index
    %c0_77 = arith.constant 0 : index
    %98 = vector.load %arg6[%c0_76, %c0_77] : memref<256x4xf32, #tpu.memory_space<vmem>>, vector<256x4xf32>
    tpu.vector_store %arg6[%c0_76, %c0_77], %97 {strides = array<i32>} : memref<256x4xf32, #tpu.memory_space<vmem>>, vector<256x4xf32>,
    %c2_78 = arith.constant 2 : index
    %c0_79 = arith.constant 0 : index
    %c0_80 = arith.constant 0 : index
    %99 = vector.load %arg7[%c2_78, %c0_79, %c0_80] : memref<18x24x4xbf16, #tpu.memory_space<vmem>>, vector<16x24x4xbf16>
    %100 = vector.extract_strided_slice %99 {offsets = [0, 0, 0], sizes = [16, 16, 4], strides = [1, 1, 1]} : vector<16x24x4xbf16> to vector<16x16x4xbf16>
    %101 = vector.extract_strided_slice %99 {offsets = [0, 1, 0], sizes = [16, 16, 4], strides = [1, 1, 1]} : vector<16x24x4xbf16> to vector<16x16x4xbf16>
    %102 = vector.extract_strided_slice %99 {offsets = [0, 2, 0], sizes = [16, 16, 4], strides = [1, 1, 1]} : vector<16x24x4xbf16> to vector<16x16x4xbf16>
    %103 = tpu.concatenate %100, %101, %102 in 2 : vector<16x16x4xbf16>, vector<16x16x4xbf16>, vector<16x16x4xbf16> -> vector<16x16x12xbf16>
    %104 = vector.shape_cast %103 : vector<16x16x12xbf16> to vector<256x12xbf16>
    %c2_81 = arith.constant 2 : index
    %c0_82 = arith.constant 0 : index
    %c0_83 = arith.constant 0 : index
    %105 = vector.load %arg4[%c2_81, %c0_82, %c0_83] : memref<3x12x4xbf16, #tpu.memory_space<vmem>>, vector<1x12x4xbf16>
    %106 = vector.shape_cast %105 : vector<1x12x4xbf16> to vector<12x4xbf16>
    %cst_84 = arith.constant dense<0.000000e+00> : vector<256x4xf32>
    %107 = tpu.matmul %104, %106, %cst_84 {dimension_numbers = #tpu.dot_dimension_numbers<[1], [0], [0], [1], [0, 0, 1, 1], [], []>} : vector<256x12xbf16>, vector<12x4xbf16>, vector<256x4xf32> -> vector<256x4xf32>
    %c0_85 = arith.constant 0 : index
    %c0_86 = arith.constant 0 : index
    %108 = vector.load %arg6[%c0_85, %c0_86] : memref<256x4xf32, #tpu.memory_space<vmem>>, vector<256x4xf32>
    %109 = arith.addf %108, %107 : vector<256x4xf32>
    %c0_87 = arith.constant 0 : index
    %c0_88 = arith.constant 0 : index
    %110 = vector.load %arg6[%c0_87, %c0_88] : memref<256x4xf32, #tpu.memory_space<vmem>>, vector<256x4xf32>
    tpu.vector_store %arg6[%c0_87, %c0_88], %109 {strides = array<i32>} : memref<256x4xf32, #tpu.memory_space<vmem>>, vector<256x4xf32>,
    %c0_89 = arith.constant 0 : index
    %c0_90 = arith.constant 0 : index
    %111 = vector.load %arg6[%c0_89, %c0_90] : memref<256x4xf32, #tpu.memory_space<vmem>>, vector<256x4xf32>
    %cst_91 = arith.constant dense<0.000000e+00> : vector<4xf32>
    %112 = vector.multi_reduction <add>, %111, %cst_91 [0] : vector<256x4xf32> to vector<4xf32>
    %113 = vector.shape_cast %112 : vector<4xf32> to vector<1x4xf32>
    %cst_92 = arith.constant 3.906250e-03 : f32
    %114 = vector.broadcast %cst_92 : f32 to vector<1x4xf32>
    %115 = arith.mulf %113, %114 : vector<1x4xf32>
    %116 = arith.mulf %111, %111 : vector<256x4xf32>
    %cst_93 = arith.constant dense<0.000000e+00> : vector<4xf32>
    %117 = vector.multi_reduction <add>, %116, %cst_93 [0] : vector<256x4xf32> to vector<4xf32>
    %118 = vector.shape_cast %117 : vector<4xf32> to vector<1x4xf32>
    %cst_94 = arith.constant 3.906250e-03 : f32
    %119 = vector.broadcast %cst_94 : f32 to vector<1x4xf32>
    %120 = arith.mulf %118, %119 : vector<1x4xf32>
    %121 = arith.mulf %115, %115 : vector<1x4xf32>
    %122 = arith.subf %120, %121 : vector<1x4xf32>
    %cst_95 = arith.constant 0.000000e+00 : f32
    %123 = vector.broadcast %cst_95 : f32 to vector<1x4xf32>
    %124 = arith.maximumf %122, %123 : vector<1x4xf32>
    %125 = vector.broadcast %115 : vector<1x4xf32> to vector<256x4xf32>
    %126 = arith.subf %111, %125 : vector<256x4xf32>
    %cst_96 = arith.constant 9.99999974E-6 : f32
    %127 = vector.broadcast %cst_96 : f32 to vector<1x4xf32>
    %128 = arith.addf %124, %127 : vector<1x4xf32>
    %129 = math.rsqrt %128 : vector<1x4xf32>
    %130 = vector.broadcast %129 : vector<1x4xf32> to vector<256x4xf32>
    %131 = arith.mulf %126, %130 : vector<256x4xf32>
    %c0_97 = arith.constant 0 : index
    %c0_98 = arith.constant 0 : index
    %c0_99 = arith.constant 0 : index
    %c0_100 = arith.constant 0 : index
    %132 = vector.load %arg1[%c0_97, %c0_98, %c0_99, %c0_100] : memref<1x16x16x4xf32, #tpu.memory_space<vmem>>, vector<1x16x16x4xf32>
    %133 = vector.shape_cast %132 : vector<1x16x16x4xf32> to vector<16x16x4xf32>
    %134 = vector.shape_cast %131 : vector<256x4xf32> to vector<16x16x4xf32>
    %135 = arith.addf %133, %134 : vector<16x16x4xf32>
    %c0_101 = arith.constant 0 : index
    %c0_102 = arith.constant 0 : index
    %c0_103 = arith.constant 0 : index
    %c0_104 = arith.constant 0 : index
    %136 = vector.load %arg5[%c0_101, %c0_102, %c0_103, %c0_104] : memref<1x16x16x4xf32, #tpu.memory_space<vmem>>, vector<1x16x16x4xf32>
    %137 = vector.shape_cast %136 : vector<1x16x16x4xf32> to vector<16x16x4xf32>
    %138 = vector.shape_cast %135 : vector<16x16x4xf32> to vector<1x16x16x4xf32>
    tpu.vector_store %arg5[%c0_101, %c0_102, %c0_103, %c0_104], %138 {strides = array<i32>} : memref<1x16x16x4xf32, #tpu.memory_space<vmem>>, vector<1x16x16x4xf32>,
    return
  }
  func.func @transform_0(%arg0: i32) -> (i32, i32, i32, i32) {
    %c0_i32 = arith.constant 0 : i32
    %c0_i32_0 = arith.constant 0 : i32
    %c0_i32_1 = arith.constant 0 : i32
    %c0_i32_2 = arith.constant 0 : i32
    return %arg0, %c0_i32, %c0_i32_0, %c0_i32_1 : i32, i32, i32, i32
  }
  func.func @transform_1(%arg0: i32) -> (i32, i32, i32, i32) {
    %c0_i32 = arith.constant 0 : i32
    %c0_i32_0 = arith.constant 0 : i32
    %c0_i32_1 = arith.constant 0 : i32
    %c0_i32_2 = arith.constant 0 : i32
    return %arg0, %c0_i32, %c0_i32_0, %c0_i32_1 : i32, i32, i32, i32
  }
  func.func @transform_2(%arg0: i32) -> (i32, i32, i32) {
    %c0_i32 = arith.constant 0 : i32
    %c0_i32_0 = arith.constant 0 : i32
    %c0_i32_1 = arith.constant 0 : i32
    %c0_i32_2 = arith.constant 0 : i32
    return %c0_i32, %c0_i32_0, %c0_i32_1 : i32, i32, i32
  }
  func.func @transform_3(%arg0: i32) -> (i32, i32, i32) {
    %c0_i32 = arith.constant 0 : i32
    %c0_i32_0 = arith.constant 0 : i32
    %c0_i32_1 = arith.constant 0 : i32
    %c0_i32_2 = arith.constant 0 : i32
    return %c0_i32, %c0_i32_0, %c0_i32_1 : i32, i32, i32
  }
  func.func @transform_4(%arg0: i32) -> (i32, i32, i32, i32) {
    %c0_i32 = arith.constant 0 : i32
    %c0_i32_0 = arith.constant 0 : i32
    %c0_i32_1 = arith.constant 0 : i32
    %c0_i32_2 = arith.constant 0 : i32
    return %arg0, %c0_i32, %c0_i32_0, %c0_i32_1 : i32, i32, i32, i32
  }
}

</mosaic_0001>

<llo_original>
// kernel: resnet_block.1
$region0: #{resnet_block.1}
  #allocation0 [shape = 'u32[]', space=smem, size = 0x4, offset = 0x4, fixed_abs, tag = 'smem constant byte address 0x4 - core index']
  #allocation1 [shape = 'u32[144,128]{1,0:T(1,128)}', space=vmem, size = 0x12000, scoped, tag = 'internal scratch']
  #allocation2 [shape = 'f32[256,4]{1,0:T(8,128)}', space=vmem, size = 0x20000, scoped, tag = 'scratch operand']
  #allocation3 [shape = 'bf16[18,24,4]{2,1,0:T(8,128)(2,1)}', space=vmem, size = 0x1b000, scoped, tag = 'scratch operand']
  %s0 = inlined_call_operand.vmem [shape: f32[2,16,16,4], index: 0, kind: input, shape index: {}]
  %s1 = inlined_call_operand.vmem [shape: bf16[2,18,24,4], index: 1, kind: input, shape index: {}]
  %s2 = inlined_call_operand.vmem [shape: bf16[3,12,4], index: 2, kind: input, shape index: {}]
  %s3 = inlined_call_operand.vmem [shape: bf16[3,12,4], index: 3, kind: input, shape index: {}]
  %s4 = inlined_call_operand.vmem [shape: f32[2,16,16,4], index: 4, kind: output, shape index: {}]
  %s5 = sld [smem:[#allocation0]]
  $region49: #{resnet_block.1} parent=0
    _
  %s7 = ssub.s32 1, %s5
  %s8 = scalar_select 0, %s7, %s5
  loop: start=0, step=1, limit=4
  $region2: #{resnet_block.1} parent=0 // loop_pre_header
    _
  $region3: #{resnet_block.1} parent=0 // loop_header
    %s10 = sphi 0, %s14
    %p11 = scmp.ge.s32.totalorder %s10, 4
    %s20 = sphi 0, %s22
    %s23 = sphi 0, %s20
    %s24 = sphi 0, %s23
    %s40 = sphi 0, %s24
    %s46 = sphi 0, %s48
    %s49 = sphi 0, %s46
    %s50 = sphi 0, %s49
    %s66 = sphi 0, %s50
    %s70 = sphi 0, %s70
    %s72 = sphi 0, %s70
    %s73 = sphi 0, %s72
    %s87 = sphi 0, %s73
    %s91 = sphi 0, %s91
    %s93 = sphi 0, %s91
    %s94 = sphi 0, %s93
    %s108 = sphi 0, %s94
    %s114 = sphi 0, %s116
    %s117 = sphi 0, %s114
    %s118 = sphi 0, %s117
    %s134 = sphi 0, %s118
  $region4: #{resnet_block.1} parent=0 // loop_header_branch
    %13 = sbr.rel (%p11) target = $region8
  $region5: #{resnet_block.1} parent=0 // loop_body
    %s15 = ssub.s32 %s10, 1
    %s16 = ssub.s32 %s10, 2
    %s17 = sadd.s32 %s10, 1
    %s18 = ssub.s32 %s10, %s17
    %p19 = scmp.eq.s32.totalorder %s18, 0
    %s21 = sadd.s32 %s20, 1
    %s22 = scalar_select %p19, %s20, %s21
    %p25 = pneg %p19
    %p26 = scmp.eq.s32.totalorder %s10, 1
    %p27 = por %p25, %p26
    %p28 = scmp.ne.s32.totalorder %s20, %s23
    %p29 = scmp.eq.s32.totalorder %s10, 0
    %p30 = por %p28, %p29
    %p31 = scmp.ne.s32.totalorder %s20, %s23
    %p32 = scmp.eq.s32.totalorder %s15, 1
    %p33 = por %p31, %p32
    %p34 = scmp.ne.s32.totalorder %s23, %s24
    %p35 = scmp.eq.s32.totalorder %s15, 0
    %p36 = por %p34, %p35
    %p37 = scmp.ne.s32.totalorder %s23, %s24
    %p38 = scmp.eq.s32.totalorder %s16, 1
    %p39 = por %p37, %p38
    %p41 = scmp.ne.s32.totalorder %s24, %s40
    %p42 = scmp.eq.s32.totalorder %s16, 0
    %p43 = por %p41, %p42
    %s44 = ssub.s32 %s10, %s17
    %p45 = scmp.eq.s32.totalorder %s44, 0
    %s47 = sadd.s32 %s46, 1
    %s48 = scalar_select %p45, %s46, %s47
    %p51 = pneg %p45
    %p52 = scmp.eq.s32.totalorder %s10, 1
    %p53 = por %p51, %p52
    %p54 = scmp.ne.s32.totalorder %s46, %s49
    %p55 = scmp.eq.s32.totalorder %s10, 0
    %p56 = por %p54, %p55
    %p57 = scmp.ne.s32.totalorder %s46, %s49
    %p58 = scmp.eq.s32.totalorder %s15, 1
    %p59 = por %p57, %p58
    %p60 = scmp.ne.s32.totalorder %s49, %s50
    %p61 = scmp.eq.s32.totalorder %s15, 0
    %p62 = por %p60, %p61
    %p63 = scmp.ne.s32.totalorder %s49, %s50
    %p64 = scmp.eq.s32.totalorder %s16, 1
    %p65 = por %p63, %p64
    %p67 = scmp.ne.s32.totalorder %s50, %s66
    %p68 = scmp.eq.s32.totalorder %s16, 0
    %p69 = por %p67, %p68
    %s71 = sadd.s32 %s70, 1
    %p74 = scmp.eq.s32.totalorder %s10, 1
    %p75 = scmp.ne.s32.totalorder %s70, %s72
    %p76 = scmp.eq.s32.totalorder %s10, 0
    %p77 = por %p75, %p76
    %p78 = scmp.ne.s32.totalorder %s70, %s72
    %p79 = scmp.eq.s32.totalorder %s15, 1
    %p80 = por %p78, %p79
    %p81 = scmp.ne.s32.totalorder %s72, %s73
    %p82 = scmp.eq.s32.totalorder %s15, 0
    %p83 = por %p81, %p82
    %p84 = scmp.ne.s32.totalorder %s72, %s73
    %p85 = scmp.eq.s32.totalorder %s16, 1
    %p86 = por %p84, %p85
    %p88 = scmp.ne.s32.totalorder %s73, %s87
    %p89 = scmp.eq.s32.totalorder %s16, 0
    %p90 = por %p88, %p89
    %s92 = sadd.s32 %s91, 1
    %p95 = scmp.eq.s32.totalorder %s10, 1
    %p96 = scmp.ne.s32.totalorder %s91, %s93
    %p97 = scmp.eq.s32.totalorder %s10, 0
    %p98 = por %p96, %p97
    %p99 = scmp.ne.s32.totalorder %s91, %s93
    %p100 = scmp.eq.s32.totalorder %s15, 1
    %p101 = por %p99, %p100
    %p102 = scmp.ne.s32.totalorder %s93, %s94
    %p103 = scmp.eq.s32.totalorder %s15, 0
    %p104 = por %p102, %p103
    %p105 = scmp.ne.s32.totalorder %s93, %s94
    %p106 = scmp.eq.s32.totalorder %s16, 1
    %p107 = por %p105, %p106
    %p109 = scmp.ne.s32.totalorder %s94, %s108
    %p110 = scmp.eq.s32.totalorder %s16, 0
    %p111 = por %p109, %p110
    %s112 = ssub.s32 %s10, %s17
    %p113 = scmp.eq.s32.totalorder %s112, 0
    %s115 = sadd.s32 %s114, 1
    %s116 = scalar_select %p113, %s114, %s115
    %p119 = pneg %p113
    %p120 = scmp.eq.s32.totalorder %s10, 1
    %p121 = por %p119, %p120
    %p122 = scmp.ne.s32.totalorder %s114, %s117
    %p123 = scmp.eq.s32.totalorder %s10, 0
    %p124 = por %p122, %p123
    %p125 = scmp.ne.s32.totalorder %s114, %s117
    %p126 = scmp.eq.s32.totalorder %s15, 1
    %p127 = por %p125, %p126
    %p128 = scmp.ne.s32.totalorder %s117, %s118
    %p129 = scmp.eq.s32.totalorder %s15, 0
    %p130 = por %p128, %p129
    %p131 = scmp.ne.s32.totalorder %s117, %s118
    %p132 = scmp.eq.s32.totalorder %s16, 1
    %p133 = por %p131, %p132
    %p135 = scmp.ne.s32.totalorder %s118, %s134
    %p136 = scmp.eq.s32.totalorder %s16, 0
    %p137 = por %p135, %p136
    %p138 = scmp.le.s32.totalorder 1, %s10
    %p139 = scmp.lt.s32.totalorder %s10, 3
    %p140 = pnand %p138, %p139
    %p141 = pneg %p140
    // Predicated region
    $region9: #{resnet_block.1} parent=5 // pred_check
      _
    $region10: #{resnet_block.1} parent=5 // pred_check_branch
      %143 = sbr.rel (%p140) target = $region12
    $region11: #{resnet_block.1} parent=5 // pred_region
      %s144 = ssub.s32 %s10, 1
      // Predicated region
      $region13: #{resnet_block.1} parent=11 // pred_check
        %p145 = pneg %p83
      $region14: #{resnet_block.1} parent=11 // pred_check_branch
        %147 = sbr.rel (%p145) target = $region16
      $region15: #{resnet_block.1} parent=11 // pred_region
        _
      $region16: #{resnet_block.1} parent=11 // pred_fallthru
        _
      // Predicated region
      $region17: #{resnet_block.1} parent=11 // pred_check
        %p148 = pneg %p104
      $region18: #{resnet_block.1} parent=11 // pred_check_branch
        %150 = sbr.rel (%p148) target = $region20
      $region19: #{resnet_block.1} parent=11 // pred_region
        _
      $region20: #{resnet_block.1} parent=11 // pred_fallthru
        _
    $region12: #{resnet_block.1} parent=5 // pred_fallthru
      _
    %p151 = scmp.lt.s32.totalorder %s10, 2
    // Predicated region
    $region21: #{resnet_block.1} parent=5 // pred_check
      %p152 = pneg %p151
    $region22: #{resnet_block.1} parent=5 // pred_check_branch
      %154 = sbr.rel (%p152) target = $region24
    $region23: #{resnet_block.1} parent=5 // pred_region
      // Predicated region
      $region25: #{resnet_block.1} parent=23 // pred_check
        %p155 = pneg %p30
      $region26: #{resnet_block.1} parent=23 // pred_check_branch
        %157 = sbr.rel (%p155) target = $region28
      $region27: #{resnet_block.1} parent=23 // pred_region
        %p158 = scmp.lt.s32.totalorder %s10, 1
        %s159 = scalar_select %p158, %s10, 1
        %s160 = smul.addr %s159, 32
        %s161 = smul.addr %s160, 8
        %s162 = scalar_lea.vmem %s0, %s161
      $region28: #{resnet_block.1} parent=23 // pred_fallthru
        _
      // Predicated region
      $region29: #{resnet_block.1} parent=23 // pred_check
        %p163 = pneg %p56
      $region30: #{resnet_block.1} parent=23 // pred_check_branch
        %165 = sbr.rel (%p163) target = $region32
      $region31: #{resnet_block.1} parent=23 // pred_region
        %p166 = scmp.lt.s32.totalorder %s10, 1
        %s167 = scalar_select %p166, %s10, 1
        %s168 = smul.addr %s167, 54
        %s169 = smul.addr %s168, 4
        %s170 = scalar_lea.vmem %s1, %s169
      $region32: #{resnet_block.1} parent=23 // pred_fallthru
        _
    $region24: #{resnet_block.1} parent=5 // pred_fallthru
      _
    %p171 = scmp.le.s32.totalorder 1, %s10
    %p172 = scmp.lt.s32.totalorder %s10, 3
    %p173 = pnand %p171, %p172
    %p174 = pneg %p173
    // Predicated region
    $region33: #{resnet_block.1} parent=5 // pred_check
      _
    $region34: #{resnet_block.1} parent=5 // pred_check_branch
      %176 = sbr.rel (%p173) target = $region36
    $region35: #{resnet_block.1} parent=5 // pred_region
      %s177 = ssub.s32 %s10, 1
      %p178 = scmp.lt.s32.totalorder %s15, 1
      %s179 = scalar_select %p178, %s15, 1
      %s180 = smul.addr %s179, 32
      %s181 = smul.addr %s180, 8
      %s182 = scalar_lea.vmem %s0, %s181
      %p183 = pneg %p36
      %p184 = pneg %p33
      %p185 = scmp.lt.s32.totalorder %s15, 1
      %s186 = scalar_select %p185, %s15, 1
      %s187 = smul.addr %s186, 54
      %s188 = smul.addr %s187, 4
      %s189 = scalar_lea.vmem %s1, %s188
      %p190 = pneg %p62
      %p191 = pneg %p59
      %p192 = pneg %p83
      %p193 = pneg %p80
      %p194 = pneg %p104
      %p195 = pneg %p101
      %p196 = pneg %p130
      %p197 = pneg %p127
      %p198 = scmp.lt.s32.totalorder %s15, 1
      %s199 = scalar_select %p198, %s15, 1
      %s200 = smul.addr %s199, 32
      %s201 = smul.addr %s200, 8
      %s202 = scalar_lea.vmem %s4, %s201
      %p203 = scmp.lt.s32.totalorder %s15, 1
      %s204 = scalar_select %p203, %s15, 1
      %s205 = smul.addr %s204, 32
      %s206 = smul.addr %s205, 8
      %s207 = scalar_lea.vmem %s0, %s206
      %p208 = scmp.lt.s32.totalorder %s15, 1
      %s209 = scalar_select %p208, %s15, 1
      %s210 = smul.addr %s209, 54
      %s211 = smul.addr %s210, 4
      %s212 = scalar_lea.vmem %s1, %s211
      %p213 = scmp.lt.s32.totalorder %s15, 1
      %s214 = scalar_select %p213, %s15, 1
      %s215 = smul.addr %s214, 32
      %s216 = smul.addr %s215, 8
      %s217 = scalar_lea.vmem %s4, %s216
      %v219 = vld [vmem:[%s212] sm:$0xf]
      %v220 = vld [vmem:[%s212 + $0x4] sm:$0xf]
      %v221 = vld [vmem:[%s212 + $0x8] sm:$0xf]
      %v222 = vld [vmem:[%s212 + $0xc] sm:$0xf]
      %v223 = vld [vmem:[%s212 + $0x10] sm:$0xf]
      %v224 = vld [vmem:[%s212 + $0x14] sm:$0xf]
      %v225 = vld [vmem:[%s212 + $0x18] sm:$0xf]
      %v226 = vld [vmem:[%s212 + $0x1c] sm:$0xf]
      %v227 = vld [vmem:[%s212 + $0x20] sm:$0xf]
      %v228 = vld [vmem:[%s212 + $0x24] sm:$0xf]
      %v229 = vld [vmem:[%s212 + $0x28] sm:$0xf]
      %v230 = vld [vmem:[%s212 + $0x2c] sm:$0xf]
      %v231 = vld [vmem:[%s212 + $0x30] sm:$0xf]
      %v232 = vld [vmem:[%s212 + $0x34] sm:$0xf]
      %v233 = vld [vmem:[%s212 + $0x38] sm:$0xf]
      %v234 = vld [vmem:[%s212 + $0x3c] sm:$0xf]
      %v235 = vld [vmem:[%s212 + $0x40] sm:$0xf]
      %v236 = vld [vmem:[%s212 + $0x44] sm:$0xf]
      %v237 = vld [vmem:[%s212 + $0x48] sm:$0xf]
      %v238 = vld [vmem:[%s212 + $0x4c] sm:$0xf]
      %v239 = vld [vmem:[%s212 + $0x50] sm:$0xf]
      %v240 = vld [vmem:[%s212 + $0x54] sm:$0xf]
      %v241 = vld [vmem:[%s212 + $0x58] sm:$0xf]
      %v242 = vld [vmem:[%s212 + $0x5c] sm:$0xf]
      %v243 = vld [vmem:[%s212 + $0x60] sm:$0xf]
      %v244 = vld [vmem:[%s212 + $0x64] sm:$0xf]
      %v245 = vld [vmem:[%s212 + $0x68] sm:$0xf]
      %v246 = vld [vmem:[%s212 + $0x6c] sm:$0xf]
      %v247 = vld [vmem:[%s212 + $0x70] sm:$0xf]
      %v248 = vld [vmem:[%s212 + $0x74] sm:$0xf]
      %v249 = vld [vmem:[%s212 + $0x78] sm:$0xf]
      %v250 = vld [vmem:[%s212 + $0x7c] sm:$0xf]
      %v251 = vld [vmem:[%s212 + $0x80] sm:$0xf]
      %v252 = vld [vmem:[%s212 + $0x84] sm:$0xf]
      %v253 = vld [vmem:[%s212 + $0x88] sm:$0xf]
      %v254 = vld [vmem:[%s212 + $0x8c] sm:$0xf]
      %v255 = vld [vmem:[%s212 + $0x90] sm:$0xf]
      %v256 = vld [vmem:[%s212 + $0x94] sm:$0xf]
      %v257 = vld [vmem:[%s212 + $0x98] sm:$0xf]
      %v258 = vld [vmem:[%s212 + $0x9c] sm:$0xf]
      %v259 = vld [vmem:[%s212 + $0xa0] sm:$0xf]
      %v260 = vld [vmem:[%s212 + $0xa4] sm:$0xf]
      %v261 = vld [vmem:[%s212 + $0xa8] sm:$0xf]
      %v262 = vld [vmem:[%s212 + $0xac] sm:$0xf]
      %v263 = vld [vmem:[%s212 + $0xb0] sm:$0xf]
      %v264 = vld [vmem:[%s212 + $0xb4] sm:$0xf]
      %v265 = vld [vmem:[%s212 + $0xb8] sm:$0xf]
      %v266 = vld [vmem:[%s212 + $0xbc] sm:$0xf]
      %v299 = vunpack.c.l.b16 %v219
      %v300 = vunpack.c.l.b16 %v220
      %v301 = vunpack.c.l.b16 %v222
      %v302 = vunpack.c.l.b16 %v223
      %v303 = vunpack.c.l.b16 %v225
      %v304 = vunpack.c.l.b16 %v226
      %v305 = vunpack.c.l.b16 %v228
      %v306 = vunpack.c.l.b16 %v229
      %v307 = vunpack.c.l.b16 %v231
      %v308 = vunpack.c.l.b16 %v232
      %v309 = vunpack.c.l.b16 %v234
      %v310 = vunpack.c.l.b16 %v235
      %v311 = vunpack.c.l.b16 %v237
      %v312 = vunpack.c.l.b16 %v238
      %v313 = vunpack.c.l.b16 %v240
      %v314 = vunpack.c.l.b16 %v241
      %v315 = vunpack.c.l.b16 %v243
      %v316 = vunpack.c.l.b16 %v244
      %v317 = vunpack.c.l.b16 %v246
      %v318 = vunpack.c.l.b16 %v247
      %v319 = vunpack.c.l.b16 %v249
      %v320 = vunpack.c.l.b16 %v250
      %v321 = vunpack.c.l.b16 %v252
      %v322 = vunpack.c.l.b16 %v253
      %v323 = vunpack.c.l.b16 %v255
      %v324 = vunpack.c.l.b16 %v256
      %v325 = vunpack.c.l.b16 %v258
      %v326 = vunpack.c.l.b16 %v259
      %v327 = vunpack.c.l.b16 %v261
      %v328 = vunpack.c.l.b16 %v262
      %v329 = vunpack.c.l.b16 %v264
      %v330 = vunpack.c.l.b16 %v265
      %v331 = vpack.c.b16 %v300, %v299
      %v332 = vpack.c.b16 %v302, %v301
      %v333 = vpack.c.b16 %v304, %v303
      %v334 = vpack.c.b16 %v306, %v305
      %v335 = vpack.c.b16 %v308, %v307
      %v336 = vpack.c.b16 %v310, %v309
      %v337 = vpack.c.b16 %v312, %v311
      %v338 = vpack.c.b16 %v314, %v313
      %v339 = vpack.c.b16 %v316, %v315
      %v340 = vpack.c.b16 %v318, %v317
      %v341 = vpack.c.b16 %v320, %v319
      %v342 = vpack.c.b16 %v322, %v321
      %v343 = vpack.c.b16 %v324, %v323
      %v344 = vpack.c.b16 %v326, %v325
      %v345 = vpack.c.b16 %v328, %v327
      %v346 = vpack.c.b16 %v330, %v329
      %v363 = vunpack.c.l.b16 %v221
      %v364 = vunpack.c.l.b16 %v224
      %v365 = vunpack.c.l.b16 %v227
      %v366 = vunpack.c.l.b16 %v230
      %v367 = vunpack.c.l.b16 %v233
      %v368 = vunpack.c.l.b16 %v236
      %v369 = vunpack.c.l.b16 %v239
      %v370 = vunpack.c.l.b16 %v242
      %v371 = vunpack.c.l.b16 %v245
      %v372 = vunpack.c.l.b16 %v248
      %v373 = vunpack.c.l.b16 %v251
      %v374 = vunpack.c.l.b16 %v254
      %v375 = vunpack.c.l.b16 %v257
      %v376 = vunpack.c.l.b16 %v260
      %v377 = vunpack.c.l.b16 %v263
      %v378 = vunpack.c.l.b16 %v266
      %v379 = vpack.c.b16 %v363, %v363
      %v380 = vpack.c.b16 %v364, %v364
      %v381 = vpack.c.b16 %v365, %v365
      %v382 = vpack.c.b16 %v366, %v366
      %v383 = vpack.c.b16 %v367, %v367
      %v384 = vpack.c.b16 %v368, %v368
      %v385 = vpack.c.b16 %v369, %v369
      %v386 = vpack.c.b16 %v370, %v370
      %v387 = vpack.c.b16 %v371, %v371
      %v388 = vpack.c.b16 %v372, %v372
      %v389 = vpack.c.b16 %v373, %v373
      %v390 = vpack.c.b16 %v374, %v374
      %v391 = vpack.c.b16 %v375, %v375
      %v392 = vpack.c.b16 %v376, %v376
      %v393 = vpack.c.b16 %v377, %v377
      %v394 = vpack.c.b16 %v378, %v378
      %vm395 = vsmask.f32 7424
      %v397 = vshrl.u32 %v331, 16
      %v399 = vshll.u32 %v331, 16
      %v401 = vrot.slane %v399, 1
      %v402 = vor.u32 %v397, %v401
      %v404 = vshll.u32 %v379, 16
      %v406 = vrot.slane %v404, 1
      %v407 = vsel %vm395, %v402, %v406
      %v409 = vshrl.u32 %v332, 16
      %v411 = vshll.u32 %v332, 16
      %v413 = vrot.slane %v411, 1
      %v414 = vor.u32 %v409, %v413
      %v416 = vshll.u32 %v380, 16
      %v418 = vrot.slane %v416, 1
      %v419 = vsel %vm395, %v414, %v418
      %v421 = vshrl.u32 %v333, 16
      %v423 = vshll.u32 %v333, 16
      %v425 = vrot.slane %v423, 1
      %v426 = vor.u32 %v421, %v425
      %v428 = vshll.u32 %v381, 16
      %v430 = vrot.slane %v428, 1
      %v431 = vsel %vm395, %v426, %v430
      %v433 = vshrl.u32 %v334, 16
      %v435 = vshll.u32 %v334, 16
      %v437 = vrot.slane %v435, 1
      %v438 = vor.u32 %v433, %v437
      %v440 = vshll.u32 %v382, 16
      %v442 = vrot.slane %v440, 1
      %v443 = vsel %vm395, %v438, %v442
      %v445 = vshrl.u32 %v335, 16
      %v447 = vshll.u32 %v335, 16
      %v449 = vrot.slane %v447, 1
      %v450 = vor.u32 %v445, %v449
      %v452 = vshll.u32 %v383, 16
      %v454 = vrot.slane %v452, 1
      %v455 = vsel %vm395, %v450, %v454
      %v457 = vshrl.u32 %v336, 16
      %v459 = vshll.u32 %v336, 16
      %v461 = vrot.slane %v459, 1
      %v462 = vor.u32 %v457, %v461
      %v464 = vshll.u32 %v384, 16
      %v466 = vrot.slane %v464, 1
      %v467 = vsel %vm395, %v462, %v466
      %v469 = vshrl.u32 %v337, 16
      %v471 = vshll.u32 %v337, 16
      %v473 = vrot.slane %v471, 1
      %v474 = vor.u32 %v469, %v473
      %v476 = vshll.u32 %v385, 16
      %v478 = vrot.slane %v476, 1
      %v479 = vsel %vm395, %v474, %v478
      %v481 = vshrl.u32 %v338, 16
      %v483 = vshll.u32 %v338, 16
      %v485 = vrot.slane %v483, 1
      %v486 = vor.u32 %v481, %v485
      %v488 = vshll.u32 %v386, 16
      %v490 = vrot.slane %v488, 1
      %v491 = vsel %vm395, %v486, %v490
      %v493 = vshrl.u32 %v339, 16
      %v495 = vshll.u32 %v339, 16
      %v497 = vrot.slane %v495, 1
      %v498 = vor.u32 %v493, %v497
      %v500 = vshll.u32 %v387, 16
      %v502 = vrot.slane %v500, 1
      %v503 = vsel %vm395, %v498, %v502
      %v505 = vshrl.u32 %v340, 16
      %v507 = vshll.u32 %v340, 16
      %v509 = vrot.slane %v507, 1
      %v510 = vor.u32 %v505, %v509
      %v512 = vshll.u32 %v388, 16
      %v514 = vrot.slane %v512, 1
      %v515 = vsel %vm395, %v510, %v514
      %v517 = vshrl.u32 %v341, 16
      %v519 = vshll.u32 %v341, 16
      %v521 = vrot.slane %v519, 1
      %v522 = vor.u32 %v517, %v521
      %v524 = vshll.u32 %v389, 16
      %v526 = vrot.slane %v524, 1
      %v527 = vsel %vm395, %v522, %v526
      %v529 = vshrl.u32 %v342, 16
      %v531 = vshll.u32 %v342, 16
      %v533 = vrot.slane %v531, 1
      %v534 = vor.u32 %v529, %v533
      %v536 = vshll.u32 %v390, 16
      %v538 = vrot.slane %v536, 1
      %v539 = vsel %vm395, %v534, %v538
      %v541 = vshrl.u32 %v343, 16
      %v543 = vshll.u32 %v343, 16
      %v545 = vrot.slane %v543, 1
      %v546 = vor.u32 %v541, %v545
      %v548 = vshll.u32 %v391, 16
      %v550 = vrot.slane %v548, 1
      %v551 = vsel %vm395, %v546, %v550
      %v553 = vshrl.u32 %v344, 16
      %v555 = vshll.u32 %v344, 16
      %v557 = vrot.slane %v555, 1
      %v558 = vor.u32 %v553, %v557
      %v560 = vshll.u32 %v392, 16
      %v562 = vrot.slane %v560, 1
      %v563 = vsel %vm395, %v558, %v562
      %v565 = vshrl.u32 %v345, 16
      %v567 = vshll.u32 %v345, 16
      %v569 = vrot.slane %v567, 1
      %v570 = vor.u32 %v565, %v569
      %v572 = vshll.u32 %v393, 16
      %v574 = vrot.slane %v572, 1
      %v575 = vsel %vm395, %v570, %v574
      %v577 = vshrl.u32 %v346, 16
      %v579 = vshll.u32 %v346, 16
      %v581 = vrot.slane %v579, 1
      %v582 = vor.u32 %v577, %v581
      %v584 = vshll.u32 %v394, 16
      %v586 = vrot.slane %v584, 1
      %v587 = vsel %vm395, %v582, %v586
      %588 = vrot.lane.b32.xlu0 %v407, 4
      %v589 = vpop.permute.xlu0 %588
      %590 = vrot.lane.b32.xlu0 %v419, 4
      %v591 = vpop.permute.xlu0 %590
      %592 = vrot.lane.b32.xlu0 %v431, 4
      %v593 = vpop.permute.xlu0 %592
      %594 = vrot.lane.b32.xlu0 %v443, 4
      %v595 = vpop.permute.xlu0 %594
      %596 = vrot.lane.b32.xlu0 %v455, 4
      %v597 = vpop.permute.xlu0 %596
      %598 = vrot.lane.b32.xlu0 %v467, 4
      %v599 = vpop.permute.xlu0 %598
      %600 = vrot.lane.b32.xlu0 %v479, 4
      %v601 = vpop.permute.xlu0 %600
      %602 = vrot.lane.b32.xlu0 %v491, 4
      %v603 = vpop.permute.xlu0 %602
      %604 = vrot.lane.b32.xlu0 %v503, 4
      %v605 = vpop.permute.xlu0 %604
      %606 = vrot.lane.b32.xlu0 %v515, 4
      %v607 = vpop.permute.xlu0 %606
      %608 = vrot.lane.b32.xlu0 %v527, 4
      %v609 = vpop.permute.xlu0 %608
      %610 = vrot.lane.b32.xlu0 %v539, 4
      %v611 = vpop.permute.xlu0 %610
      %612 = vrot.lane.b32.xlu0 %v551, 4
      %v613 = vpop.permute.xlu0 %612
      %614 = vrot.lane.b32.xlu0 %v563, 4
      %v615 = vpop.permute.xlu0 %614
      %616 = vrot.lane.b32.xlu0 %v575, 4
      %v617 = vpop.permute.xlu0 %616
      %618 = vrot.lane.b32.xlu0 %v587, 4
      %v619 = vpop.permute.xlu0 %618
      %vm620 = vcmask 1046528
      %v621 = vrot.slane %v331, 1
      %v622 = vrot.slane %v379, 1
      %v623 = vsel %vm620, %v621, %v622
      %v624 = vrot.slane %v332, 1
      %v625 = vrot.slane %v380, 1
      %v626 = vsel %vm620, %v624, %v625
      %v627 = vrot.slane %v333, 1
      %v628 = vrot.slane %v381, 1
      %v629 = vsel %vm620, %v627, %v628
      %v630 = vrot.slane %v334, 1
      %v631 = vrot.slane %v382, 1
      %v632 = vsel %vm620, %v630, %v631
      %v633 = vrot.slane %v335, 1
      %v634 = vrot.slane %v383, 1
      %v635 = vsel %vm620, %v633, %v634
      %v636 = vrot.slane %v336, 1
      %v637 = vrot.slane %v384, 1
      %v638 = vsel %vm620, %v636, %v637
      %v639 = vrot.slane %v337, 1
      %v640 = vrot.slane %v385, 1
      %v641 = vsel %vm620, %v639, %v640
      %v642 = vrot.slane %v338, 1
      %v643 = vrot.slane %v386, 1
      %v644 = vsel %vm620, %v642, %v643
      %v645 = vrot.slane %v339, 1
      %v646 = vrot.slane %v387, 1
      %v647 = vsel %vm620, %v645, %v646
      %v648 = vrot.slane %v340, 1
      %v649 = vrot.slane %v388, 1
      %v650 = vsel %vm620, %v648, %v649
      %v651 = vrot.slane %v341, 1
      %v652 = vrot.slane %v389, 1
      %v653 = vsel %vm620, %v651, %v652
      %v654 = vrot.slane %v342, 1
      %v655 = vrot.slane %v390, 1
      %v656 = vsel %vm620, %v654, %v655
      %v657 = vrot.slane %v343, 1
      %v658 = vrot.slane %v391, 1
      %v659 = vsel %vm620, %v657, %v658
      %v660 = vrot.slane %v344, 1
      %v661 = vrot.slane %v392, 1
      %v662 = vsel %vm620, %v660, %v661
      %v663 = vrot.slane %v345, 1
      %v664 = vrot.slane %v393, 1
      %v665 = vsel %vm620, %v663, %v664
      %v666 = vrot.slane %v346, 1
      %v667 = vrot.slane %v394, 1
      %v668 = vsel %vm620, %v666, %v667
      %669 = vrot.lane.b32.xlu0 %v623, 8
      %v670 = vpop.permute.xlu0 %669
      %671 = vrot.lane.b32.xlu0 %v626, 8
      %v672 = vpop.permute.xlu0 %671
      %673 = vrot.lane.b32.xlu0 %v629, 8
      %v674 = vpop.permute.xlu0 %673
      %675 = vrot.lane.b32.xlu0 %v632, 8
      %v676 = vpop.permute.xlu0 %675
      %677 = vrot.lane.b32.xlu0 %v635, 8
      %v678 = vpop.permute.xlu0 %677
      %679 = vrot.lane.b32.xlu0 %v638, 8
      %v680 = vpop.permute.xlu0 %679
      %681 = vrot.lane.b32.xlu0 %v641, 8
      %v682 = vpop.permute.xlu0 %681
      %683 = vrot.lane.b32.xlu0 %v644, 8
      %v684 = vpop.permute.xlu0 %683
      %685 = vrot.lane.b32.xlu0 %v647, 8
      %v686 = vpop.permute.xlu0 %685
      %687 = vrot.lane.b32.xlu0 %v650, 8
      %v688 = vpop.permute.xlu0 %687
      %689 = vrot.lane.b32.xlu0 %v653, 8
      %v690 = vpop.permute.xlu0 %689
      %691 = vrot.lane.b32.xlu0 %v656, 8
      %v692 = vpop.permute.xlu0 %691
      %693 = vrot.lane.b32.xlu0 %v659, 8
      %v694 = vpop.permute.xlu0 %693
      %695 = vrot.lane.b32.xlu0 %v662, 8
      %v696 = vpop.permute.xlu0 %695
      %697 = vrot.lane.b32.xlu0 %v665, 8
      %v698 = vpop.permute.xlu0 %697
      %699 = vrot.lane.b32.xlu0 %v668, 8
      %v700 = vpop.permute.xlu0 %699
      %vm701 = vcmask 31744
      %v703 = vsel %vm701, %v331, %v589
      %v705 = vsel %vm701, %v332, %v591
      %v707 = vsel %vm701, %v333, %v593
      %v709 = vsel %vm701, %v334, %v595
      %v711 = vsel %vm701, %v335, %v597
      %v713 = vsel %vm701, %v336, %v599
      %v715 = vsel %vm701, %v337, %v601
      %v717 = vsel %vm701, %v338, %v603
      %v719 = vsel %vm701, %v339, %v605
      %v721 = vsel %vm701, %v340, %v607
      %v723 = vsel %vm701, %v341, %v609
      %v725 = vsel %vm701, %v342, %v611
      %v727 = vsel %vm701, %v343, %v613
      %v729 = vsel %vm701, %v344, %v615
      %v731 = vsel %vm701, %v345, %v617
      %v733 = vsel %vm701, %v346, %v619
      %vm734 = vcmask 64512
      %v736 = vsel %vm734, %v703, %v670
      %v738 = vsel %vm734, %v705, %v672
      %v740 = vsel %vm734, %v707, %v674
      %v742 = vsel %vm734, %v709, %v676
      %v744 = vsel %vm734, %v711, %v678
      %v746 = vsel %vm734, %v713, %v680
      %v748 = vsel %vm734, %v715, %v682
      %v750 = vsel %vm734, %v717, %v684
      %v752 = vsel %vm734, %v719, %v686
      %v754 = vsel %vm734, %v721, %v688
      %v756 = vsel %vm734, %v723, %v690
      %v758 = vsel %vm734, %v725, %v692
      %v760 = vsel %vm734, %v727, %v694
      %v762 = vsel %vm734, %v729, %v696
      %v764 = vsel %vm734, %v731, %v698
      %v766 = vsel %vm734, %v733, %v700
      %v767 = vld [vmem:[%s2] sm:$0xf]
      %v768 = vld [vmem:[%s2 + $0x4] sm:$0x3]
      %v771 = vunpack.c.l.b16 %v767
      %v772 = vunpack.c.l.b16 %v768
      %v773 = vpack.c.b16 %v772, %v771
      %vm774 = vcmask 97280
      %v775 = vsel %vm774, %v736, 0
      %v777 = vsel %vm774, %v738, 0
      %v779 = vsel %vm774, %v740, 0
      %v781 = vsel %vm774, %v742, 0
      %v783 = vsel %vm774, %v744, 0
      %v785 = vsel %vm774, %v746, 0
      %v787 = vsel %vm774, %v748, 0
      %v789 = vsel %vm774, %v750, 0
      %v791 = vsel %vm774, %v752, 0
      %v793 = vsel %vm774, %v754, 0
      %v795 = vsel %vm774, %v756, 0
      %v797 = vsel %vm774, %v758, 0
      %v799 = vsel %vm774, %v760, 0
      %v801 = vsel %vm774, %v762, 0
      %v803 = vsel %vm774, %v764, 0
      %v805 = vsel %vm774, %v766, 0
      %vm807 = vcmask 1045504
      %v809 = vsel %vm807, %v773, 0
      %811 = vmatprep.subr.bf16.mxu0 0
      %812 = vmatpush1.bf16.msra.mxu0 %v809
      %813 = vmatprep.subr.bf16.mxu0 0
      %814 = vmatpush1.bf16.msra.mxu0 0
      %815 = vmatprep.subr.bf16.mxu0 0
      %816 = vmatpush1.bf16.msra.mxu0 0
      %817 = vmatprep.subr.bf16.mxu0 0
      %818 = vmatpush1.bf16.msra.mxu0 0
      %819 = vmatprep.subr.bf16.mxu0 0
      %820 = vmatpush1.bf16.msra.mxu0 0
      %821 = vmatprep.subr.bf16.mxu0 0
      %822 = vmatpush1.bf16.msra.mxu0 0
      %823 = vmatprep.subr.bf16.mxu0 0
      %824 = vmatpush1.bf16.msra.mxu0 0
      %825 = vmatprep.subr.bf16.mxu0 0
      %826 = vmatpush1.bf16.msra.mxu0 0
      %827 = vmatprep.subr.bf16.mxu0 0
      %828 = vmatpush1.bf16.msra.mxu0 0
      %829 = vmatprep.subr.bf16.mxu0 0
      %830 = vmatpush1.bf16.msra.mxu0 0
      %831 = vmatprep.subr.bf16.mxu0 0
      %832 = vmatpush1.bf16.msra.mxu0 0
      %833 = vmatprep.subr.bf16.mxu0 0
      %834 = vmatpush1.bf16.msra.mxu0 0
      %835 = vmatprep.subr.bf16.mxu0 0
      %836 = vmatpush1.bf16.msra.mxu0 0
      %837 = vmatprep.subr.bf16.mxu0 0
      %838 = vmatpush1.bf16.msra.mxu0 0
      %839 = vmatprep.subr.bf16.mxu0 0
      %840 = vmatpush1.bf16.msra.mxu0 0
      %841 = vmatprep.subr.bf16.mxu0 0
      %842 = vmatpush1.bf16.msra.mxu0 0
      %843 = vmatprep.mubr.bf16.mxu0 0
      %844 = vmatmul.mubr.bf16.gmra.mrb[0].mxu0 %v775
      %v845 = vpop.f32.mrb[0].mxu0
      %v846 = vadd.f32 0.0, %v845
      %v847 = vpop.f32.mrb[0].mxu0
      %v848 = vpop.f32.mrb[0].mxu0
      %v849 = vadd.f32 0.0, %v848
      %v850 = vpop.f32.mrb[0].mxu0
      %851 = vmatprep.mubr.bf16.mxu0 0
      %852 = vmatmul.mubr.bf16.gmra.mrb[0].mxu0 %v777
      %v853 = vpop.f32.mrb[0].mxu0
      %v854 = vadd.f32 0.0, %v853
      %v855 = vpop.f32.mrb[0].mxu0
      %v856 = vpop.f32.mrb[0].mxu0
      %v857 = vadd.f32 0.0, %v856
      %v858 = vpop.f32.mrb[0].mxu0
      %859 = vmatprep.mubr.bf16.mxu0 0
      %860 = vmatmul.mubr.bf16.gmra.mrb[0].mxu0 %v779
      %v861 = vpop.f32.mrb[0].mxu0
      %v862 = vadd.f32 0.0, %v861
      %v863 = vpop.f32.mrb[0].mxu0
      %v864 = vpop.f32.mrb[0].mxu0
      %v865 = vadd.f32 0.0, %v864
      %v866 = vpop.f32.mrb[0].mxu0
      %867 = vmatprep.mubr.bf16.mxu0 0
      %868 = vmatmul.mubr.bf16.gmra.mrb[0].mxu0 %v781
      %v869 = vpop.f32.mrb[0].mxu0
      %v870 = vadd.f32 0.0, %v869
      %v871 = vpop.f32.mrb[0].mxu0
      %v872 = vpop.f32.mrb[0].mxu0
      %v873 = vadd.f32 0.0, %v872
      %v874 = vpop.f32.mrb[0].mxu0
      %875 = vmatprep.mubr.bf16.mxu0 0
      %876 = vmatmul.mubr.bf16.gmra.mrb[0].mxu0 %v783
      %v877 = vpop.f32.mrb[0].mxu0
      %v878 = vadd.f32 0.0, %v877
      %v879 = vpop.f32.mrb[0].mxu0
      %v880 = vpop.f32.mrb[0].mxu0
      %v881 = vadd.f32 0.0, %v880
      %v882 = vpop.f32.mrb[0].mxu0
      %883 = vmatprep.mubr.bf16.mxu0 0
      %884 = vmatmul.mubr.bf16.gmra.mrb[0].mxu0 %v785
      %v885 = vpop.f32.mrb[0].mxu0
      %v886 = vadd.f32 0.0, %v885
      %v887 = vpop.f32.mrb[0].mxu0
      %v888 = vpop.f32.mrb[0].mxu0
      %v889 = vadd.f32 0.0, %v888
      %v890 = vpop.f32.mrb[0].mxu0
      %891 = vmatprep.mubr.bf16.mxu0 0
      %892 = vmatmul.mubr.bf16.gmra.mrb[0].mxu0 %v787
      %v893 = vpop.f32.mrb[0].mxu0
      %v894 = vadd.f32 0.0, %v893
      %v895 = vpop.f32.mrb[0].mxu0
      %v896 = vpop.f32.mrb[0].mxu0
      %v897 = vadd.f32 0.0, %v896
      %v898 = vpop.f32.mrb[0].mxu0
      %899 = vmatprep.mubr.bf16.mxu0 0
      %900 = vmatmul.mubr.bf16.gmra.mrb[0].mxu0 %v789
      %v901 = vpop.f32.mrb[0].mxu0
      %v902 = vadd.f32 0.0, %v901
      %v903 = vpop.f32.mrb[0].mxu0
      %v904 = vpop.f32.mrb[0].mxu0
      %v905 = vadd.f32 0.0, %v904
      %v906 = vpop.f32.mrb[0].mxu0
      %907 = vmatprep.mubr.bf16.mxu0 0
      %908 = vmatmul.mubr.bf16.gmra.mrb[0].mxu0 %v791
      %v909 = vpop.f32.mrb[0].mxu0
      %v910 = vadd.f32 0.0, %v909
      %v911 = vpop.f32.mrb[0].mxu0
      %v912 = vpop.f32.mrb[0].mxu0
      %v913 = vadd.f32 0.0, %v912
      %v914 = vpop.f32.mrb[0].mxu0
      %915 = vmatprep.mubr.bf16.mxu0 0
      %916 = vmatmul.mubr.bf16.gmra.mrb[0].mxu0 %v793
      %v917 = vpop.f32.mrb[0].mxu0
      %v918 = vadd.f32 0.0, %v917
      %v919 = vpop.f32.mrb[0].mxu0
      %v920 = vpop.f32.mrb[0].mxu0
      %v921 = vadd.f32 0.0, %v920
      %v922 = vpop.f32.mrb[0].mxu0
      %923 = vmatprep.mubr.bf16.mxu0 0
      %924 = vmatmul.mubr.bf16.gmra.mrb[0].mxu0 %v795
      %v925 = vpop.f32.mrb[0].mxu0
      %v926 = vadd.f32 0.0, %v925
      %v927 = vpop.f32.mrb[0].mxu0
      %v928 = vpop.f32.mrb[0].mxu0
      %v929 = vadd.f32 0.0, %v928
      %v930 = vpop.f32.mrb[0].mxu0
      %931 = vmatprep.mubr.bf16.mxu0 0
      %932 = vmatmul.mubr.bf16.gmra.mrb[0].mxu0 %v797
      %v933 = vpop.f32.mrb[0].mxu0
      %v934 = vadd.f32 0.0, %v933
      %v935 = vpop.f32.mrb[0].mxu0
      %v936 = vpop.f32.mrb[0].mxu0
      %v937 = vadd.f32 0.0, %v936
      %v938 = vpop.f32.mrb[0].mxu0
      %939 = vmatprep.mubr.bf16.mxu0 0
      %940 = vmatmul.mubr.bf16.gmra.mrb[0].mxu0 %v799
      %v941 = vpop.f32.mrb[0].mxu0
      %v942 = vadd.f32 0.0, %v941
      %v943 = vpop.f32.mrb[0].mxu0
      %v944 = vpop.f32.mrb[0].mxu0
      %v945 = vadd.f32 0.0, %v944
      %v946 = vpop.f32.mrb[0].mxu0
      %947 = vmatprep.mubr.bf16.mxu0 0
      %948 = vmatmul.mubr.bf16.gmra.mrb[0].mxu0 %v801
      %v949 = vpop.f32.mrb[0].mxu0
      %v950 = vadd.f32 0.0, %v949
      %v951 = vpop.f32.mrb[0].mxu0
      %v952 = vpop.f32.mrb[0].mxu0
      %v953 = vadd.f32 0.0, %v952
      %v954 = vpop.f32.mrb[0].mxu0
      %955 = vmatprep.mubr.bf16.mxu0 0
      %956 = vmatmul.mubr.bf16.gmra.mrb[0].mxu0 %v803
      %v957 = vpop.f32.mrb[0].mxu0
      %v958 = vadd.f32 0.0, %v957
      %v959 = vpop.f32.mrb[0].mxu0
      %v960 = vpop.f32.mrb[0].mxu0
      %v961 = vadd.f32 0.0, %v960
      %v962 = vpop.f32.mrb[0].mxu0
      %963 = vmatprep.mubr.bf16.mxu0 0
      %964 = vmatmul.mubr.bf16.gmra.mrb[0].mxu0 %v805
      %v965 = vpop.f32.mrb[0].mxu0
      %v966 = vadd.f32 0.0, %v965
      %v967 = vpop.f32.mrb[0].mxu0
      %v968 = vpop.f32.mrb[0].mxu0
      %v969 = vadd.f32 0.0, %v968
      %v970 = vpop.f32.mrb[0].mxu0
      %971 = vdwg.mxu0
      %972 = vst.msk [vmem:[#allocation2] sm:$0xff] %vm701, %v846
      %973 = vst.msk [vmem:[#allocation2 + $0x8] sm:$0xff] %vm701, %v849
      %974 = vst.msk [vmem:[#allocation2 + $0x10] sm:$0xff] %vm701, %v854
      %975 = vst.msk [vmem:[#allocation2 + $0x18] sm:$0xff] %vm701, %v857
      %976 = vst.msk [vmem:[#allocation2 + $0x20] sm:$0xff] %vm701, %v862
      %977 = vst.msk [vmem:[#allocation2 + $0x28] sm:$0xff] %vm701, %v865
      %978 = vst.msk [vmem:[#allocation2 + $0x30] sm:$0xff] %vm701, %v870
      %979 = vst.msk [vmem:[#allocation2 + $0x38] sm:$0xff] %vm701, %v873
      %980 = vst.msk [vmem:[#allocation2 + $0x40] sm:$0xff] %vm701, %v878
      %981 = vst.msk [vmem:[#allocation2 + $0x48] sm:$0xff] %vm701, %v881
      %982 = vst.msk [vmem:[#allocation2 + $0x50] sm:$0xff] %vm701, %v886
      %983 = vst.msk [vmem:[#allocation2 + $0x58] sm:$0xff] %vm701, %v889
      %984 = vst.msk [vmem:[#allocation2 + $0x60] sm:$0xff] %vm701, %v894
      %985 = vst.msk [vmem:[#allocation2 + $0x68] sm:$0xff] %vm701, %v897
      %986 = vst.msk [vmem:[#allocation2 + $0x70] sm:$0xff] %vm701, %v902
      %987 = vst.msk [vmem:[#allocation2 + $0x78] sm:$0xff] %vm701, %v905
      %988 = vst.msk [vmem:[#allocation2 + $0x80] sm:$0xff] %vm701, %v910
      %989 = vst.msk [vmem:[#allocation2 + $0x88] sm:$0xff] %vm701, %v913
      %990 = vst.msk [vmem:[#allocation2 + $0x90] sm:$0xff] %vm701, %v918
      %991 = vst.msk [vmem:[#allocation2 + $0x98] sm:$0xff] %vm701, %v921
      %992 = vst.msk [vmem:[#allocation2 + $0xa0] sm:$0xff] %vm701, %v926
      %993 = vst.msk [vmem:[#allocation2 + $0xa8] sm:$0xff] %vm701, %v929
      %994 = vst.msk [vmem:[#allocation2 + $0xb0] sm:$0xff] %vm701, %v934
      %995 = vst.msk [vmem:[#allocation2 + $0xb8] sm:$0xff] %vm701, %v937
      %996 = vst.msk [vmem:[#allocation2 + $0xc0] sm:$0xff] %vm701, %v942
      %997 = vst.msk [vmem:[#allocation2 + $0xc8] sm:$0xff] %vm701, %v945
      %998 = vst.msk [vmem:[#allocation2 + $0xd0] sm:$0xff] %vm701, %v950
      %999 = vst.msk [vmem:[#allocation2 + $0xd8] sm:$0xff] %vm701, %v953
      %1000 = vst.msk [vmem:[#allocation2 + $0xe0] sm:$0xff] %vm701, %v958
      %1001 = vst.msk [vmem:[#allocation2 + $0xe8] sm:$0xff] %vm701, %v961
      %1002 = vst.msk [vmem:[#allocation2 + $0xf0] sm:$0xff] %vm701, %v966
      %1003 = vst.msk [vmem:[#allocation2 + $0xf8] sm:$0xff] %vm701, %v969
      %s1004 = scalar_lea.vmem %s212, 12
      %v1005 = vld [vmem:[%s1004] sm:$0xf]
      %v1006 = vld [vmem:[%s1004 + $0x4] sm:$0xf]
      %v1007 = vld [vmem:[%s1004 + $0x8] sm:$0xf]
      %v1008 = vld [vmem:[%s1004 + $0xc] sm:$0xf]
      %v1009 = vld [vmem:[%s1004 + $0x10] sm:$0xf]
      %v1010 = vld [vmem:[%s1004 + $0x14] sm:$0xf]
      %v1011 = vld [vmem:[%s1004 + $0x18] sm:$0xf]
      %v1012 = vld [vmem:[%s1004 + $0x1c] sm:$0xf]
      %v1013 = vld [vmem:[%s1004 + $0x20] sm:$0xf]
      %v1014 = vld [vmem:[%s1004 + $0x24] sm:$0xf]
      %v1015 = vld [vmem:[%s1004 + $0x28] sm:$0xf]
      %v1016 = vld [vmem:[%s1004 + $0x2c] sm:$0xf]
      %v1017 = vld [vmem:[%s1004 + $0x30] sm:$0xf]
      %v1018 = vld [vmem:[%s1004 + $0x34] sm:$0xf]
      %v1019 = vld [vmem:[%s1004 + $0x38] sm:$0xf]
      %v1020 = vld [vmem:[%s1004 + $0x3c] sm:$0xf]
      %v1021 = vld [vmem:[%s1004 + $0x40] sm:$0xf]
      %v1022 = vld [vmem:[%s1004 + $0x44] sm:$0xf]
      %v1023 = vld [vmem:[%s1004 + $0x48] sm:$0xf]
      %v1024 = vld [vmem:[%s1004 + $0x4c] sm:$0xf]
      %v1025 = vld [vmem:[%s1004 + $0x50] sm:$0xf]
      %v1026 = vld [vmem:[%s1004 + $0x54] sm:$0xf]
      %v1027 = vld [vmem:[%s1004 + $0x58] sm:$0xf]
      %v1028 = vld [vmem:[%s1004 + $0x5c] sm:$0xf]
      %v1029 = vld [vmem:[%s1004 + $0x60] sm:$0xf]
      %v1030 = vld [vmem:[%s1004 + $0x64] sm:$0xf]
      %v1031 = vld [vmem:[%s1004 + $0x68] sm:$0xf]
      %v1032 = vld [vmem:[%s1004 + $0x6c] sm:$0xf]
      %v1033 = vld [vmem:[%s1004 + $0x70] sm:$0xf]
      %v1034 = vld [vmem:[%s1004 + $0x74] sm:$0xf]
      %v1035 = vld [vmem:[%s1004 + $0x78] sm:$0xf]
      %v1036 = vld [vmem:[%s1004 + $0x7c] sm:$0xf]
      %v1037 = vld [vmem:[%s1004 + $0x80] sm:$0xf]
      %v1038 = vld [vmem:[%s1004 + $0x84] sm:$0xf]
      %v1039 = vld [vmem:[%s1004 + $0x88] sm:$0xf]
      %v1040 = vld [vmem:[%s1004 + $0x8c] sm:$0xf]
      %v1041 = vld [vmem:[%s1004 + $0x90] sm:$0xf]
      %v1042 = vld [vmem:[%s1004 + $0x94] sm:$0xf]
      %v1043 = vld [vmem:[%s1004 + $0x98] sm:$0xf]
      %v1044 = vld [vmem:[%s1004 + $0x9c] sm:$0xf]
      %v1045 = vld [vmem:[%s1004 + $0xa0] sm:$0xf]
      %v1046 = vld [vmem:[%s1004 + $0xa4] sm:$0xf]
      %v1047 = vld [vmem:[%s1004 + $0xa8] sm:$0xf]
      %v1048 = vld [vmem:[%s1004 + $0xac] sm:$0xf]
      %v1049 = vld [vmem:[%s1004 + $0xb0] sm:$0xf]
      %v1050 = vld [vmem:[%s1004 + $0xb4] sm:$0xf]
      %v1051 = vld [vmem:[%s1004 + $0xb8] sm:$0xf]
      %v1052 = vld [vmem:[%s1004 + $0xbc] sm:$0xf]
      %v1085 = vunpack.c.l.b16 %v1005
      %v1086 = vunpack.c.l.b16 %v1006
      %v1087 = vunpack.c.l.b16 %v1008
      %v1088 = vunpack.c.l.b16 %v1009
      %v1089 = vunpack.c.l.b16 %v1011
      %v1090 = vunpack.c.l.b16 %v1012
      %v1091 = vunpack.c.l.b16 %v1014
      %v1092 = vunpack.c.l.b16 %v1015
      %v1093 = vunpack.c.l.b16 %v1017
      %v1094 = vunpack.c.l.b16 %v1018
      %v1095 = vunpack.c.l.b16 %v1020
      %v1096 = vunpack.c.l.b16 %v1021
      %v1097 = vunpack.c.l.b16 %v1023
      %v1098 = vunpack.c.l.b16 %v1024
      %v1099 = vunpack.c.l.b16 %v1026
      %v1100 = vunpack.c.l.b16 %v1027
      %v1101 = vunpack.c.l.b16 %v1029
      %v1102 = vunpack.c.l.b16 %v1030
      %v1103 = vunpack.c.l.b16 %v1032
      %v1104 = vunpack.c.l.b16 %v1033
      %v1105 = vunpack.c.l.b16 %v1035
      %v1106 = vunpack.c.l.b16 %v1036
      %v1107 = vunpack.c.l.b16 %v1038
      %v1108 = vunpack.c.l.b16 %v1039
      %v1109 = vunpack.c.l.b16 %v1041
      %v1110 = vunpack.c.l.b16 %v1042
      %v1111 = vunpack.c.l.b16 %v1044
      %v1112 = vunpack.c.l.b16 %v1045
      %v1113 = vunpack.c.l.b16 %v1047
      %v1114 = vunpack.c.l.b16 %v1048
      %v1115 = vunpack.c.l.b16 %v1050
      %v1116 = vunpack.c.l.b16 %v1051
      %v1117 = vpack.c.b16 %v1086, %v1085
      %v1118 = vpack.c.b16 %v1088, %v1087
      %v1119 = vpack.c.b16 %v1090, %v1089
      %v1120 = vpack.c.b16 %v1092, %v1091
      %v1121 = vpack.c.b16 %v1094, %v1093
      %v1122 = vpack.c.b16 %v1096, %v1095
      %v1123 = vpack.c.b16 %v1098, %v1097
      %v1124 = vpack.c.b16 %v1100, %v1099
      %v1125 = vpack.c.b16 %v1102, %v1101
      %v1126 = vpack.c.b16 %v1104, %v1103
      %v1127 = vpack.c.b16 %v1106, %v1105
      %v1128 = vpack.c.b16 %v1108, %v1107
      %v1129 = vpack.c.b16 %v1110, %v1109
      %v1130 = vpack.c.b16 %v1112, %v1111
      %v1131 = vpack.c.b16 %v1114, %v1113
      %v1132 = vpack.c.b16 %v1116, %v1115
      %v1149 = vunpack.c.l.b16 %v1007
      %v1150 = vunpack.c.l.b16 %v1010
      %v1151 = vunpack.c.l.b16 %v1013
      %v1152 = vunpack.c.l.b16 %v1016
      %v1153 = vunpack.c.l.b16 %v1019
      %v1154 = vunpack.c.l.b16 %v1022
      %v1155 = vunpack.c.l.b16 %v1025
      %v1156 = vunpack.c.l.b16 %v1028
      %v1157 = vunpack.c.l.b16 %v1031
      %v1158 = vunpack.c.l.b16 %v1034
      %v1159 = vunpack.c.l.b16 %v1037
      %v1160 = vunpack.c.l.b16 %v1040
      %v1161 = vunpack.c.l.b16 %v1043
      %v1162 = vunpack.c.l.b16 %v1046
      %v1163 = vunpack.c.l.b16 %v1049
      %v1164 = vunpack.c.l.b16 %v1052
      %v1165 = vpack.c.b16 %v1149, %v1149
      %v1166 = vpack.c.b16 %v1150, %v1150
      %v1167 = vpack.c.b16 %v1151, %v1151
      %v1168 = vpack.c.b16 %v1152, %v1152
      %v1169 = vpack.c.b16 %v1153, %v1153
      %v1170 = vpack.c.b16 %v1154, %v1154
      %v1171 = vpack.c.b16 %v1155, %v1155
      %v1172 = vpack.c.b16 %v1156, %v1156
      %v1173 = vpack.c.b16 %v1157, %v1157
      %v1174 = vpack.c.b16 %v1158, %v1158
      %v1175 = vpack.c.b16 %v1159, %v1159
      %v1176 = vpack.c.b16 %v1160, %v1160
      %v1177 = vpack.c.b16 %v1161, %v1161
      %v1178 = vpack.c.b16 %v1162, %v1162
      %v1179 = vpack.c.b16 %v1163, %v1163
      %v1180 = vpack.c.b16 %v1164, %v1164
      %v1182 = vshrl.u32 %v1117, 16
      %v1184 = vshll.u32 %v1117, 16
      %v1186 = vrot.slane %v1184, 1
      %v1187 = vor.u32 %v1182, %v1186
      %v1189 = vshll.u32 %v1165, 16
      %v1191 = vrot.slane %v1189, 1
      %v1192 = vsel %vm395, %v1187, %v1191
      %v1194 = vshrl.u32 %v1118, 16
      %v1196 = vshll.u32 %v1118, 16
      %v1198 = vrot.slane %v1196, 1
      %v1199 = vor.u32 %v1194, %v1198
      %v1201 = vshll.u32 %v1166, 16
      %v1203 = vrot.slane %v1201, 1
      %v1204 = vsel %vm395, %v1199, %v1203
      %v1206 = vshrl.u32 %v1119, 16
      %v1208 = vshll.u32 %v1119, 16
      %v1210 = vrot.slane %v1208, 1
      %v1211 = vor.u32 %v1206, %v1210
      %v1213 = vshll.u32 %v1167, 16
      %v1215 = vrot.slane %v1213, 1
      %v1216 = vsel %vm395, %v1211, %v1215
      %v1218 = vshrl.u32 %v1120, 16
      %v1220 = vshll.u32 %v1120, 16
      %v1222 = vrot.slane %v1220, 1
      %v1223 = vor.u32 %v1218, %v1222
      %v1225 = vshll.u32 %v1168, 16
      %v1227 = vrot.slane %v1225, 1
      %v1228 = vsel %vm395, %v1223, %v1227
      %v1230 = vshrl.u32 %v1121, 16
      %v1232 = vshll.u32 %v1121, 16
      %v1234 = vrot.slane %v1232, 1
      %v1235 = vor.u32 %v1230, %v1234
      %v1237 = vshll.u32 %v1169, 16
      %v1239 = vrot.slane %v1237, 1
      %v1240 = vsel %vm395, %v1235, %v1239
      %v1242 = vshrl.u32 %v1122, 16
      %v1244 = vshll.u32 %v1122, 16
      %v1246 = vrot.slane %v1244, 1
      %v1247 = vor.u32 %v1242, %v1246
      %v1249 = vshll.u32 %v1170, 16
      %v1251 = vrot.slane %v1249, 1
      %v1252 = vsel %vm395, %v1247, %v1251
      %v1254 = vshrl.u32 %v1123, 16
      %v1256 = vshll.u32 %v1123, 16
      %v1258 = vrot.slane %v1256, 1
      %v1259 = vor.u32 %v1254, %v1258
      %v1261 = vshll.u32 %v1171, 16
      %v1263 = vrot.slane %v1261, 1
      %v1264 = vsel %vm395, %v1259, %v1263
      %v1266 = vshrl.u32 %v1124, 16
      %v1268 = vshll.u32 %v1124, 16
      %v1270 = vrot.slane %v1268, 1
      %v1271 = vor.u32 %v1266, %v1270
      %v1273 = vshll.u32 %v1172, 16
      %v1275 = vrot.slane %v1273, 1
      %v1276 = vsel %vm395, %v1271, %v1275
      %v1278 = vshrl.u32 %v1125, 16
      %v1280 = vshll.u32 %v1125, 16
      %v1282 = vrot.slane %v1280, 1
      %v1283 = vor.u32 %v1278, %v1282
      %v1285 = vshll.u32 %v1173, 16
      %v1287 = vrot.slane %v1285, 1
      %v1288 = vsel %vm395, %v1283, %v1287
      %v1290 = vshrl.u32 %v1126, 16
      %v1292 = vshll.u32 %v1126, 16
      %v1294 = vrot.slane %v1292, 1
      %v1295 = vor.u32 %v1290, %v1294
      %v1297 = vshll.u32 %v1174, 16
      %v1299 = vrot.slane %v1297, 1
      %v1300 = vsel %vm395, %v1295, %v1299
      %v1302 = vshrl.u32 %v1127, 16
      %v1304 = vshll.u32 %v1127, 16
      %v1306 = vrot.slane %v1304, 1
      %v1307 = vor.u32 %v1302, %v1306
      %v1309 = vshll.u32 %v1175, 16
      %v1311 = vrot.slane %v1309, 1
      %v1312 = vsel %vm395, %v1307, %v1311
      %v1314 = vshrl.u32 %v1128, 16
      %v1316 = vshll.u32 %v1128, 16
      %v1318 = vrot.slane %v1316, 1
      %v1319 = vor.u32 %v1314, %v1318
      %v1321 = vshll.u32 %v1176, 16
      %v1323 = vrot.slane %v1321, 1
      %v1324 = vsel %vm395, %v1319, %v1323
      %v1326 = vshrl.u32 %v1129, 16
      %v1328 = vshll.u32 %v1129, 16
      %v1330 = vrot.slane %v1328, 1
      %v1331 = vor.u32 %v1326, %v1330
      %v1333 = vshll.u32 %v1177, 16
      %v1335 = vrot.slane %v1333, 1
      %v1336 = vsel %vm395, %v1331, %v1335
      %v1338 = vshrl.u32 %v1130, 16
      %v1340 = vshll.u32 %v1130, 16
      %v1342 = vrot.slane %v1340, 1
      %v1343 = vor.u32 %v1338, %v1342
      %v1345 = vshll.u32 %v1178, 16
      %v1347 = vrot.slane %v1345, 1
      %v1348 = vsel %vm395, %v1343, %v1347
      %v1350 = vshrl.u32 %v1131, 16
      %v1352 = vshll.u32 %v1131, 16
      %v1354 = vrot.slane %v1352, 1
      %v1355 = vor.u32 %v1350, %v1354
      %v1357 = vshll.u32 %v1179, 16
      %v1359 = vrot.slane %v1357, 1
      %v1360 = vsel %vm395, %v1355, %v1359
      %v1362 = vshrl.u32 %v1132, 16
      %v1364 = vshll.u32 %v1132, 16
      %v1366 = vrot.slane %v1364, 1
      %v1367 = vor.u32 %v1362, %v1366
      %v1369 = vshll.u32 %v1180, 16
      %v1371 = vrot.slane %v1369, 1
      %v1372 = vsel %vm395, %v1367, %v1371
      %1373 = vrot.lane.b32.xlu0 %v1192, 4
      %v1374 = vpop.permute.xlu0 %1373
      %1375 = vrot.lane.b32.xlu0 %v1204, 4
      %v1376 = vpop.permute.xlu0 %1375
      %1377 = vrot.lane.b32.xlu0 %v1216, 4
      %v1378 = vpop.permute.xlu0 %1377
      %1379 = vrot.lane.b32.xlu0 %v1228, 4
      %v1380 = vpop.permute.xlu0 %1379
      %1381 = vrot.lane.b32.xlu0 %v1240, 4
      %v1382 = vpop.permute.xlu0 %1381
      %1383 = vrot.lane.b32.xlu0 %v1252, 4
      %v1384 = vpop.permute.xlu0 %1383
      %1385 = vrot.lane.b32.xlu0 %v1264, 4
      %v1386 = vpop.permute.xlu0 %1385
      %1387 = vrot.lane.b32.xlu0 %v1276, 4
      %v1388 = vpop.permute.xlu0 %1387
      %1389 = vrot.lane.b32.xlu0 %v1288, 4
      %v1390 = vpop.permute.xlu0 %1389
      %1391 = vrot.lane.b32.xlu0 %v1300, 4
      %v1392 = vpop.permute.xlu0 %1391
      %1393 = vrot.lane.b32.xlu0 %v1312, 4
      %v1394 = vpop.permute.xlu0 %1393
      %1395 = vrot.lane.b32.xlu0 %v1324, 4
      %v1396 = vpop.permute.xlu0 %1395
      %1397 = vrot.lane.b32.xlu0 %v1336, 4
      %v1398 = vpop.permute.xlu0 %1397
      %1399 = vrot.lane.b32.xlu0 %v1348, 4
      %v1400 = vpop.permute.xlu0 %1399
      %1401 = vrot.lane.b32.xlu0 %v1360, 4
      %v1402 = vpop.permute.xlu0 %1401
      %1403 = vrot.lane.b32.xlu0 %v1372, 4
      %v1404 = vpop.permute.xlu0 %1403
      %v1405 = vrot.slane %v1117, 1
      %v1406 = vrot.slane %v1165, 1
      %v1407 = vsel %vm620, %v1405, %v1406
      %v1408 = vrot.slane %v1118, 1
      %v1409 = vrot.slane %v1166, 1
      %v1410 = vsel %vm620, %v1408, %v1409
      %v1411 = vrot.slane %v1119, 1
      %v1412 = vrot.slane %v1167, 1
      %v1413 = vsel %vm620, %v1411, %v1412
      %v1414 = vrot.slane %v1120, 1
      %v1415 = vrot.slane %v1168, 1
      %v1416 = vsel %vm620, %v1414, %v1415
      %v1417 = vrot.slane %v1121, 1
      %v1418 = vrot.slane %v1169, 1
      %v1419 = vsel %vm620, %v1417, %v1418
      %v1420 = vrot.slane %v1122, 1
      %v1421 = vrot.slane %v1170, 1
      %v1422 = vsel %vm620, %v1420, %v1421
      %v1423 = vrot.slane %v1123, 1
      %v1424 = vrot.slane %v1171, 1
      %v1425 = vsel %vm620, %v1423, %v1424
      %v1426 = vrot.slane %v1124, 1
      %v1427 = vrot.slane %v1172, 1
      %v1428 = vsel %vm620, %v1426, %v1427
      %v1429 = vrot.slane %v1125, 1
      %v1430 = vrot.slane %v1173, 1
      %v1431 = vsel %vm620, %v1429, %v1430
      %v1432 = vrot.slane %v1126, 1
      %v1433 = vrot.slane %v1174, 1
      %v1434 = vsel %vm620, %v1432, %v1433
      %v1435 = vrot.slane %v1127, 1
      %v1436 = vrot.slane %v1175, 1
      %v1437 = vsel %vm620, %v1435, %v1436
      %v1438 = vrot.slane %v1128, 1
      %v1439 = vrot.slane %v1176, 1
      %v1440 = vsel %vm620, %v1438, %v1439
      %v1441 = vrot.slane %v1129, 1
      %v1442 = vrot.slane %v1177, 1
      %v1443 = vsel %vm620, %v1441, %v1442
      %v1444 = vrot.slane %v1130, 1
      %v1445 = vrot.slane %v1178, 1
      %v1446 = vsel %vm620, %v1444, %v1445
      %v1447 = vrot.slane %v1131, 1
      %v1448 = vrot.slane %v1179, 1
      %v1449 = vsel %vm620, %v1447, %v1448
      %v1450 = vrot.slane %v1132, 1
      %v1451 = vrot.slane %v1180, 1
      %v1452 = vsel %vm620, %v1450, %v1451
      %1453 = vrot.lane.b32.xlu0 %v1407, 8
      %v1454 = vpop.permute.xlu0 %1453
      %1455 = vrot.lane.b32.xlu0 %v1410, 8
      %v1456 = vpop.permute.xlu0 %1455
      %1457 = vrot.lane.b32.xlu0 %v1413, 8
      %v1458 = vpop.permute.xlu0 %1457
      %1459 = vrot.lane.b32.xlu0 %v1416, 8
      %v1460 = vpop.permute.xlu0 %1459
      %1461 = vrot.lane.b32.xlu0 %v1419, 8
      %v1462 = vpop.permute.xlu0 %1461
      %1463 = vrot.lane.b32.xlu0 %v1422, 8
      %v1464 = vpop.permute.xlu0 %1463
      %1465 = vrot.lane.b32.xlu0 %v1425, 8
      %v1466 = vpop.permute.xlu0 %1465
      %1467 = vrot.lane.b32.xlu0 %v1428, 8
      %v1468 = vpop.permute.xlu0 %1467
      %1469 = vrot.lane.b32.xlu0 %v1431, 8
      %v1470 = vpop.permute.xlu0 %1469
      %1471 = vrot.lane.b32.xlu0 %v1434, 8
      %v1472 = vpop.permute.xlu0 %1471
      %1473 = vrot.lane.b32.xlu0 %v1437, 8
      %v1474 = vpop.permute.xlu0 %1473
      %1475 = vrot.lane.b32.xlu0 %v1440, 8
      %v1476 = vpop.permute.xlu0 %1475
      %1477 = vrot.lane.b32.xlu0 %v1443, 8
      %v1478 = vpop.permute.xlu0 %1477
      %1479 = vrot.lane.b32.xlu0 %v1446, 8
      %v1480 = vpop.permute.xlu0 %1479
      %1481 = vrot.lane.b32.xlu0 %v1449, 8
      %v1482 = vpop.permute.xlu0 %1481
      %1483 = vrot.lane.b32.xlu0 %v1452, 8
      %v1484 = vpop.permute.xlu0 %1483
      %v1486 = vsel %vm701, %v1117, %v1374
      %v1488 = vsel %vm701, %v1118, %v1376
      %v1490 = vsel %vm701, %v1119, %v1378
      %v1492 = vsel %vm701, %v1120, %v1380
      %v1494 = vsel %vm701, %v1121, %v1382
      %v1496 = vsel %vm701, %v1122, %v1384
      %v1498 = vsel %vm701, %v1123, %v1386
      %v1500 = vsel %vm701, %v1124, %v1388
      %v1502 = vsel %vm701, %v1125, %v1390
      %v1504 = vsel %vm701, %v1126, %v1392
      %v1506 = vsel %vm701, %v1127, %v1394
      %v1508 = vsel %vm701, %v1128, %v1396
      %v1510 = vsel %vm701, %v1129, %v1398
      %v1512 = vsel %vm701, %v1130, %v1400
      %v1514 = vsel %vm701, %v1131, %v1402
      %v1516 = vsel %vm701, %v1132, %v1404
      %v1518 = vsel %vm734, %v1486, %v1454
      %v1520 = vsel %vm734, %v1488, %v1456
      %v1522 = vsel %vm734, %v1490, %v1458
      %v1524 = vsel %vm734, %v1492, %v1460
      %v1526 = vsel %vm734, %v1494, %v1462
      %v1528 = vsel %vm734, %v1496, %v1464
      %v1530 = vsel %vm734, %v1498, %v1466
      %v1532 = vsel %vm734, %v1500, %v1468
      %v1534 = vsel %vm734, %v1502, %v1470
      %v1536 = vsel %vm734, %v1504, %v1472
      %v1538 = vsel %vm734, %v1506, %v1474
      %v1540 = vsel %vm734, %v1508, %v1476
      %v1542 = vsel %vm734, %v1510, %v1478
      %v1544 = vsel %vm734, %v1512, %v1480
      %v1546 = vsel %vm734, %v1514, %v1482
      %v1548 = vsel %vm734, %v1516, %v1484
      %s1549 = scalar_lea.vmem %s2, 8
      %v1550 = vld [vmem:[%s1549] sm:$0xf]
      %v1551 = vld [vmem:[%s1549 + $0x4] sm:$0x3]
      %v1554 = vunpack.c.l.b16 %v1550
      %v1555 = vunpack.c.l.b16 %v1551
      %v1556 = vpack.c.b16 %v1555, %v1554
      %v1557 = vsel %vm774, %v1518, 0
      %v1559 = vsel %vm774, %v1520, 0
      %v1561 = vsel %vm774, %v1522, 0
      %v1563 = vsel %vm774, %v1524, 0
      %v1565 = vsel %vm774, %v1526, 0
      %v1567 = vsel %vm774, %v1528, 0
      %v1569 = vsel %vm774, %v1530, 0
      %v1571 = vsel %vm774, %v1532, 0
      %v1573 = vsel %vm774, %v1534, 0
      %v1575 = vsel %vm774, %v1536, 0
      %v1577 = vsel %vm774, %v1538, 0
      %v1579 = vsel %vm774, %v1540, 0
      %v1581 = vsel %vm774, %v1542, 0
      %v1583 = vsel %vm774, %v1544, 0
      %v1585 = vsel %vm774, %v1546, 0
      %v1587 = vsel %vm774, %v1548, 0
      %v1590 = vsel %vm807, %v1556, 0
      %1592 = vmatprep.subr.bf16.mxu0 0
      %1593 = vmatpush1.bf16.msra.mxu0 %v1590
      %1594 = vmatprep.subr.bf16.mxu0 0
      %1595 = vmatpush1.bf16.msra.mxu0 0
      %1596 = vmatprep.subr.bf16.mxu0 0
      %1597 = vmatpush1.bf16.msra.mxu0 0
      %1598 = vmatprep.subr.bf16.mxu0 0
      %1599 = vmatpush1.bf16.msra.mxu0 0
      %1600 = vmatprep.subr.bf16.mxu0 0
      %1601 = vmatpush1.bf16.msra.mxu0 0
      %1602 = vmatprep.subr.bf16.mxu0 0
      %1603 = vmatpush1.bf16.msra.mxu0 0
      %1604 = vmatprep.subr.bf16.mxu0 0
      %1605 = vmatpush1.bf16.msra.mxu0 0
      %1606 = vmatprep.subr.bf16.mxu0 0
      %1607 = vmatpush1.bf16.msra.mxu0 0
      %1608 = vmatprep.subr.bf16.mxu0 0
      %1609 = vmatpush1.bf16.msra.mxu0 0
      %1610 = vmatprep.subr.bf16.mxu0 0
      %1611 = vmatpush1.bf16.msra.mxu0 0
      %1612 = vmatprep.subr.bf16.mxu0 0
      %1613 = vmatpush1.bf16.msra.mxu0 0
      %1614 = vmatprep.subr.bf16.mxu0 0
      %1615 = vmatpush1.bf16.msra.mxu0 0
      %1616 = vmatprep.subr.bf16.mxu0 0
      %1617 = vmatpush1.bf16.msra.mxu0 0
      %1618 = vmatprep.subr.bf16.mxu0 0
      %1619 = vmatpush1.bf16.msra.mxu0 0
      %1620 = vmatprep.subr.bf16.mxu0 0
      %1621 = vmatpush1.bf16.msra.mxu0 0
      %1622 = vmatprep.subr.bf16.mxu0 0
      %1623 = vmatpush1.bf16.msra.mxu0 0
      %1624 = vmatprep.mubr.bf16.mxu0 0
      %1625 = vmatmul.mubr.bf16.gmra.mrb[0].mxu0 %v1557
      %v1626 = vpop.f32.mrb[0].mxu0
      %v1627 = vadd.f32 0.0, %v1626
      %v1628 = vpop.f32.mrb[0].mxu0
      %v1629 = vpop.f32.mrb[0].mxu0
      %v1630 = vadd.f32 0.0, %v1629
      %v1631 = vpop.f32.mrb[0].mxu0
      %1632 = vmatprep.mubr.bf16.mxu0 0
      %1633 = vmatmul.mubr.bf16.gmra.mrb[0].mxu0 %v1559
      %v1634 = vpop.f32.mrb[0].mxu0
      %v1635 = vadd.f32 0.0, %v1634
      %v1636 = vpop.f32.mrb[0].mxu0
      %v1637 = vpop.f32.mrb[0].mxu0
      %v1638 = vadd.f32 0.0, %v1637
      %v1639 = vpop.f32.mrb[0].mxu0
      %1640 = vmatprep.mubr.bf16.mxu0 0
      %1641 = vmatmul.mubr.bf16.gmra.mrb[0].mxu0 %v1561
      %v1642 = vpop.f32.mrb[0].mxu0
      %v1643 = vadd.f32 0.0, %v1642
      %v1644 = vpop.f32.mrb[0].mxu0
      %v1645 = vpop.f32.mrb[0].mxu0
      %v1646 = vadd.f32 0.0, %v1645
      %v1647 = vpop.f32.mrb[0].mxu0
      %1648 = vmatprep.mubr.bf16.mxu0 0
      %1649 = vmatmul.mubr.bf16.gmra.mrb[0].mxu0 %v1563
      %v1650 = vpop.f32.mrb[0].mxu0
      %v1651 = vadd.f32 0.0, %v1650
      %v1652 = vpop.f32.mrb[0].mxu0
      %v1653 = vpop.f32.mrb[0].mxu0
      %v1654 = vadd.f32 0.0, %v1653
      %v1655 = vpop.f32.mrb[0].mxu0
      %1656 = vmatprep.mubr.bf16.mxu0 0
      %1657 = vmatmul.mubr.bf16.gmra.mrb[0].mxu0 %v1565
      %v1658 = vpop.f32.mrb[0].mxu0
      %v1659 = vadd.f32 0.0, %v1658
      %v1660 = vpop.f32.mrb[0].mxu0
      %v1661 = vpop.f32.mrb[0].mxu0
      %v1662 = vadd.f32 0.0, %v1661
      %v1663 = vpop.f32.mrb[0].mxu0
      %1664 = vmatprep.mubr.bf16.mxu0 0
      %1665 = vmatmul.mubr.bf16.gmra.mrb[0].mxu0 %v1567
      %v1666 = vpop.f32.mrb[0].mxu0
      %v1667 = vadd.f32 0.0, %v1666
      %v1668 = vpop.f32.mrb[0].mxu0
      %v1669 = vpop.f32.mrb[0].mxu0
      %v1670 = vadd.f32 0.0, %v1669
      %v1671 = vpop.f32.mrb[0].mxu0
      %1672 = vmatprep.mubr.bf16.mxu0 0
      %1673 = vmatmul.mubr.bf16.gmra.mrb[0].mxu0 %v1569
      %v1674 = vpop.f32.mrb[0].mxu0
      %v1675 = vadd.f32 0.0, %v1674
      %v1676 = vpop.f32.mrb[0].mxu0
      %v1677 = vpop.f32.mrb[0].mxu0
      %v1678 = vadd.f32 0.0, %v1677
      %v1679 = vpop.f32.mrb[0].mxu0
      %1680 = vmatprep.mubr.bf16.mxu0 0
      %1681 = vmatmul.mubr.bf16.gmra.mrb[0].mxu0 %v1571
      %v1682 = vpop.f32.mrb[0].mxu0
      %v1683 = vadd.f32 0.0, %v1682
      %v1684 = vpop.f32.mrb[0].mxu0
      %v1685 = vpop.f32.mrb[0].mxu0
      %v1686 = vadd.f32 0.0, %v1685
      %v1687 = vpop.f32.mrb[0].mxu0
      %1688 = vmatprep.mubr.bf16.mxu0 0
      %1689 = vmatmul.mubr.bf16.gmra.mrb[0].mxu0 %v1573
      %v1690 = vpop.f32.mrb[0].mxu0
      %v1691 = vadd.f32 0.0, %v1690
      %v1692 = vpop.f32.mrb[0].mxu0
      %v1693 = vpop.f32.mrb[0].mxu0
      %v1694 = vadd.f32 0.0, %v1693
      %v1695 = vpop.f32.mrb[0].mxu0
      %1696 = vmatprep.mubr.bf16.mxu0 0
      %1697 = vmatmul.mubr.bf16.gmra.mrb[0].mxu0 %v1575
      %v1698 = vpop.f32.mrb[0].mxu0
      %v1699 = vadd.f32 0.0, %v1698
      %v1700 = vpop.f32.mrb[0].mxu0
      %v1701 = vpop.f32.mrb[0].mxu0
      %v1702 = vadd.f32 0.0, %v1701
      %v1703 = vpop.f32.mrb[0].mxu0
      %1704 = vmatprep.mubr.bf16.mxu0 0
      %1705 = vmatmul.mubr.bf16.gmra.mrb[0].mxu0 %v1577
      %v1706 = vpop.f32.mrb[0].mxu0
      %v1707 = vadd.f32 0.0, %v1706
      %v1708 = vpop.f32.mrb[0].mxu0
      %v1709 = vpop.f32.mrb[0].mxu0
      %v1710 = vadd.f32 0.0, %v1709
      %v1711 = vpop.f32.mrb[0].mxu0
      %1712 = vmatprep.mubr.bf16.mxu0 0
      %1713 = vmatmul.mubr.bf16.gmra.mrb[0].mxu0 %v1579
      %v1714 = vpop.f32.mrb[0].mxu0
      %v1715 = vadd.f32 0.0, %v1714
      %v1716 = vpop.f32.mrb[0].mxu0
      %v1717 = vpop.f32.mrb[0].mxu0
      %v1718 = vadd.f32 0.0, %v1717
      %v1719 = vpop.f32.mrb[0].mxu0
      %1720 = vmatprep.mubr.bf16.mxu0 0
      %1721 = vmatmul.mubr.bf16.gmra.mrb[0].mxu0 %v1581
      %v1722 = vpop.f32.mrb[0].mxu0
      %v1723 = vadd.f32 0.0, %v1722
      %v1724 = vpop.f32.mrb[0].mxu0
      %v1725 = vpop.f32.mrb[0].mxu0
      %v1726 = vadd.f32 0.0, %v1725
      %v1727 = vpop.f32.mrb[0].mxu0
      %1728 = vmatprep.mubr.bf16.mxu0 0
      %1729 = vmatmul.mubr.bf16.gmra.mrb[0].mxu0 %v1583
      %v1730 = vpop.f32.mrb[0].mxu0
      %v1731 = vadd.f32 0.0, %v1730
      %v1732 = vpop.f32.mrb[0].mxu0
      %v1733 = vpop.f32.mrb[0].mxu0
      %v1734 = vadd.f32 0.0, %v1733
      %v1735 = vpop.f32.mrb[0].mxu0
      %1736 = vmatprep.mubr.bf16.mxu0 0
      %1737 = vmatmul.mubr.bf16.gmra.mrb[0].mxu0 %v1585
      %v1738 = vpop.f32.mrb[0].mxu0
      %v1739 = vadd.f32 0.0, %v1738
      %v1740 = vpop.f32.mrb[0].mxu0
      %v1741 = vpop.f32.mrb[0].mxu0
      %v1742 = vadd.f32 0.0, %v1741
      %v1743 = vpop.f32.mrb[0].mxu0
      %1744 = vmatprep.mubr.bf16.mxu0 0
      %1745 = vmatmul.mubr.bf16.gmra.mrb[0].mxu0 %v1587
      %v1746 = vpop.f32.mrb[0].mxu0
      %v1747 = vadd.f32 0.0, %v1746
      %v1748 = vpop.f32.mrb[0].mxu0
      %v1749 = vpop.f32.mrb[0].mxu0
      %v1750 = vadd.f32 0.0, %v1749
      %v1751 = vpop.f32.mrb[0].mxu0
      %1752 = vdwg.mxu0
      %v1753 = vld [vmem:[#allocation2] sm:$0xff]
      %v1754 = vld [vmem:[#allocation2 + $0x8] sm:$0xff]
      %v1755 = vld [vmem:[#allocation2 + $0x10] sm:$0xff]
      %v1756 = vld [vmem:[#allocation2 + $0x18] sm:$0xff]
      %v1757 = vld [vmem:[#allocation2 + $0x20] sm:$0xff]
      %v1758 = vld [vmem:[#allocation2 + $0x28] sm:$0xff]
      %v1759 = vld [vmem:[#allocation2 + $0x30] sm:$0xff]
      %v1760 = vld [vmem:[#allocation2 + $0x38] sm:$0xff]
      %v1761 = vld [vmem:[#allocation2 + $0x40] sm:$0xff]
      %v1762 = vld [vmem:[#allocation2 + $0x48] sm:$0xff]
      %v1763 = vld [vmem:[#allocation2 + $0x50] sm:$0xff]
      %v1764 = vld [vmem:[#allocation2 + $0x58] sm:$0xff]
      %v1765 = vld [vmem:[#allocation2 + $0x60] sm:$0xff]
      %v1766 = vld [vmem:[#allocation2 + $0x68] sm:$0xff]
      %v1767 = vld [vmem:[#allocation2 + $0x70] sm:$0xff]
      %v1768 = vld [vmem:[#allocation2 + $0x78] sm:$0xff]
      %v1769 = vld [vmem:[#allocation2 + $0x80] sm:$0xff]
      %v1770 = vld [vmem:[#allocation2 + $0x88] sm:$0xff]
      %v1771 = vld [vmem:[#allocation2 + $0x90] sm:$0xff]
      %v1772 = vld [vmem:[#allocation2 + $0x98] sm:$0xff]
      %v1773 = vld [vmem:[#allocation2 + $0xa0] sm:$0xff]
      %v1774 = vld [vmem:[#allocation2 + $0xa8] sm:$0xff]
      %v1775 = vld [vmem:[#allocation2 + $0xb0] sm:$0xff]
      %v1776 = vld [vmem:[#allocation2 + $0xb8] sm:$0xff]
      %v1777 = vld [vmem:[#allocation2 + $0xc0] sm:$0xff]
      %v1778 = vld [vmem:[#allocation2 + $0xc8] sm:$0xff]
      %v1779 = vld [vmem:[#allocation2 + $0xd0] sm:$0xff]
      %v1780 = vld [vmem:[#allocation2 + $0xd8] sm:$0xff]
      %v1781 = vld [vmem:[#allocation2 + $0xe0] sm:$0xff]
      %v1782 = vld [vmem:[#allocation2 + $0xe8] sm:$0xff]
      %v1783 = vld [vmem:[#allocation2 + $0xf0] sm:$0xff]
      %v1784 = vld [vmem:[#allocation2 + $0xf8] sm:$0xff]
      %v1785 = vadd.f32 %v1753, %v1627
      %v1786 = vadd.f32 %v1754, %v1630
      %v1787 = vadd.f32 %v1755, %v1635
      %v1788 = vadd.f32 %v1756, %v1638
      %v1789 = vadd.f32 %v1757, %v1643
      %v1790 = vadd.f32 %v1758, %v1646
      %v1791 = vadd.f32 %v1759, %v1651
      %v1792 = vadd.f32 %v1760, %v1654
      %v1793 = vadd.f32 %v1761, %v1659
      %v1794 = vadd.f32 %v1762, %v1662
      %v1795 = vadd.f32 %v1763, %v1667
      %v1796 = vadd.f32 %v1764, %v1670
      %v1797 = vadd.f32 %v1765, %v1675
      %v1798 = vadd.f32 %v1766, %v1678
      %v1799 = vadd.f32 %v1767, %v1683
      %v1800 = vadd.f32 %v1768, %v1686
      %v1801 = vadd.f32 %v1769, %v1691
      %v1802 = vadd.f32 %v1770, %v1694
      %v1803 = vadd.f32 %v1771, %v1699
      %v1804 = vadd.f32 %v1772, %v1702
      %v1805 = vadd.f32 %v1773, %v1707
      %v1806 = vadd.f32 %v1774, %v1710
      %v1807 = vadd.f32 %v1775, %v1715
      %v1808 = vadd.f32 %v1776, %v1718
      %v1809 = vadd.f32 %v1777, %v1723
      %v1810 = vadd.f32 %v1778, %v1726
      %v1811 = vadd.f32 %v1779, %v1731
      %v1812 = vadd.f32 %v1780, %v1734
      %v1813 = vadd.f32 %v1781, %v1739
      %v1814 = vadd.f32 %v1782, %v1742
      %v1815 = vadd.f32 %v1783, %v1747
      %v1816 = vadd.f32 %v1784, %v1750
      %1817 = vst.msk [vmem:[#allocation2] sm:$0xff] %vm701, %v1785
      %1818 = vst.msk [vmem:[#allocation2 + $0x8] sm:$0xff] %vm701, %v1786
      %1819 = vst.msk [vmem:[#allocation2 + $0x10] sm:$0xff] %vm701, %v1787
      %1820 = vst.msk [vmem:[#allocation2 + $0x18] sm:$0xff] %vm701, %v1788
      %1821 = vst.msk [vmem:[#allocation2 + $0x20] sm:$0xff] %vm701, %v1789
      %1822 = vst.msk [vmem:[#allocation2 + $0x28] sm:$0xff] %vm701, %v1790
      %1823 = vst.msk [vmem:[#allocation2 + $0x30] sm:$0xff] %vm701, %v1791
      %1824 = vst.msk [vmem:[#allocation2 + $0x38] sm:$0xff] %vm701, %v1792
      %1825 = vst.msk [vmem:[#allocation2 + $0x40] sm:$0xff] %vm701, %v1793
      %1826 = vst.msk [vmem:[#allocation2 + $0x48] sm:$0xff] %vm701, %v1794
      %1827 = vst.msk [vmem:[#allocation2 + $0x50] sm:$0xff] %vm701, %v1795
      %1828 = vst.msk [vmem:[#allocation2 + $0x58] sm:$0xff] %vm701, %v1796
      %1829 = vst.msk [vmem:[#allocation2 + $0x60] sm:$0xff] %vm701, %v1797
      %1830 = vst.msk [vmem:[#allocation2 + $0x68] sm:$0xff] %vm701, %v1798
      %1831 = vst.msk [vmem:[#allocation2 + $0x70] sm:$0xff] %vm701, %v1799
      %1832 = vst.msk [vmem:[#allocation2 + $0x78] sm:$0xff] %vm701, %v1800
      %1833 = vst.msk [vmem:[#allocation2 + $0x80] sm:$0xff] %vm701, %v1801
      %1834 = vst.msk [vmem:[#allocation2 + $0x88] sm:$0xff] %vm701, %v1802
      %1835 = vst.msk [vmem:[#allocation2 + $0x90] sm:$0xff] %vm701, %v1803
      %1836 = vst.msk [vmem:[#allocation2 + $0x98] sm:$0xff] %vm701, %v1804
      %1837 = vst.msk [vmem:[#allocation2 + $0xa0] sm:$0xff] %vm701, %v1805
      %1838 = vst.msk [vmem:[#allocation2 + $0xa8] sm:$0xff] %vm701, %v1806
      %1839 = vst.msk [vmem:[#allocation2 + $0xb0] sm:$0xff] %vm701, %v1807
      %1840 = vst.msk [vmem:[#allocation2 + $0xb8] sm:$0xff] %vm701, %v1808
      %1841 = vst.msk [vmem:[#allocation2 + $0xc0] sm:$0xff] %vm701, %v1809
      %1842 = vst.msk [vmem:[#allocation2 + $0xc8] sm:$0xff] %vm701, %v1810
      %1843 = vst.msk [vmem:[#allocation2 + $0xd0] sm:$0xff] %vm701, %v1811
      %1844 = vst.msk [vmem:[#allocation2 + $0xd8] sm:$0xff] %vm701, %v1812
      %1845 = vst.msk [vmem:[#allocation2 + $0xe0] sm:$0xff] %vm701, %v1813
      %1846 = vst.msk [vmem:[#allocation2 + $0xe8] sm:$0xff] %vm701, %v1814
      %1847 = vst.msk [vmem:[#allocation2 + $0xf0] sm:$0xff] %vm701, %v1815
      %1848 = vst.msk [vmem:[#allocation2 + $0xf8] sm:$0xff] %vm701, %v1816
      %s1849 = scalar_lea.vmem %s212, 24
      %v1850 = vld [vmem:[%s1849] sm:$0xf]
      %v1851 = vld [vmem:[%s1849 + $0x4] sm:$0xf]
      %v1852 = vld [vmem:[%s1849 + $0x8] sm:$0xf]
      %v1853 = vld [vmem:[%s1849 + $0xc] sm:$0xf]
      %v1854 = vld [vmem:[%s1849 + $0x10] sm:$0xf]
      %v1855 = vld [vmem:[%s1849 + $0x14] sm:$0xf]
      %v1856 = vld [vmem:[%s1849 + $0x18] sm:$0xf]
      %v1857 = vld [vmem:[%s1849 + $0x1c] sm:$0xf]
      %v1858 = vld [vmem:[%s1849 + $0x20] sm:$0xf]
      %v1859 = vld [vmem:[%s1849 + $0x24] sm:$0xf]
      %v1860 = vld [vmem:[%s1849 + $0x28] sm:$0xf]
      %v1861 = vld [vmem:[%s1849 + $0x2c] sm:$0xf]
      %v1862 = vld [vmem:[%s1849 + $0x30] sm:$0xf]
      %v1863 = vld [vmem:[%s1849 + $0x34] sm:$0xf]
      %v1864 = vld [vmem:[%s1849 + $0x38] sm:$0xf]
      %v1865 = vld [vmem:[%s1849 + $0x3c] sm:$0xf]
      %v1866 = vld [vmem:[%s1849 + $0x40] sm:$0xf]
      %v1867 = vld [vmem:[%s1849 + $0x44] sm:$0xf]
      %v1868 = vld [vmem:[%s1849 + $0x48] sm:$0xf]
      %v1869 = vld [vmem:[%s1849 + $0x4c] sm:$0xf]
      %v1870 = vld [vmem:[%s1849 + $0x50] sm:$0xf]
      %v1871 = vld [vmem:[%s1849 + $0x54] sm:$0xf]
      %v1872 = vld [vmem:[%s1849 + $0x58] sm:$0xf]
      %v1873 = vld [vmem:[%s1849 + $0x5c] sm:$0xf]
      %v1874 = vld [vmem:[%s1849 + $0x60] sm:$0xf]
      %v1875 = vld [vmem:[%s1849 + $0x64] sm:$0xf]
      %v1876 = vld [vmem:[%s1849 + $0x68] sm:$0xf]
      %v1877 = vld [vmem:[%s1849 + $0x6c] sm:$0xf]
      %v1878 = vld [vmem:[%s1849 + $0x70] sm:$0xf]
      %v1879 = vld [vmem:[%s1849 + $0x74] sm:$0xf]
      %v1880 = vld [vmem:[%s1849 + $0x78] sm:$0xf]
      %v1881 = vld [vmem:[%s1849 + $0x7c] sm:$0xf]
      %v1882 = vld [vmem:[%s1849 + $0x80] sm:$0xf]
      %v1883 = vld [vmem:[%s1849 + $0x84] sm:$0xf]
      %v1884 = vld [vmem:[%s1849 + $0x88] sm:$0xf]
      %v1885 = vld [vmem:[%s1849 + $0x8c] sm:$0xf]
      %v1886 = vld [vmem:[%s1849 + $0x90] sm:$0xf]
      %v1887 = vld [vmem:[%s1849 + $0x94] sm:$0xf]
      %v1888 = vld [vmem:[%s1849 + $0x98] sm:$0xf]
      %v1889 = vld [vmem:[%s1849 + $0x9c] sm:$0xf]
      %v1890 = vld [vmem:[%s1849 + $0xa0] sm:$0xf]
      %v1891 = vld [vmem:[%s1849 + $0xa4] sm:$0xf]
      %v1892 = vld [vmem:[%s1849 + $0xa8] sm:$0xf]
      %v1893 = vld [vmem:[%s1849 + $0xac] sm:$0xf]
      %v1894 = vld [vmem:[%s1849 + $0xb0] sm:$0xf]
      %v1895 = vld [vmem:[%s1849 + $0xb4] sm:$0xf]
      %v1896 = vld [vmem:[%s1849 + $0xb8] sm:$0xf]
      %v1897 = vld [vmem:[%s1849 + $0xbc] sm:$0xf]
      %v1930 = vunpack.c.l.b16 %v1850
      %v1931 = vunpack.c.l.b16 %v1851
      %v1932 = vunpack.c.l.b16 %v1853
      %v1933 = vunpack.c.l.b16 %v1854
      %v1934 = vunpack.c.l.b16 %v1856
      %v1935 = vunpack.c.l.b16 %v1857
      %v1936 = vunpack.c.l.b16 %v1859
      %v1937 = vunpack.c.l.b16 %v1860
      %v1938 = vunpack.c.l.b16 %v1862
      %v1939 = vunpack.c.l.b16 %v1863
      %v1940 = vunpack.c.l.b16 %v1865
      %v1941 = vunpack.c.l.b16 %v1866
      %v1942 = vunpack.c.l.b16 %v1868
      %v1943 = vunpack.c.l.b16 %v1869
      %v1944 = vunpack.c.l.b16 %v1871
      %v1945 = vunpack.c.l.b16 %v1872
      %v1946 = vunpack.c.l.b16 %v1874
      %v1947 = vunpack.c.l.b16 %v1875
      %v1948 = vunpack.c.l.b16 %v1877
      %v1949 = vunpack.c.l.b16 %v1878
      %v1950 = vunpack.c.l.b16 %v1880
      %v1951 = vunpack.c.l.b16 %v1881
      %v1952 = vunpack.c.l.b16 %v1883
      %v1953 = vunpack.c.l.b16 %v1884
      %v1954 = vunpack.c.l.b16 %v1886
      %v1955 = vunpack.c.l.b16 %v1887
      %v1956 = vunpack.c.l.b16 %v1889
      %v1957 = vunpack.c.l.b16 %v1890
      %v1958 = vunpack.c.l.b16 %v1892
      %v1959 = vunpack.c.l.b16 %v1893
      %v1960 = vunpack.c.l.b16 %v1895
      %v1961 = vunpack.c.l.b16 %v1896
      %v1962 = vpack.c.b16 %v1931, %v1930
      %v1963 = vpack.c.b16 %v1933, %v1932
      %v1964 = vpack.c.b16 %v1935, %v1934
      %v1965 = vpack.c.b16 %v1937, %v1936
      %v1966 = vpack.c.b16 %v1939, %v1938
      %v1967 = vpack.c.b16 %v1941, %v1940
      %v1968 = vpack.c.b16 %v1943, %v1942
      %v1969 = vpack.c.b16 %v1945, %v1944
      %v1970 = vpack.c.b16 %v1947, %v1946
      %v1971 = vpack.c.b16 %v1949, %v1948
      %v1972 = vpack.c.b16 %v1951, %v1950
      %v1973 = vpack.c.b16 %v1953, %v1952
      %v1974 = vpack.c.b16 %v1955, %v1954
      %v1975 = vpack.c.b16 %v1957, %v1956
      %v1976 = vpack.c.b16 %v1959, %v1958
      %v1977 = vpack.c.b16 %v1961, %v1960
      %v1994 = vunpack.c.l.b16 %v1852
      %v1995 = vunpack.c.l.b16 %v1855
      %v1996 = vunpack.c.l.b16 %v1858
      %v1997 = vunpack.c.l.b16 %v1861
      %v1998 = vunpack.c.l.b16 %v1864
      %v1999 = vunpack.c.l.b16 %v1867
      %v2000 = vunpack.c.l.b16 %v1870
      %v2001 = vunpack.c.l.b16 %v1873
      %v2002 = vunpack.c.l.b16 %v1876
      %v2003 = vunpack.c.l.b16 %v1879
      %v2004 = vunpack.c.l.b16 %v1882
      %v2005 = vunpack.c.l.b16 %v1885
      %v2006 = vunpack.c.l.b16 %v1888
      %v2007 = vunpack.c.l.b16 %v1891
      %v2008 = vunpack.c.l.b16 %v1894
      %v2009 = vunpack.c.l.b16 %v1897
      %v2010 = vpack.c.b16 %v1994, %v1994
      %v2011 = vpack.c.b16 %v1995, %v1995
      %v2012 = vpack.c.b16 %v1996, %v1996
      %v2013 = vpack.c.b16 %v1997, %v1997
      %v2014 = vpack.c.b16 %v1998, %v1998
      %v2015 = vpack.c.b16 %v1999, %v1999
      %v2016 = vpack.c.b16 %v2000, %v2000
      %v2017 = vpack.c.b16 %v2001, %v2001
      %v2018 = vpack.c.b16 %v2002, %v2002
      %v2019 = vpack.c.b16 %v2003, %v2003
      %v2020 = vpack.c.b16 %v2004, %v2004
      %v2021 = vpack.c.b16 %v2005, %v2005
      %v2022 = vpack.c.b16 %v2006, %v2006
      %v2023 = vpack.c.b16 %v2007, %v2007
      %v2024 = vpack.c.b16 %v2008, %v2008
      %v2025 = vpack.c.b16 %v2009, %v2009
      %v2027 = vshrl.u32 %v1962, 16
      %v2029 = vshll.u32 %v1962, 16
      %v2031 = vrot.slane %v2029, 1
      %v2032 = vor.u32 %v2027, %v2031
      %v2034 = vshll.u32 %v2010, 16
      %v2036 = vrot.slane %v2034, 1
      %v2037 = vsel %vm395, %v2032, %v2036
      %v2039 = vshrl.u32 %v1963, 16
      %v2041 = vshll.u32 %v1963, 16
      %v2043 = vrot.slane %v2041, 1
      %v2044 = vor.u32 %v2039, %v2043
      %v2046 = vshll.u32 %v2011, 16
      %v2048 = vrot.slane %v2046, 1
      %v2049 = vsel %vm395, %v2044, %v2048
      %v2051 = vshrl.u32 %v1964, 16
      %v2053 = vshll.u32 %v1964, 16
      %v2055 = vrot.slane %v2053, 1
      %v2056 = vor.u32 %v2051, %v2055
      %v2058 = vshll.u32 %v2012, 16
      %v2060 = vrot.slane %v2058, 1
      %v2061 = vsel %vm395, %v2056, %v2060
      %v2063 = vshrl.u32 %v1965, 16
      %v2065 = vshll.u32 %v1965, 16
      %v2067 = vrot.slane %v2065, 1
      %v2068 = vor.u32 %v2063, %v2067
      %v2070 = vshll.u32 %v2013, 16
      %v2072 = vrot.slane %v2070, 1
      %v2073 = vsel %vm395, %v2068, %v2072
      %v2075 = vshrl.u32 %v1966, 16
      %v2077 = vshll.u32 %v1966, 16
      %v2079 = vrot.slane %v2077, 1
      %v2080 = vor.u32 %v2075, %v2079
      %v2082 = vshll.u32 %v2014, 16
      %v2084 = vrot.slane %v2082, 1
      %v2085 = vsel %vm395, %v2080, %v2084
      %v2087 = vshrl.u32 %v1967, 16
      %v2089 = vshll.u32 %v1967, 16
      %v2091 = vrot.slane %v2089, 1
      %v2092 = vor.u32 %v2087, %v2091
      %v2094 = vshll.u32 %v2015, 16
      %v2096 = vrot.slane %v2094, 1
      %v2097 = vsel %vm395, %v2092, %v2096
      %v2099 = vshrl.u32 %v1968, 16
      %v2101 = vshll.u32 %v1968, 16
      %v2103 = vrot.slane %v2101, 1
      %v2104 = vor.u32 %v2099, %v2103
      %v2106 = vshll.u32 %v2016, 16
      %v2108 = vrot.slane %v2106, 1
      %v2109 = vsel %vm395, %v2104, %v2108
      %v2111 = vshrl.u32 %v1969, 16
      %v2113 = vshll.u32 %v1969, 16
      %v2115 = vrot.slane %v2113, 1
      %v2116 = vor.u32 %v2111, %v2115
      %v2118 = vshll.u32 %v2017, 16
      %v2120 = vrot.slane %v2118, 1
      %v2121 = vsel %vm395, %v2116, %v2120
      %v2123 = vshrl.u32 %v1970, 16
      %v2125 = vshll.u32 %v1970, 16
      %v2127 = vrot.slane %v2125, 1
      %v2128 = vor.u32 %v2123, %v2127
      %v2130 = vshll.u32 %v2018, 16
      %v2132 = vrot.slane %v2130, 1
      %v2133 = vsel %vm395, %v2128, %v2132
      %v2135 = vshrl.u32 %v1971, 16
      %v2137 = vshll.u32 %v1971, 16
      %v2139 = vrot.slane %v2137, 1
      %v2140 = vor.u32 %v2135, %v2139
      %v2142 = vshll.u32 %v2019, 16
      %v2144 = vrot.slane %v2142, 1
      %v2145 = vsel %vm395, %v2140, %v2144
      %v2147 = vshrl.u32 %v1972, 16
      %v2149 = vshll.u32 %v1972, 16
      %v2151 = vrot.slane %v2149, 1
      %v2152 = vor.u32 %v2147, %v2151
      %v2154 = vshll.u32 %v2020, 16
      %v2156 = vrot.slane %v2154, 1
      %v2157 = vsel %vm395, %v2152, %v2156
      %v2159 = vshrl.u32 %v1973, 16
      %v2161 = vshll.u32 %v1973, 16
      %v2163 = vrot.slane %v2161, 1
      %v2164 = vor.u32 %v2159, %v2163
      %v2166 = vshll.u32 %v2021, 16
      %v2168 = vrot.slane %v2166, 1
      %v2169 = vsel %vm395, %v2164, %v2168
      %v2171 = vshrl.u32 %v1974, 16
      %v2173 = vshll.u32 %v1974, 16
      %v2175 = vrot.slane %v2173, 1
      %v2176 = vor.u32 %v2171, %v2175
      %v2178 = vshll.u32 %v2022, 16
      %v2180 = vrot.slane %v2178, 1
      %v2181 = vsel %vm395, %v2176, %v2180
      %v2183 = vshrl.u32 %v1975, 16
      %v2185 = vshll.u32 %v1975, 16
      %v2187 = vrot.slane %v2185, 1
      %v2188 = vor.u32 %v2183, %v2187
      %v2190 = vshll.u32 %v2023, 16
      %v2192 = vrot.slane %v2190, 1
      %v2193 = vsel %vm395, %v2188, %v2192
      %v2195 = vshrl.u32 %v1976, 16
      %v2197 = vshll.u32 %v1976, 16
      %v2199 = vrot.slane %v2197, 1
      %v2200 = vor.u32 %v2195, %v2199
      %v2202 = vshll.u32 %v2024, 16
      %v2204 = vrot.slane %v2202, 1
      %v2205 = vsel %vm395, %v2200, %v2204
      %v2207 = vshrl.u32 %v1977, 16
      %v2209 = vshll.u32 %v1977, 16
      %v2211 = vrot.slane %v2209, 1
      %v2212 = vor.u32 %v2207, %v2211
      %v2214 = vshll.u32 %v2025, 16
      %v2216 = vrot.slane %v2214, 1
      %v2217 = vsel %vm395, %v2212, %v2216
      %2218 = vrot.lane.b32.xlu0 %v2037, 4
      %v2219 = vpop.permute.xlu0 %2218
      %2220 = vrot.lane.b32.xlu0 %v2049, 4
      %v2221 = vpop.permute.xlu0 %2220
      %2222 = vrot.lane.b32.xlu0 %v2061, 4
      %v2223 = vpop.permute.xlu0 %2222
      %2224 = vrot.lane.b32.xlu0 %v2073, 4
      %v2225 = vpop.permute.xlu0 %2224
      %2226 = vrot.lane.b32.xlu0 %v2085, 4
      %v2227 = vpop.permute.xlu0 %2226
      %2228 = vrot.lane.b32.xlu0 %v2097, 4
      %v2229 = vpop.permute.xlu0 %2228
      %2230 = vrot.lane.b32.xlu0 %v2109, 4
      %v2231 = vpop.permute.xlu0 %2230
      %2232 = vrot.lane.b32.xlu0 %v2121, 4
      %v2233 = vpop.permute.xlu0 %2232
      %2234 = vrot.lane.b32.xlu0 %v2133, 4
      %v2235 = vpop.permute.xlu0 %2234
      %2236 = vrot.lane.b32.xlu0 %v2145, 4
      %v2237 = vpop.permute.xlu0 %2236
      %2238 = vrot.lane.b32.xlu0 %v2157, 4
      %v2239 = vpop.permute.xlu0 %2238
      %2240 = vrot.lane.b32.xlu0 %v2169, 4
      %v2241 = vpop.permute.xlu0 %2240
      %2242 = vrot.lane.b32.xlu0 %v2181, 4
      %v2243 = vpop.permute.xlu0 %2242
      %2244 = vrot.lane.b32.xlu0 %v2193, 4
      %v2245 = vpop.permute.xlu0 %2244
      %2246 = vrot.lane.b32.xlu0 %v2205, 4
      %v2247 = vpop.permute.xlu0 %2246
      %2248 = vrot.lane.b32.xlu0 %v2217, 4
      %v2249 = vpop.permute.xlu0 %2248
      %v2250 = vrot.slane %v1962, 1
      %v2251 = vrot.slane %v2010, 1
      %v2252 = vsel %vm620, %v2250, %v2251
      %v2253 = vrot.slane %v1963, 1
      %v2254 = vrot.slane %v2011, 1
      %v2255 = vsel %vm620, %v2253, %v2254
      %v2256 = vrot.slane %v1964, 1
      %v2257 = vrot.slane %v2012, 1
      %v2258 = vsel %vm620, %v2256, %v2257
      %v2259 = vrot.slane %v1965, 1
      %v2260 = vrot.slane %v2013, 1
      %v2261 = vsel %vm620, %v2259, %v2260
      %v2262 = vrot.slane %v1966, 1
      %v2263 = vrot.slane %v2014, 1
      %v2264 = vsel %vm620, %v2262, %v2263
      %v2265 = vrot.slane %v1967, 1
      %v2266 = vrot.slane %v2015, 1
      %v2267 = vsel %vm620, %v2265, %v2266
      %v2268 = vrot.slane %v1968, 1
      %v2269 = vrot.slane %v2016, 1
      %v2270 = vsel %vm620, %v2268, %v2269
      %v2271 = vrot.slane %v1969, 1
      %v2272 = vrot.slane %v2017, 1
      %v2273 = vsel %vm620, %v2271, %v2272
      %v2274 = vrot.slane %v1970, 1
      %v2275 = vrot.slane %v2018, 1
      %v2276 = vsel %vm620, %v2274, %v2275
      %v2277 = vrot.slane %v1971, 1
      %v2278 = vrot.slane %v2019, 1
      %v2279 = vsel %vm620, %v2277, %v2278
      %v2280 = vrot.slane %v1972, 1
      %v2281 = vrot.slane %v2020, 1
      %v2282 = vsel %vm620, %v2280, %v2281
      %v2283 = vrot.slane %v1973, 1
      %v2284 = vrot.slane %v2021, 1
      %v2285 = vsel %vm620, %v2283, %v2284
      %v2286 = vrot.slane %v1974, 1
      %v2287 = vrot.slane %v2022, 1
      %v2288 = vsel %vm620, %v2286, %v2287
      %v2289 = vrot.slane %v1975, 1
      %v2290 = vrot.slane %v2023, 1
      %v2291 = vsel %vm620, %v2289, %v2290
      %v2292 = vrot.slane %v1976, 1
      %v2293 = vrot.slane %v2024, 1
      %v2294 = vsel %vm620, %v2292, %v2293
      %v2295 = vrot.slane %v1977, 1
      %v2296 = vrot.slane %v2025, 1
      %v2297 = vsel %vm620, %v2295, %v2296
      %2298 = vrot.lane.b32.xlu0 %v2252, 8
      %v2299 = vpop.permute.xlu0 %2298
      %2300 = vrot.lane.b32.xlu0 %v2255, 8
      %v2301 = vpop.permute.xlu0 %2300
      %2302 = vrot.lane.b32.xlu0 %v2258, 8
      %v2303 = vpop.permute.xlu0 %2302
      %2304 = vrot.lane.b32.xlu0 %v2261, 8
      %v2305 = vpop.permute.xlu0 %2304
      %2306 = vrot.lane.b32.xlu0 %v2264, 8
      %v2307 = vpop.permute.xlu0 %2306
      %2308 = vrot.lane.b32.xlu0 %v2267, 8
      %v2309 = vpop.permute.xlu0 %2308
      %2310 = vrot.lane.b32.xlu0 %v2270, 8
      %v2311 = vpop.permute.xlu0 %2310
      %2312 = vrot.lane.b32.xlu0 %v2273, 8
      %v2313 = vpop.permute.xlu0 %2312
      %2314 = vrot.lane.b32.xlu0 %v2276, 8
      %v2315 = vpop.permute.xlu0 %2314
      %2316 = vrot.lane.b32.xlu0 %v2279, 8
      %v2317 = vpop.permute.xlu0 %2316
      %2318 = vrot.lane.b32.xlu0 %v2282, 8
      %v2319 = vpop.permute.xlu0 %2318
      %2320 = vrot.lane.b32.xlu0 %v2285, 8
      %v2321 = vpop.permute.xlu0 %2320
      %2322 = vrot.lane.b32.xlu0 %v2288, 8
      %v2323 = vpop.permute.xlu0 %2322
      %2324 = vrot.lane.b32.xlu0 %v2291, 8
      %v2325 = vpop.permute.xlu0 %2324
      %2326 = vrot.lane.b32.xlu0 %v2294, 8
      %v2327 = vpop.permute.xlu0 %2326
      %2328 = vrot.lane.b32.xlu0 %v2297, 8
      %v2329 = vpop.permute.xlu0 %2328
      %v2331 = vsel %vm701, %v1962, %v2219
      %v2333 = vsel %vm701, %v1963, %v2221
      %v2335 = vsel %vm701, %v1964, %v2223
      %v2337 = vsel %vm701, %v1965, %v2225
      %v2339 = vsel %vm701, %v1966, %v2227
      %v2341 = vsel %vm701, %v1967, %v2229
      %v2343 = vsel %vm701, %v1968, %v2231
      %v2345 = vsel %vm701, %v1969, %v2233
      %v2347 = vsel %vm701, %v1970, %v2235
      %v2349 = vsel %vm701, %v1971, %v2237
      %v2351 = vsel %vm701, %v1972, %v2239
      %v2353 = vsel %vm701, %v1973, %v2241
      %v2355 = vsel %vm701, %v1974, %v2243
      %v2357 = vsel %vm701, %v1975, %v2245
      %v2359 = vsel %vm701, %v1976, %v2247
      %v2361 = vsel %vm701, %v1977, %v2249
      %v2363 = vsel %vm734, %v2331, %v2299
      %v2365 = vsel %vm734, %v2333, %v2301
      %v2367 = vsel %vm734, %v2335, %v2303
      %v2369 = vsel %vm734, %v2337, %v2305
      %v2371 = vsel %vm734, %v2339, %v2307
      %v2373 = vsel %vm734, %v2341, %v2309
      %v2375 = vsel %vm734, %v2343, %v2311
      %v2377 = vsel %vm734, %v2345, %v2313
      %v2379 = vsel %vm734, %v2347, %v2315
      %v2381 = vsel %vm734, %v2349, %v2317
      %v2383 = vsel %vm734, %v2351, %v2319
      %v2385 = vsel %vm734, %v2353, %v2321
      %v2387 = vsel %vm734, %v2355, %v2323
      %v2389 = vsel %vm734, %v2357, %v2325
      %v2391 = vsel %vm734, %v2359, %v2327
      %v2393 = vsel %vm734, %v2361, %v2329
      %s2394 = scalar_lea.vmem %s2, 16
      %v2395 = vld [vmem:[%s2394] sm:$0xf]
      %v2396 = vld [vmem:[%s2394 + $0x4] sm:$0x3]
      %v2399 = vunpack.c.l.b16 %v2395
      %v2400 = vunpack.c.l.b16 %v2396
      %v2401 = vpack.c.b16 %v2400, %v2399
      %v2402 = vsel %vm774, %v2363, 0
      %v2404 = vsel %vm774, %v2365, 0
      %v2406 = vsel %vm774, %v2367, 0
      %v2408 = vsel %vm774, %v2369, 0
      %v2410 = vsel %vm774, %v2371, 0
      %v2412 = vsel %vm774, %v2373, 0
      %v2414 = vsel %vm774, %v2375, 0
      %v2416 = vsel %vm774, %v2377, 0
      %v2418 = vsel %vm774, %v2379, 0
      %v2420 = vsel %vm774, %v2381, 0
      %v2422 = vsel %vm774, %v2383, 0
      %v2424 = vsel %vm774, %v2385, 0
      %v2426 = vsel %vm774, %v2387, 0
      %v2428 = vsel %vm774, %v2389, 0
      %v2430 = vsel %vm774, %v2391, 0
      %v2432 = vsel %vm774, %v2393, 0
      %v2435 = vsel %vm807, %v2401, 0
      %2437 = vmatprep.subr.bf16.mxu0 0
      %2438 = vmatpush1.bf16.msra.mxu0 %v2435
      %2439 = vmatprep.subr.bf16.mxu0 0
      %2440 = vmatpush1.bf16.msra.mxu0 0
      %2441 = vmatprep.subr.bf16.mxu0 0
      %2442 = vmatpush1.bf16.msra.mxu0 0
      %2443 = vmatprep.subr.bf16.mxu0 0
      %2444 = vmatpush1.bf16.msra.mxu0 0
      %2445 = vmatprep.subr.bf16.mxu0 0
      %2446 = vmatpush1.bf16.msra.mxu0 0
      %2447 = vmatprep.subr.bf16.mxu0 0
      %2448 = vmatpush1.bf16.msra.mxu0 0
      %2449 = vmatprep.subr.bf16.mxu0 0
      %2450 = vmatpush1.bf16.msra.mxu0 0
      %2451 = vmatprep.subr.bf16.mxu0 0
      %2452 = vmatpush1.bf16.msra.mxu0 0
      %2453 = vmatprep.subr.bf16.mxu0 0
      %2454 = vmatpush1.bf16.msra.mxu0 0
      %2455 = vmatprep.subr.bf16.mxu0 0
      %2456 = vmatpush1.bf16.msra.mxu0 0
      %2457 = vmatprep.subr.bf16.mxu0 0
      %2458 = vmatpush1.bf16.msra.mxu0 0
      %2459 = vmatprep.subr.bf16.mxu0 0
      %2460 = vmatpush1.bf16.msra.mxu0 0
      %2461 = vmatprep.subr.bf16.mxu0 0
      %2462 = vmatpush1.bf16.msra.mxu0 0
      %2463 = vmatprep.subr.bf16.mxu0 0
      %2464 = vmatpush1.bf16.msra.mxu0 0
      %2465 = vmatprep.subr.bf16.mxu0 0
      %2466 = vmatpush1.bf16.msra.mxu0 0
      %2467 = vmatprep.subr.bf16.mxu0 0
      %2468 = vmatpush1.bf16.msra.mxu0 0
      %2469 = vmatprep.mubr.bf16.mxu0 0
      %2470 = vmatmul.mubr.bf16.gmra.mrb[0].mxu0 %v2402
      %v2471 = vpop.f32.mrb[0].mxu0
      %v2472 = vadd.f32 0.0, %v2471
      %v2473 = vpop.f32.mrb[0].mxu0
      %v2474 = vpop.f32.mrb[0].mxu0
      %v2475 = vadd.f32 0.0, %v2474
      %v2476 = vpop.f32.mrb[0].mxu0
      %2477 = vmatprep.mubr.bf16.mxu0 0
      %2478 = vmatmul.mubr.bf16.gmra.mrb[0].mxu0 %v2404
      %v2479 = vpop.f32.mrb[0].mxu0
      %v2480 = vadd.f32 0.0, %v2479
      %v2481 = vpop.f32.mrb[0].mxu0
      %v2482 = vpop.f32.mrb[0].mxu0
      %v2483 = vadd.f32 0.0, %v2482
      %v2484 = vpop.f32.mrb[0].mxu0
      %2485 = vmatprep.mubr.bf16.mxu0 0
      %2486 = vmatmul.mubr.bf16.gmra.mrb[0].mxu0 %v2406
      %v2487 = vpop.f32.mrb[0].mxu0
      %v2488 = vadd.f32 0.0, %v2487
      %v2489 = vpop.f32.mrb[0].mxu0
      %v2490 = vpop.f32.mrb[0].mxu0
      %v2491 = vadd.f32 0.0, %v2490
      %v2492 = vpop.f32.mrb[0].mxu0
      %2493 = vmatprep.mubr.bf16.mxu0 0
      %2494 = vmatmul.mubr.bf16.gmra.mrb[0].mxu0 %v2408
      %v2495 = vpop.f32.mrb[0].mxu0
      %v2496 = vadd.f32 0.0, %v2495
      %v2497 = vpop.f32.mrb[0].mxu0
      %v2498 = vpop.f32.mrb[0].mxu0
      %v2499 = vadd.f32 0.0, %v2498
      %v2500 = vpop.f32.mrb[0].mxu0
      %2501 = vmatprep.mubr.bf16.mxu0 0
      %2502 = vmatmul.mubr.bf16.gmra.mrb[0].mxu0 %v2410
      %v2503 = vpop.f32.mrb[0].mxu0
      %v2504 = vadd.f32 0.0, %v2503
      %v2505 = vpop.f32.mrb[0].mxu0
      %v2506 = vpop.f32.mrb[0].mxu0
      %v2507 = vadd.f32 0.0, %v2506
      %v2508 = vpop.f32.mrb[0].mxu0
      %2509 = vmatprep.mubr.bf16.mxu0 0
      %2510 = vmatmul.mubr.bf16.gmra.mrb[0].mxu0 %v2412
      %v2511 = vpop.f32.mrb[0].mxu0
      %v2512 = vadd.f32 0.0, %v2511
      %v2513 = vpop.f32.mrb[0].mxu0
      %v2514 = vpop.f32.mrb[0].mxu0
      %v2515 = vadd.f32 0.0, %v2514
      %v2516 = vpop.f32.mrb[0].mxu0
      %2517 = vmatprep.mubr.bf16.mxu0 0
      %2518 = vmatmul.mubr.bf16.gmra.mrb[0].mxu0 %v2414
      %v2519 = vpop.f32.mrb[0].mxu0
      %v2520 = vadd.f32 0.0, %v2519
      %v2521 = vpop.f32.mrb[0].mxu0
      %v2522 = vpop.f32.mrb[0].mxu0
      %v2523 = vadd.f32 0.0, %v2522
      %v2524 = vpop.f32.mrb[0].mxu0
      %2525 = vmatprep.mubr.bf16.mxu0 0
      %2526 = vmatmul.mubr.bf16.gmra.mrb[0].mxu0 %v2416
      %v2527 = vpop.f32.mrb[0].mxu0
      %v2528 = vadd.f32 0.0, %v2527
      %v2529 = vpop.f32.mrb[0].mxu0
      %v2530 = vpop.f32.mrb[0].mxu0
      %v2531 = vadd.f32 0.0, %v2530
      %v2532 = vpop.f32.mrb[0].mxu0
      %2533 = vmatprep.mubr.bf16.mxu0 0
      %2534 = vmatmul.mubr.bf16.gmra.mrb[0].mxu0 %v2418
      %v2535 = vpop.f32.mrb[0].mxu0
      %v2536 = vadd.f32 0.0, %v2535
      %v2537 = vpop.f32.mrb[0].mxu0
      %v2538 = vpop.f32.mrb[0].mxu0
      %v2539 = vadd.f32 0.0, %v2538
      %v2540 = vpop.f32.mrb[0].mxu0
      %2541 = vmatprep.mubr.bf16.mxu0 0
      %2542 = vmatmul.mubr.bf16.gmra.mrb[0].mxu0 %v2420
      %v2543 = vpop.f32.mrb[0].mxu0
      %v2544 = vadd.f32 0.0, %v2543
      %v2545 = vpop.f32.mrb[0].mxu0
      %v2546 = vpop.f32.mrb[0].mxu0
      %v2547 = vadd.f32 0.0, %v2546
      %v2548 = vpop.f32.mrb[0].mxu0
      %2549 = vmatprep.mubr.bf16.mxu0 0
      %2550 = vmatmul.mubr.bf16.gmra.mrb[0].mxu0 %v2422
      %v2551 = vpop.f32.mrb[0].mxu0
      %v2552 = vadd.f32 0.0, %v2551
      %v2553 = vpop.f32.mrb[0].mxu0
      %v2554 = vpop.f32.mrb[0].mxu0
      %v2555 = vadd.f32 0.0, %v2554
      %v2556 = vpop.f32.mrb[0].mxu0
      %2557 = vmatprep.mubr.bf16.mxu0 0
      %2558 = vmatmul.mubr.bf16.gmra.mrb[0].mxu0 %v2424
      %v2559 = vpop.f32.mrb[0].mxu0
      %v2560 = vadd.f32 0.0, %v2559
      %v2561 = vpop.f32.mrb[0].mxu0
      %v2562 = vpop.f32.mrb[0].mxu0
      %v2563 = vadd.f32 0.0, %v2562
      %v2564 = vpop.f32.mrb[0].mxu0
      %2565 = vmatprep.mubr.bf16.mxu0 0
      %2566 = vmatmul.mubr.bf16.gmra.mrb[0].mxu0 %v2426
      %v2567 = vpop.f32.mrb[0].mxu0
      %v2568 = vadd.f32 0.0, %v2567
      %v2569 = vpop.f32.mrb[0].mxu0
      %v2570 = vpop.f32.mrb[0].mxu0
      %v2571 = vadd.f32 0.0, %v2570
      %v2572 = vpop.f32.mrb[0].mxu0
      %2573 = vmatprep.mubr.bf16.mxu0 0
      %2574 = vmatmul.mubr.bf16.gmra.mrb[0].mxu0 %v2428
      %v2575 = vpop.f32.mrb[0].mxu0
      %v2576 = vadd.f32 0.0, %v2575
      %v2577 = vpop.f32.mrb[0].mxu0
      %v2578 = vpop.f32.mrb[0].mxu0
      %v2579 = vadd.f32 0.0, %v2578
      %v2580 = vpop.f32.mrb[0].mxu0
      %2581 = vmatprep.mubr.bf16.mxu0 0
      %2582 = vmatmul.mubr.bf16.gmra.mrb[0].mxu0 %v2430
      %v2583 = vpop.f32.mrb[0].mxu0
      %v2584 = vadd.f32 0.0, %v2583
      %v2585 = vpop.f32.mrb[0].mxu0
      %v2586 = vpop.f32.mrb[0].mxu0
      %v2587 = vadd.f32 0.0, %v2586
      %v2588 = vpop.f32.mrb[0].mxu0
      %2589 = vmatprep.mubr.bf16.mxu0 0
      %2590 = vmatmul.mubr.bf16.gmra.mrb[0].mxu0 %v2432
      %v2591 = vpop.f32.mrb[0].mxu0
      %v2592 = vadd.f32 0.0, %v2591
      %v2593 = vpop.f32.mrb[0].mxu0
      %v2594 = vpop.f32.mrb[0].mxu0
      %v2595 = vadd.f32 0.0, %v2594
      %v2596 = vpop.f32.mrb[0].mxu0
      %2597 = vdwg.mxu0
      %v2598 = vld [vmem:[#allocation2] sm:$0xff]
      %v2599 = vld [vmem:[#allocation2 + $0x8] sm:$0xff]
      %v2600 = vld [vmem:[#allocation2 + $0x10] sm:$0xff]
      %v2601 = vld [vmem:[#allocation2 + $0x18] sm:$0xff]
      %v2602 = vld [vmem:[#allocation2 + $0x20] sm:$0xff]
      %v2603 = vld [vmem:[#allocation2 + $0x28] sm:$0xff]
      %v2604 = vld [vmem:[#allocation2 + $0x30] sm:$0xff]
      %v2605 = vld [vmem:[#allocation2 + $0x38] sm:$0xff]
      %v2606 = vld [vmem:[#allocation2 + $0x40] sm:$0xff]
      %v2607 = vld [vmem:[#allocation2 + $0x48] sm:$0xff]
      %v2608 = vld [vmem:[#allocation2 + $0x50] sm:$0xff]
      %v2609 = vld [vmem:[#allocation2 + $0x58] sm:$0xff]
      %v2610 = vld [vmem:[#allocation2 + $0x60] sm:$0xff]
      %v2611 = vld [vmem:[#allocation2 + $0x68] sm:$0xff]
      %v2612 = vld [vmem:[#allocation2 + $0x70] sm:$0xff]
      %v2613 = vld [vmem:[#allocation2 + $0x78] sm:$0xff]
      %v2614 = vld [vmem:[#allocation2 + $0x80] sm:$0xff]
      %v2615 = vld [vmem:[#allocation2 + $0x88] sm:$0xff]
      %v2616 = vld [vmem:[#allocation2 + $0x90] sm:$0xff]
      %v2617 = vld [vmem:[#allocation2 + $0x98] sm:$0xff]
      %v2618 = vld [vmem:[#allocation2 + $0xa0] sm:$0xff]
      %v2619 = vld [vmem:[#allocation2 + $0xa8] sm:$0xff]
      %v2620 = vld [vmem:[#allocation2 + $0xb0] sm:$0xff]
      %v2621 = vld [vmem:[#allocation2 + $0xb8] sm:$0xff]
      %v2622 = vld [vmem:[#allocation2 + $0xc0] sm:$0xff]
      %v2623 = vld [vmem:[#allocation2 + $0xc8] sm:$0xff]
      %v2624 = vld [vmem:[#allocation2 + $0xd0] sm:$0xff]
      %v2625 = vld [vmem:[#allocation2 + $0xd8] sm:$0xff]
      %v2626 = vld [vmem:[#allocation2 + $0xe0] sm:$0xff]
      %v2627 = vld [vmem:[#allocation2 + $0xe8] sm:$0xff]
      %v2628 = vld [vmem:[#allocation2 + $0xf0] sm:$0xff]
      %v2629 = vld [vmem:[#allocation2 + $0xf8] sm:$0xff]
      %v2630 = vadd.f32 %v2598, %v2472
      %v2631 = vadd.f32 %v2599, %v2475
      %v2632 = vadd.f32 %v2600, %v2480
      %v2633 = vadd.f32 %v2601, %v2483
      %v2634 = vadd.f32 %v2602, %v2488
      %v2635 = vadd.f32 %v2603, %v2491
      %v2636 = vadd.f32 %v2604, %v2496
      %v2637 = vadd.f32 %v2605, %v2499
      %v2638 = vadd.f32 %v2606, %v2504
      %v2639 = vadd.f32 %v2607, %v2507
      %v2640 = vadd.f32 %v2608, %v2512
      %v2641 = vadd.f32 %v2609, %v2515
      %v2642 = vadd.f32 %v2610, %v2520
      %v2643 = vadd.f32 %v2611, %v2523
      %v2644 = vadd.f32 %v2612, %v2528
      %v2645 = vadd.f32 %v2613, %v2531
      %v2646 = vadd.f32 %v2614, %v2536
      %v2647 = vadd.f32 %v2615, %v2539
      %v2648 = vadd.f32 %v2616, %v2544
      %v2649 = vadd.f32 %v2617, %v2547
      %v2650 = vadd.f32 %v2618, %v2552
      %v2651 = vadd.f32 %v2619, %v2555
      %v2652 = vadd.f32 %v2620, %v2560
      %v2653 = vadd.f32 %v2621, %v2563
      %v2654 = vadd.f32 %v2622, %v2568
      %v2655 = vadd.f32 %v2623, %v2571
      %v2656 = vadd.f32 %v2624, %v2576
      %v2657 = vadd.f32 %v2625, %v2579
      %v2658 = vadd.f32 %v2626, %v2584
      %v2659 = vadd.f32 %v2627, %v2587
      %v2660 = vadd.f32 %v2628, %v2592
      %v2661 = vadd.f32 %v2629, %v2595
      %2662 = vst.msk [vmem:[#allocation2] sm:$0xff] %vm701, %v2630
      %2663 = vst.msk [vmem:[#allocation2 + $0x8] sm:$0xff] %vm701, %v2631
      %2664 = vst.msk [vmem:[#allocation2 + $0x10] sm:$0xff] %vm701, %v2632
      %2665 = vst.msk [vmem:[#allocation2 + $0x18] sm:$0xff] %vm701, %v2633
      %2666 = vst.msk [vmem:[#allocation2 + $0x20] sm:$0xff] %vm701, %v2634
      %2667 = vst.msk [vmem:[#allocation2 + $0x28] sm:$0xff] %vm701, %v2635
      %2668 = vst.msk [vmem:[#allocation2 + $0x30] sm:$0xff] %vm701, %v2636
      %2669 = vst.msk [vmem:[#allocation2 + $0x38] sm:$0xff] %vm701, %v2637
      %2670 = vst.msk [vmem:[#allocation2 + $0x40] sm:$0xff] %vm701, %v2638
      %2671 = vst.msk [vmem:[#allocation2 + $0x48] sm:$0xff] %vm701, %v2639
      %2672 = vst.msk [vmem:[#allocation2 + $0x50] sm:$0xff] %vm701, %v2640
      %2673 = vst.msk [vmem:[#allocation2 + $0x58] sm:$0xff] %vm701, %v2641
      %2674 = vst.msk [vmem:[#allocation2 + $0x60] sm:$0xff] %vm701, %v2642
      %2675 = vst.msk [vmem:[#allocation2 + $0x68] sm:$0xff] %vm701, %v2643
      %2676 = vst.msk [vmem:[#allocation2 + $0x70] sm:$0xff] %vm701, %v2644
      %2677 = vst.msk [vmem:[#allocation2 + $0x78] sm:$0xff] %vm701, %v2645
      %2678 = vst.msk [vmem:[#allocation2 + $0x80] sm:$0xff] %vm701, %v2646
      %2679 = vst.msk [vmem:[#allocation2 + $0x88] sm:$0xff] %vm701, %v2647
      %2680 = vst.msk [vmem:[#allocation2 + $0x90] sm:$0xff] %vm701, %v2648
      %2681 = vst.msk [vmem:[#allocation2 + $0x98] sm:$0xff] %vm701, %v2649
      %2682 = vst.msk [vmem:[#allocation2 + $0xa0] sm:$0xff] %vm701, %v2650
      %2683 = vst.msk [vmem:[#allocation2 + $0xa8] sm:$0xff] %vm701, %v2651
      %2684 = vst.msk [vmem:[#allocation2 + $0xb0] sm:$0xff] %vm701, %v2652
      %2685 = vst.msk [vmem:[#allocation2 + $0xb8] sm:$0xff] %vm701, %v2653
      %2686 = vst.msk [vmem:[#allocation2 + $0xc0] sm:$0xff] %vm701, %v2654
      %2687 = vst.msk [vmem:[#allocation2 + $0xc8] sm:$0xff] %vm701, %v2655
      %2688 = vst.msk [vmem:[#allocation2 + $0xd0] sm:$0xff] %vm701, %v2656
      %2689 = vst.msk [vmem:[#allocation2 + $0xd8] sm:$0xff] %vm701, %v2657
      %2690 = vst.msk [vmem:[#allocation2 + $0xe0] sm:$0xff] %vm701, %v2658
      %2691 = vst.msk [vmem:[#allocation2 + $0xe8] sm:$0xff] %vm701, %v2659
      %2692 = vst.msk [vmem:[#allocation2 + $0xf0] sm:$0xff] %vm701, %v2660
      %2693 = vst.msk [vmem:[#allocation2 + $0xf8] sm:$0xff] %vm701, %v2661
      %v2694 = vld [vmem:[#allocation2] sm:$0xff]
      %v2695 = vld [vmem:[#allocation2 + $0x8] sm:$0xff]
      %v2696 = vld [vmem:[#allocation2 + $0x10] sm:$0xff]
      %v2697 = vld [vmem:[#allocation2 + $0x18] sm:$0xff]
      %v2698 = vld [vmem:[#allocation2 + $0x20] sm:$0xff]
      %v2699 = vld [vmem:[#allocation2 + $0x28] sm:$0xff]
      %v2700 = vld [vmem:[#allocation2 + $0x30] sm:$0xff]
      %v2701 = vld [vmem:[#allocation2 + $0x38] sm:$0xff]
      %v2702 = vld [vmem:[#allocation2 + $0x40] sm:$0xff]
      %v2703 = vld [vmem:[#allocation2 + $0x48] sm:$0xff]
      %v2704 = vld [vmem:[#allocation2 + $0x50] sm:$0xff]
      %v2705 = vld [vmem:[#allocation2 + $0x58] sm:$0xff]
      %v2706 = vld [vmem:[#allocation2 + $0x60] sm:$0xff]
      %v2707 = vld [vmem:[#allocation2 + $0x68] sm:$0xff]
      %v2708 = vld [vmem:[#allocation2 + $0x70] sm:$0xff]
      %v2709 = vld [vmem:[#allocation2 + $0x78] sm:$0xff]
      %v2710 = vld [vmem:[#allocation2 + $0x80] sm:$0xff]
      %v2711 = vld [vmem:[#allocation2 + $0x88] sm:$0xff]
      %v2712 = vld [vmem:[#allocation2 + $0x90] sm:$0xff]
      %v2713 = vld [vmem:[#allocation2 + $0x98] sm:$0xff]
      %v2714 = vld [vmem:[#allocation2 + $0xa0] sm:$0xff]
      %v2715 = vld [vmem:[#allocation2 + $0xa8] sm:$0xff]
      %v2716 = vld [vmem:[#allocation2 + $0xb0] sm:$0xff]
      %v2717 = vld [vmem:[#allocation2 + $0xb8] sm:$0xff]
      %v2718 = vld [vmem:[#allocation2 + $0xc0] sm:$0xff]
      %v2719 = vld [vmem:[#allocation2 + $0xc8] sm:$0xff]
      %v2720 = vld [vmem:[#allocation2 + $0xd0] sm:$0xff]
      %v2721 = vld [vmem:[#allocation2 + $0xd8] sm:$0xff]
      %v2722 = vld [vmem:[#allocation2 + $0xe0] sm:$0xff]
      %v2723 = vld [vmem:[#allocation2 + $0xe8] sm:$0xff]
      %v2724 = vld [vmem:[#allocation2 + $0xf0] sm:$0xff]
      %v2725 = vld [vmem:[#allocation2 + $0xf8] sm:$0xff]
      %v2726 = vsel %vm701, %v2694, 0.0
      %v2727 = vsel %vm701, %v2695, 0.0
      %v2728 = vadd.f32 %v2726, %v2727
      %v2729 = vsel %vm701, %v2696, 0.0
      %v2730 = vadd.f32 %v2728, %v2729
      %v2731 = vsel %vm701, %v2697, 0.0
      %v2732 = vadd.f32 %v2730, %v2731
      %v2733 = vsel %vm701, %v2698, 0.0
      %v2734 = vadd.f32 %v2732, %v2733
      %v2735 = vsel %vm701, %v2699, 0.0
      %v2736 = vadd.f32 %v2734, %v2735
      %v2737 = vsel %vm701, %v2700, 0.0
      %v2738 = vadd.f32 %v2736, %v2737
      %v2739 = vsel %vm701, %v2701, 0.0
      %v2740 = vadd.f32 %v2738, %v2739
      %v2741 = vsel %vm701, %v2702, 0.0
      %v2742 = vadd.f32 %v2740, %v2741
      %v2743 = vsel %vm701, %v2703, 0.0
      %v2744 = vadd.f32 %v2742, %v2743
      %v2745 = vsel %vm701, %v2704, 0.0
      %v2746 = vadd.f32 %v2744, %v2745
      %v2747 = vsel %vm701, %v2705, 0.0
      %v2748 = vadd.f32 %v2746, %v2747
      %v2749 = vsel %vm701, %v2706, 0.0
      %v2750 = vadd.f32 %v2748, %v2749
      %v2751 = vsel %vm701, %v2707, 0.0
      %v2752 = vadd.f32 %v2750, %v2751
      %v2753 = vsel %vm701, %v2708, 0.0
      %v2754 = vadd.f32 %v2752, %v2753
      %v2755 = vsel %vm701, %v2709, 0.0
      %v2756 = vadd.f32 %v2754, %v2755
      %v2757 = vsel %vm701, %v2710, 0.0
      %v2758 = vadd.f32 %v2756, %v2757
      %v2759 = vsel %vm701, %v2711, 0.0
      %v2760 = vadd.f32 %v2758, %v2759
      %v2761 = vsel %vm701, %v2712, 0.0
      %v2762 = vadd.f32 %v2760, %v2761
      %v2763 = vsel %vm701, %v2713, 0.0
      %v2764 = vadd.f32 %v2762, %v2763
      %v2765 = vsel %vm701, %v2714, 0.0
      %v2766 = vadd.f32 %v2764, %v2765
      %v2767 = vsel %vm701, %v2715, 0.0
      %v2768 = vadd.f32 %v2766, %v2767
      %v2769 = vsel %vm701, %v2716, 0.0
      %v2770 = vadd.f32 %v2768, %v2769
      %v2771 = vsel %vm701, %v2717, 0.0
      %v2772 = vadd.f32 %v2770, %v2771
      %v2773 = vsel %vm701, %v2718, 0.0
      %v2774 = vadd.f32 %v2772, %v2773
      %v2775 = vsel %vm701, %v2719, 0.0
      %v2776 = vadd.f32 %v2774, %v2775
      %v2777 = vsel %vm701, %v2720, 0.0
      %v2778 = vadd.f32 %v2776, %v2777
      %v2779 = vsel %vm701, %v2721, 0.0
      %v2780 = vadd.f32 %v2778, %v2779
      %v2781 = vsel %vm701, %v2722, 0.0
      %v2782 = vadd.f32 %v2780, %v2781
      %v2783 = vsel %vm701, %v2723, 0.0
      %v2784 = vadd.f32 %v2782, %v2783
      %v2785 = vsel %vm701, %v2724, 0.0
      %v2786 = vadd.f32 %v2784, %v2785
      %v2787 = vsel %vm701, %v2725, 0.0
      %v2788 = vadd.f32 %v2786, %v2787
      %v2789 = vrot.slane %v2788, 4
      %v2790 = vadd.f32 %v2788, %v2789
      %v2791 = vrot.slane %v2790, 2
      %v2792 = vadd.f32 %v2790, %v2791
      %v2793 = vrot.slane %v2792, 1
      %v2794 = vadd.f32 %v2792, %v2793
      %v2795 = vmul.f32 %v2794, 0.00390625
      %v2796 = vmul.f32 %v2694, %v2694
      %v2797 = vmul.f32 %v2695, %v2695
      %v2798 = vmul.f32 %v2696, %v2696
      %v2799 = vmul.f32 %v2697, %v2697
      %v2800 = vmul.f32 %v2698, %v2698
      %v2801 = vmul.f32 %v2699, %v2699
      %v2802 = vmul.f32 %v2700, %v2700
      %v2803 = vmul.f32 %v2701, %v2701
      %v2804 = vmul.f32 %v2702, %v2702
      %v2805 = vmul.f32 %v2703, %v2703
      %v2806 = vmul.f32 %v2704, %v2704
      %v2807 = vmul.f32 %v2705, %v2705
      %v2808 = vmul.f32 %v2706, %v2706
      %v2809 = vmul.f32 %v2707, %v2707
      %v2810 = vmul.f32 %v2708, %v2708
      %v2811 = vmul.f32 %v2709, %v2709
      %v2812 = vmul.f32 %v2710, %v2710
      %v2813 = vmul.f32 %v2711, %v2711
      %v2814 = vmul.f32 %v2712, %v2712
      %v2815 = vmul.f32 %v2713, %v2713
      %v2816 = vmul.f32 %v2714, %v2714
      %v2817 = vmul.f32 %v2715, %v2715
      %v2818 = vmul.f32 %v2716, %v2716
      %v2819 = vmul.f32 %v2717, %v2717
      %v2820 = vmul.f32 %v2718, %v2718
      %v2821 = vmul.f32 %v2719, %v2719
      %v2822 = vmul.f32 %v2720, %v2720
      %v2823 = vmul.f32 %v2721, %v2721
      %v2824 = vmul.f32 %v2722, %v2722
      %v2825 = vmul.f32 %v2723, %v2723
      %v2826 = vmul.f32 %v2724, %v2724
      %v2827 = vmul.f32 %v2725, %v2725
      %v2828 = vsel %vm701, %v2796, 0.0
      %v2829 = vsel %vm701, %v2797, 0.0
      %v2830 = vadd.f32 %v2828, %v2829
      %v2831 = vsel %vm701, %v2798, 0.0
      %v2832 = vadd.f32 %v2830, %v2831
      %v2833 = vsel %vm701, %v2799, 0.0
      %v2834 = vadd.f32 %v2832, %v2833
      %v2835 = vsel %vm701, %v2800, 0.0
      %v2836 = vadd.f32 %v2834, %v2835
      %v2837 = vsel %vm701, %v2801, 0.0
      %v2838 = vadd.f32 %v2836, %v2837
      %v2839 = vsel %vm701, %v2802, 0.0
      %v2840 = vadd.f32 %v2838, %v2839
      %v2841 = vsel %vm701, %v2803, 0.0
      %v2842 = vadd.f32 %v2840, %v2841
      %v2843 = vsel %vm701, %v2804, 0.0
      %v2844 = vadd.f32 %v2842, %v2843
      %v2845 = vsel %vm701, %v2805, 0.0
      %v2846 = vadd.f32 %v2844, %v2845
      %v2847 = vsel %vm701, %v2806, 0.0
      %v2848 = vadd.f32 %v2846, %v2847
      %v2849 = vsel %vm701, %v2807, 0.0
      %v2850 = vadd.f32 %v2848, %v2849
      %v2851 = vsel %vm701, %v2808, 0.0
      %v2852 = vadd.f32 %v2850, %v2851
      %v2853 = vsel %vm701, %v2809, 0.0
      %v2854 = vadd.f32 %v2852, %v2853
      %v2855 = vsel %vm701, %v2810, 0.0
      %v2856 = vadd.f32 %v2854, %v2855
      %v2857 = vsel %vm701, %v2811, 0.0
      %v2858 = vadd.f32 %v2856, %v2857
      %v2859 = vsel %vm701, %v2812, 0.0
      %v2860 = vadd.f32 %v2858, %v2859
      %v2861 = vsel %vm701, %v2813, 0.0
      %v2862 = vadd.f32 %v2860, %v2861
      %v2863 = vsel %vm701, %v2814, 0.0
      %v2864 = vadd.f32 %v2862, %v2863
      %v2865 = vsel %vm701, %v2815, 0.0
      %v2866 = vadd.f32 %v2864, %v2865
      %v2867 = vsel %vm701, %v2816, 0.0
      %v2868 = vadd.f32 %v2866, %v2867
      %v2869 = vsel %vm701, %v2817, 0.0
      %v2870 = vadd.f32 %v2868, %v2869
      %v2871 = vsel %vm701, %v2818, 0.0
      %v2872 = vadd.f32 %v2870, %v2871
      %v2873 = vsel %vm701, %v2819, 0.0
      %v2874 = vadd.f32 %v2872, %v2873
      %v2875 = vsel %vm701, %v2820, 0.0
      %v2876 = vadd.f32 %v2874, %v2875
      %v2877 = vsel %vm701, %v2821, 0.0
      %v2878 = vadd.f32 %v2876, %v2877
      %v2879 = vsel %vm701, %v2822, 0.0
      %v2880 = vadd.f32 %v2878, %v2879
      %v2881 = vsel %vm701, %v2823, 0.0
      %v2882 = vadd.f32 %v2880, %v2881
      %v2883 = vsel %vm701, %v2824, 0.0
      %v2884 = vadd.f32 %v2882, %v2883
      %v2885 = vsel %vm701, %v2825, 0.0
      %v2886 = vadd.f32 %v2884, %v2885
      %v2887 = vsel %vm701, %v2826, 0.0
      %v2888 = vadd.f32 %v2886, %v2887
      %v2889 = vsel %vm701, %v2827, 0.0
      %v2890 = vadd.f32 %v2888, %v2889
      %v2891 = vrot.slane %v2890, 4
      %v2892 = vadd.f32 %v2890, %v2891
      %v2893 = vrot.slane %v2892, 2
      %v2894 = vadd.f32 %v2892, %v2893
      %v2895 = vrot.slane %v2894, 1
      %v2896 = vadd.f32 %v2894, %v2895
      %v2897 = vmul.f32 %v2896, 0.00390625
      %v2898 = vmul.f32 %v2795, %v2795
      %v2899 = vsub.f32 %v2897, %v2898
      %v2900 = vmax.f32 %v2899, 0.0
      %v2901 = vsub.f32 %v2694, %v2795
      %v2902 = vsub.f32 %v2695, %v2795
      %v2903 = vsub.f32 %v2696, %v2795
      %v2904 = vsub.f32 %v2697, %v2795
      %v2905 = vsub.f32 %v2698, %v2795
      %v2906 = vsub.f32 %v2699, %v2795
      %v2907 = vsub.f32 %v2700, %v2795
      %v2908 = vsub.f32 %v2701, %v2795
      %v2909 = vsub.f32 %v2702, %v2795
      %v2910 = vsub.f32 %v2703, %v2795
      %v2911 = vsub.f32 %v2704, %v2795
      %v2912 = vsub.f32 %v2705, %v2795
      %v2913 = vsub.f32 %v2706, %v2795
      %v2914 = vsub.f32 %v2707, %v2795
      %v2915 = vsub.f32 %v2708, %v2795
      %v2916 = vsub.f32 %v2709, %v2795
      %v2917 = vsub.f32 %v2710, %v2795
      %v2918 = vsub.f32 %v2711, %v2795
      %v2919 = vsub.f32 %v2712, %v2795
      %v2920 = vsub.f32 %v2713, %v2795
      %v2921 = vsub.f32 %v2714, %v2795
      %v2922 = vsub.f32 %v2715, %v2795
      %v2923 = vsub.f32 %v2716, %v2795
      %v2924 = vsub.f32 %v2717, %v2795
      %v2925 = vsub.f32 %v2718, %v2795
      %v2926 = vsub.f32 %v2719, %v2795
      %v2927 = vsub.f32 %v2720, %v2795
      %v2928 = vsub.f32 %v2721, %v2795
      %v2929 = vsub.f32 %v2722, %v2795
      %v2930 = vsub.f32 %v2723, %v2795
      %v2931 = vsub.f32 %v2724, %v2795
      %v2932 = vsub.f32 %v2725, %v2795
      %v2933 = vadd.f32 %v2900, 1e-05
      %v2934 = vrsqrt.pop %v2933
      %v2935 = vmul.f32 %v2901, %v2934
      %v2936 = vmul.f32 %v2902, %v2934
      %v2937 = vmul.f32 %v2903, %v2934
      %v2938 = vmul.f32 %v2904, %v2934
      %v2939 = vmul.f32 %v2905, %v2934
      %v2940 = vmul.f32 %v2906, %v2934
      %v2941 = vmul.f32 %v2907, %v2934
      %v2942 = vmul.f32 %v2908, %v2934
      %v2943 = vmul.f32 %v2909, %v2934
      %v2944 = vmul.f32 %v2910, %v2934
      %v2945 = vmul.f32 %v2911, %v2934
      %v2946 = vmul.f32 %v2912, %v2934
      %v2947 = vmul.f32 %v2913, %v2934
      %v2948 = vmul.f32 %v2914, %v2934
      %v2949 = vmul.f32 %v2915, %v2934
      %v2950 = vmul.f32 %v2916, %v2934
      %v2951 = vmul.f32 %v2917, %v2934
      %v2952 = vmul.f32 %v2918, %v2934
      %v2953 = vmul.f32 %v2919, %v2934
      %v2954 = vmul.f32 %v2920, %v2934
      %v2955 = vmul.f32 %v2921, %v2934
      %v2956 = vmul.f32 %v2922, %v2934
      %v2957 = vmul.f32 %v2923, %v2934
      %v2958 = vmul.f32 %v2924, %v2934
      %v2959 = vmul.f32 %v2925, %v2934
      %v2960 = vmul.f32 %v2926, %v2934
      %v2961 = vmul.f32 %v2927, %v2934
      %v2962 = vmul.f32 %v2928, %v2934
      %v2963 = vmul.f32 %v2929, %v2934
      %v2964 = vmul.f32 %v2930, %v2934
      %v2965 = vmul.f32 %v2931, %v2934
      %v2966 = vmul.f32 %v2932, %v2934
      %v2967 = vmax.f32 %v2935, 0.0
      %v2968 = vmax.f32 %v2936, 0.0
      %v2969 = vmax.f32 %v2937, 0.0
      %v2970 = vmax.f32 %v2938, 0.0
      %v2971 = vmax.f32 %v2939, 0.0
      %v2972 = vmax.f32 %v2940, 0.0
      %v2973 = vmax.f32 %v2941, 0.0
      %v2974 = vmax.f32 %v2942, 0.0
      %v2975 = vmax.f32 %v2943, 0.0
      %v2976 = vmax.f32 %v2944, 0.0
      %v2977 = vmax.f32 %v2945, 0.0
      %v2978 = vmax.f32 %v2946, 0.0
      %v2979 = vmax.f32 %v2947, 0.0
      %v2980 = vmax.f32 %v2948, 0.0
      %v2981 = vmax.f32 %v2949, 0.0
      %v2982 = vmax.f32 %v2950, 0.0
      %v2983 = vmax.f32 %v2951, 0.0
      %v2984 = vmax.f32 %v2952, 0.0
      %v2985 = vmax.f32 %v2953, 0.0
      %v2986 = vmax.f32 %v2954, 0.0
      %v2987 = vmax.f32 %v2955, 0.0
      %v2988 = vmax.f32 %v2956, 0.0
      %v2989 = vmax.f32 %v2957, 0.0
      %v2990 = vmax.f32 %v2958, 0.0
      %v2991 = vmax.f32 %v2959, 0.0
      %v2992 = vmax.f32 %v2960, 0.0
      %v2993 = vmax.f32 %v2961, 0.0
      %v2994 = vmax.f32 %v2962, 0.0
      %v2995 = vmax.f32 %v2963, 0.0
      %v2996 = vmax.f32 %v2964, 0.0
      %v2997 = vmax.f32 %v2965, 0.0
      %v2998 = vmax.f32 %v2966, 0.0
      %v2999 = vpack.c.bf16 %v2968, %v2967
      %v3000 = vpack.c.bf16 %v2970, %v2969
      %v3001 = vpack.c.bf16 %v2972, %v2971
      %v3002 = vpack.c.bf16 %v2974, %v2973
      %v3003 = vpack.c.bf16 %v2976, %v2975
      %v3004 = vpack.c.bf16 %v2978, %v2977
      %v3005 = vpack.c.bf16 %v2980, %v2979
      %v3006 = vpack.c.bf16 %v2982, %v2981
      %v3007 = vpack.c.bf16 %v2984, %v2983
      %v3008 = vpack.c.bf16 %v2986, %v2985
      %v3009 = vpack.c.bf16 %v2988, %v2987
      %v3010 = vpack.c.bf16 %v2990, %v2989
      %v3011 = vpack.c.bf16 %v2992, %v2991
      %v3012 = vpack.c.bf16 %v2994, %v2993
      %v3013 = vpack.c.bf16 %v2996, %v2995
      %v3014 = vpack.c.bf16 %v2998, %v2997
      %v3031 = vunpack.c.l.b16 %v2999
      %v3032 = vunpack.c.h.b16 %v2999
      %v3033 = vunpack.c.l.b16 %v3000
      %v3034 = vunpack.c.h.b16 %v3000
      %v3035 = vunpack.c.l.b16 %v3001
      %v3036 = vunpack.c.h.b16 %v3001
      %v3037 = vunpack.c.l.b16 %v3002
      %v3038 = vunpack.c.h.b16 %v3002
      %v3039 = vunpack.c.l.b16 %v3003
      %v3040 = vunpack.c.h.b16 %v3003
      %v3041 = vunpack.c.l.b16 %v3004
      %v3042 = vunpack.c.h.b16 %v3004
      %v3043 = vunpack.c.l.b16 %v3005
      %v3044 = vunpack.c.h.b16 %v3005
      %v3045 = vunpack.c.l.b16 %v3006
      %v3046 = vunpack.c.h.b16 %v3006
      %v3047 = vunpack.c.l.b16 %v3007
      %v3048 = vunpack.c.h.b16 %v3007
      %v3049 = vunpack.c.l.b16 %v3008
      %v3050 = vunpack.c.h.b16 %v3008
      %v3051 = vunpack.c.l.b16 %v3009
      %v3052 = vunpack.c.h.b16 %v3009
      %v3053 = vunpack.c.l.b16 %v3010
      %v3054 = vunpack.c.h.b16 %v3010
      %v3055 = vunpack.c.l.b16 %v3011
      %v3056 = vunpack.c.h.b16 %v3011
      %v3057 = vunpack.c.l.b16 %v3012
      %v3058 = vunpack.c.h.b16 %v3012
      %v3059 = vunpack.c.l.b16 %v3013
      %v3060 = vunpack.c.h.b16 %v3013
      %v3061 = vunpack.c.l.b16 %v3014
      %v3062 = vunpack.c.h.b16 %v3014
      %v3063 = vpack.c.b16 %v3031, %v3031
      %v3064 = vpack.c.b16 %v3032, %v3032
      %v3065 = vpack.c.b16 %v3033, %v3033
      %v3066 = vpack.c.b16 %v3034, %v3034
      %v3067 = vpack.c.b16 %v3035, %v3035
      %v3068 = vpack.c.b16 %v3036, %v3036
      %v3069 = vpack.c.b16 %v3037, %v3037
      %v3070 = vpack.c.b16 %v3038, %v3038
      %v3071 = vpack.c.b16 %v3039, %v3039
      %v3072 = vpack.c.b16 %v3040, %v3040
      %v3073 = vpack.c.b16 %v3041, %v3041
      %v3074 = vpack.c.b16 %v3042, %v3042
      %v3075 = vpack.c.b16 %v3043, %v3043
      %v3076 = vpack.c.b16 %v3044, %v3044
      %v3077 = vpack.c.b16 %v3045, %v3045
      %v3078 = vpack.c.b16 %v3046, %v3046
      %v3079 = vpack.c.b16 %v3047, %v3047
      %v3080 = vpack.c.b16 %v3048, %v3048
      %v3081 = vpack.c.b16 %v3049, %v3049
      %v3082 = vpack.c.b16 %v3050, %v3050
      %v3083 = vpack.c.b16 %v3051, %v3051
      %v3084 = vpack.c.b16 %v3052, %v3052
      %v3085 = vpack.c.b16 %v3053, %v3053
      %v3086 = vpack.c.b16 %v3054, %v3054
      %v3087 = vpack.c.b16 %v3055, %v3055
      %v3088 = vpack.c.b16 %v3056, %v3056
      %v3089 = vpack.c.b16 %v3057, %v3057
      %v3090 = vpack.c.b16 %v3058, %v3058
      %v3091 = vpack.c.b16 %v3059, %v3059
      %v3092 = vpack.c.b16 %v3060, %v3060
      %v3093 = vpack.c.b16 %v3061, %v3061
      %v3094 = vpack.c.b16 %v3062, %v3062
      %vm3095 = vsmask.f32 256
      %vm3096 = vsmask.f32 4368
      %vm3097 = vmor %vm3095, %vm3096
      %v3099 = vshrl.u32 %v3063, 16
      %v3101 = vrot.slane %v3099, 7
      %v3102 = vshll.u32 %v3063, 16
      %v3104 = vor.u32 %v3101, %v3102
      %v3105 = vrot.slane %v3101, 4
      %v3107 = vshrl.u32 %v3064, 16
      %v3109 = vrot.slane %v3107, 7
      %v3110 = vshll.u32 %v3064, 16
      %v3112 = vor.u32 %v3109, %v3110
      %v3113 = vsel %vm3097, %v3105, %v3112
      %v3114 = vrot.slane %v3109, 4
      %v3116 = vshrl.u32 %v3065, 16
      %v3118 = vrot.slane %v3116, 7
      %v3119 = vshll.u32 %v3065, 16
      %v3121 = vor.u32 %v3118, %v3119
      %v3122 = vrot.slane %v3118, 4
      %v3124 = vshrl.u32 %v3066, 16
      %v3126 = vrot.slane %v3124, 7
      %v3127 = vshll.u32 %v3066, 16
      %v3129 = vor.u32 %v3126, %v3127
      %v3130 = vsel %vm3097, %v3122, %v3129
      %v3131 = vrot.slane %v3126, 4
      %v3133 = vshrl.u32 %v3067, 16
      %v3135 = vrot.slane %v3133, 7
      %v3136 = vshll.u32 %v3067, 16
      %v3138 = vor.u32 %v3135, %v3136
      %v3139 = vrot.slane %v3135, 4
      %v3141 = vshrl.u32 %v3068, 16
      %v3143 = vrot.slane %v3141, 7
      %v3144 = vshll.u32 %v3068, 16
      %v3146 = vor.u32 %v3143, %v3144
      %v3147 = vsel %vm3097, %v3139, %v3146
      %v3148 = vrot.slane %v3143, 4
      %v3150 = vshrl.u32 %v3069, 16
      %v3152 = vrot.slane %v3150, 7
      %v3153 = vshll.u32 %v3069, 16
      %v3155 = vor.u32 %v3152, %v3153
      %v3156 = vrot.slane %v3152, 4
      %v3158 = vshrl.u32 %v3070, 16
      %v3160 = vrot.slane %v3158, 7
      %v3161 = vshll.u32 %v3070, 16
      %v3163 = vor.u32 %v3160, %v3161
      %v3164 = vsel %vm3097, %v3156, %v3163
      %v3165 = vrot.slane %v3160, 4
      %v3167 = vshrl.u32 %v3071, 16
      %v3169 = vrot.slane %v3167, 7
      %v3170 = vshll.u32 %v3071, 16
      %v3172 = vor.u32 %v3169, %v3170
      %v3173 = vrot.slane %v3169, 4
      %v3175 = vshrl.u32 %v3072, 16
      %v3177 = vrot.slane %v3175, 7
      %v3178 = vshll.u32 %v3072, 16
      %v3180 = vor.u32 %v3177, %v3178
      %v3181 = vsel %vm3097, %v3173, %v3180
      %v3182 = vrot.slane %v3177, 4
      %v3184 = vshrl.u32 %v3073, 16
      %v3186 = vrot.slane %v3184, 7
      %v3187 = vshll.u32 %v3073, 16
      %v3189 = vor.u32 %v3186, %v3187
      %v3190 = vrot.slane %v3186, 4
      %v3192 = vshrl.u32 %v3074, 16
      %v3194 = vrot.slane %v3192, 7
      %v3195 = vshll.u32 %v3074, 16
      %v3197 = vor.u32 %v3194, %v3195
      %v3198 = vsel %vm3097, %v3190, %v3197
      %v3199 = vrot.slane %v3194, 4
      %v3201 = vshrl.u32 %v3075, 16
      %v3203 = vrot.slane %v3201, 7
      %v3204 = vshll.u32 %v3075, 16
      %v3206 = vor.u32 %v3203, %v3204
      %v3207 = vrot.slane %v3203, 4
      %v3209 = vshrl.u32 %v3076, 16
      %v3211 = vrot.slane %v3209, 7
      %v3212 = vshll.u32 %v3076, 16
      %v3214 = vor.u32 %v3211, %v3212
      %v3215 = vsel %vm3097, %v3207, %v3214
      %v3216 = vrot.slane %v3211, 4
      %v3218 = vshrl.u32 %v3077, 16
      %v3220 = vrot.slane %v3218, 7
      %v3221 = vshll.u32 %v3077, 16
      %v3223 = vor.u32 %v3220, %v3221
      %v3224 = vrot.slane %v3220, 4
      %v3226 = vshrl.u32 %v3078, 16
      %v3228 = vrot.slane %v3226, 7
      %v3229 = vshll.u32 %v3078, 16
      %v3231 = vor.u32 %v3228, %v3229
      %v3232 = vsel %vm3097, %v3224, %v3231
      %v3233 = vrot.slane %v3228, 4
      %v3235 = vshrl.u32 %v3079, 16
      %v3237 = vrot.slane %v3235, 7
      %v3238 = vshll.u32 %v3079, 16
      %v3240 = vor.u32 %v3237, %v3238
      %v3241 = vrot.slane %v3237, 4
      %v3243 = vshrl.u32 %v3080, 16
      %v3245 = vrot.slane %v3243, 7
      %v3246 = vshll.u32 %v3080, 16
      %v3248 = vor.u32 %v3245, %v3246
      %v3249 = vsel %vm3097, %v3241, %v3248
      %v3250 = vrot.slane %v3245, 4
      %v3252 = vshrl.u32 %v3081, 16
      %v3254 = vrot.slane %v3252, 7
      %v3255 = vshll.u32 %v3081, 16
      %v3257 = vor.u32 %v3254, %v3255
      %v3258 = vrot.slane %v3254, 4
      %v3260 = vshrl.u32 %v3082, 16
      %v3262 = vrot.slane %v3260, 7
      %v3263 = vshll.u32 %v3082, 16
      %v3265 = vor.u32 %v3262, %v3263
      %v3266 = vsel %vm3097, %v3258, %v3265
      %v3267 = vrot.slane %v3262, 4
      %v3269 = vshrl.u32 %v3083, 16
      %v3271 = vrot.slane %v3269, 7
      %v3272 = vshll.u32 %v3083, 16
      %v3274 = vor.u32 %v3271, %v3272
      %v3275 = vrot.slane %v3271, 4
      %v3277 = vshrl.u32 %v3084, 16
      %v3279 = vrot.slane %v3277, 7
      %v3280 = vshll.u32 %v3084, 16
      %v3282 = vor.u32 %v3279, %v3280
      %v3283 = vsel %vm3097, %v3275, %v3282
      %v3284 = vrot.slane %v3279, 4
      %v3286 = vshrl.u32 %v3085, 16
      %v3288 = vrot.slane %v3286, 7
      %v3289 = vshll.u32 %v3085, 16
      %v3291 = vor.u32 %v3288, %v3289
      %v3292 = vrot.slane %v3288, 4
      %v3294 = vshrl.u32 %v3086, 16
      %v3296 = vrot.slane %v3294, 7
      %v3297 = vshll.u32 %v3086, 16
      %v3299 = vor.u32 %v3296, %v3297
      %v3300 = vsel %vm3097, %v3292, %v3299
      %v3301 = vrot.slane %v3296, 4
      %v3303 = vshrl.u32 %v3087, 16
      %v3305 = vrot.slane %v3303, 7
      %v3306 = vshll.u32 %v3087, 16
      %v3308 = vor.u32 %v3305, %v3306
      %v3309 = vrot.slane %v3305, 4
      %v3311 = vshrl.u32 %v3088, 16
      %v3313 = vrot.slane %v3311, 7
      %v3314 = vshll.u32 %v3088, 16
      %v3316 = vor.u32 %v3313, %v3314
      %v3317 = vsel %vm3097, %v3309, %v3316
      %v3318 = vrot.slane %v3313, 4
      %v3320 = vshrl.u32 %v3089, 16
      %v3322 = vrot.slane %v3320, 7
      %v3323 = vshll.u32 %v3089, 16
      %v3325 = vor.u32 %v3322, %v3323
      %v3326 = vrot.slane %v3322, 4
      %v3328 = vshrl.u32 %v3090, 16
      %v3330 = vrot.slane %v3328, 7
      %v3331 = vshll.u32 %v3090, 16
      %v3333 = vor.u32 %v3330, %v3331
      %v3334 = vsel %vm3097, %v3326, %v3333
      %v3335 = vrot.slane %v3330, 4
      %v3337 = vshrl.u32 %v3091, 16
      %v3339 = vrot.slane %v3337, 7
      %v3340 = vshll.u32 %v3091, 16
      %v3342 = vor.u32 %v3339, %v3340
      %v3343 = vrot.slane %v3339, 4
      %v3345 = vshrl.u32 %v3092, 16
      %v3347 = vrot.slane %v3345, 7
      %v3348 = vshll.u32 %v3092, 16
      %v3350 = vor.u32 %v3347, %v3348
      %v3351 = vsel %vm3097, %v3343, %v3350
      %v3352 = vrot.slane %v3347, 4
      %v3354 = vshrl.u32 %v3093, 16
      %v3356 = vrot.slane %v3354, 7
      %v3357 = vshll.u32 %v3093, 16
      %v3359 = vor.u32 %v3356, %v3357
      %v3360 = vrot.slane %v3356, 4
      %v3362 = vshrl.u32 %v3094, 16
      %v3364 = vrot.slane %v3362, 7
      %v3365 = vshll.u32 %v3094, 16
      %v3367 = vor.u32 %v3364, %v3365
      %v3368 = vsel %vm3097, %v3360, %v3367
      %v3369 = vrot.slane %v3364, 4
      %s3418 = scalar_lea.vmem [#allocation3], 12
      %vm3419 = vcmask 27648
      %vm3420 = vsmask.f32 7938
      %vm3421 = vmand %vm3419, %vm3420
      %v3422 = vld [vmem:[%s3418] sm:$0xf]
      %v3423 = vsel %vm3421, %v3104, %v3422
      %3424 = vst [vmem:[%s3418] sm:$0xf] %v3423
      %vm3425 = vcmask 27648
      %3426 = vst.msk [vmem:[%s3418 + $0x4] sm:$0xf] %vm3425, %v3113
      %vm3427 = vcmask 24576
      %vm3428 = vmand %vm3427, %vm3095
      %v3429 = vld [vmem:[%s3418 + $0x8] sm:$0x1]
      %v3430 = vsel %vm3428, %v3114, %v3429
      %3431 = vst [vmem:[%s3418 + $0x8] sm:$0x1] %v3430
      %v3432 = vld [vmem:[%s3418 + $0xc] sm:$0xf]
      %v3433 = vsel %vm3421, %v3121, %v3432
      %3434 = vst [vmem:[%s3418 + $0xc] sm:$0xf] %v3433
      %3435 = vst.msk [vmem:[%s3418 + $0x10] sm:$0xf] %vm3425, %v3130
      %v3436 = vld [vmem:[%s3418 + $0x14] sm:$0x1]
      %v3437 = vsel %vm3428, %v3131, %v3436
      %3438 = vst [vmem:[%s3418 + $0x14] sm:$0x1] %v3437
      %v3439 = vld [vmem:[%s3418 + $0x18] sm:$0xf]
      %v3440 = vsel %vm3421, %v3138, %v3439
      %3441 = vst [vmem:[%s3418 + $0x18] sm:$0xf] %v3440
      %3442 = vst.msk [vmem:[%s3418 + $0x1c] sm:$0xf] %vm3425, %v3147
      %v3443 = vld [vmem:[%s3418 + $0x20] sm:$0x1]
      %v3444 = vsel %vm3428, %v3148, %v3443
      %3445 = vst [vmem:[%s3418 + $0x20] sm:$0x1] %v3444
      %v3446 = vld [vmem:[%s3418 + $0x24] sm:$0xf]
      %v3447 = vsel %vm3421, %v3155, %v3446
      %3448 = vst [vmem:[%s3418 + $0x24] sm:$0xf] %v3447
      %3449 = vst.msk [vmem:[%s3418 + $0x28] sm:$0xf] %vm3425, %v3164
      %v3450 = vld [vmem:[%s3418 + $0x2c] sm:$0x1]
      %v3451 = vsel %vm3428, %v3165, %v3450
      %3452 = vst [vmem:[%s3418 + $0x2c] sm:$0x1] %v3451
      %v3453 = vld [vmem:[%s3418 + $0x30] sm:$0xf]
      %v3454 = vsel %vm3421, %v3172, %v3453
      %3455 = vst [vmem:[%s3418 + $0x30] sm:$0xf] %v3454
      %3456 = vst.msk [vmem:[%s3418 + $0x34] sm:$0xf] %vm3425, %v3181
      %v3457 = vld [vmem:[%s3418 + $0x38] sm:$0x1]
      %v3458 = vsel %vm3428, %v3182, %v3457
      %3459 = vst [vmem:[%s3418 + $0x38] sm:$0x1] %v3458
      %v3460 = vld [vmem:[%s3418 + $0x3c] sm:$0xf]
      %v3461 = vsel %vm3421, %v3189, %v3460
      %3462 = vst [vmem:[%s3418 + $0x3c] sm:$0xf] %v3461
      %3463 = vst.msk [vmem:[%s3418 + $0x40] sm:$0xf] %vm3425, %v3198
      %v3464 = vld [vmem:[%s3418 + $0x44] sm:$0x1]
      %v3465 = vsel %vm3428, %v3199, %v3464
      %3466 = vst [vmem:[%s3418 + $0x44] sm:$0x1] %v3465
      %v3467 = vld [vmem:[%s3418 + $0x48] sm:$0xf]
      %v3468 = vsel %vm3421, %v3206, %v3467
      %3469 = vst [vmem:[%s3418 + $0x48] sm:$0xf] %v3468
      %3470 = vst.msk [vmem:[%s3418 + $0x4c] sm:$0xf] %vm3425, %v3215
      %v3471 = vld [vmem:[%s3418 + $0x50] sm:$0x1]
      %v3472 = vsel %vm3428, %v3216, %v3471
      %3473 = vst [vmem:[%s3418 + $0x50] sm:$0x1] %v3472
      %v3474 = vld [vmem:[%s3418 + $0x54] sm:$0xf]
      %v3475 = vsel %vm3421, %v3223, %v3474
      %3476 = vst [vmem:[%s3418 + $0x54] sm:$0xf] %v3475
      %3477 = vst.msk [vmem:[%s3418 + $0x58] sm:$0xf] %vm3425, %v3232
      %v3478 = vld [vmem:[%s3418 + $0x5c] sm:$0x1]
      %v3479 = vsel %vm3428, %v3233, %v3478
      %3480 = vst [vmem:[%s3418 + $0x5c] sm:$0x1] %v3479
      %v3481 = vld [vmem:[%s3418 + $0x60] sm:$0xf]
      %v3482 = vsel %vm3421, %v3240, %v3481
      %3483 = vst [vmem:[%s3418 + $0x60] sm:$0xf] %v3482
      %3484 = vst.msk [vmem:[%s3418 + $0x64] sm:$0xf] %vm3425, %v3249
      %v3485 = vld [vmem:[%s3418 + $0x68] sm:$0x1]
      %v3486 = vsel %vm3428, %v3250, %v3485
      %3487 = vst [vmem:[%s3418 + $0x68] sm:$0x1] %v3486
      %v3488 = vld [vmem:[%s3418 + $0x6c] sm:$0xf]
      %v3489 = vsel %vm3421, %v3257, %v3488
      %3490 = vst [vmem:[%s3418 + $0x6c] sm:$0xf] %v3489
      %3491 = vst.msk [vmem:[%s3418 + $0x70] sm:$0xf] %vm3425, %v3266
      %v3492 = vld [vmem:[%s3418 + $0x74] sm:$0x1]
      %v3493 = vsel %vm3428, %v3267, %v3492
      %3494 = vst [vmem:[%s3418 + $0x74] sm:$0x1] %v3493
      %v3495 = vld [vmem:[%s3418 + $0x78] sm:$0xf]
      %v3496 = vsel %vm3421, %v3274, %v3495
      %3497 = vst [vmem:[%s3418 + $0x78] sm:$0xf] %v3496
      %3498 = vst.msk [vmem:[%s3418 + $0x7c] sm:$0xf] %vm3425, %v3283
      %v3499 = vld [vmem:[%s3418 + $0x80] sm:$0x1]
      %v3500 = vsel %vm3428, %v3284, %v3499
      %3501 = vst [vmem:[%s3418 + $0x80] sm:$0x1] %v3500
      %v3502 = vld [vmem:[%s3418 + $0x84] sm:$0xf]
      %v3503 = vsel %vm3421, %v3291, %v3502
      %3504 = vst [vmem:[%s3418 + $0x84] sm:$0xf] %v3503
      %3505 = vst.msk [vmem:[%s3418 + $0x88] sm:$0xf] %vm3425, %v3300
      %v3506 = vld [vmem:[%s3418 + $0x8c] sm:$0x1]
      %v3507 = vsel %vm3428, %v3301, %v3506
      %3508 = vst [vmem:[%s3418 + $0x8c] sm:$0x1] %v3507
      %v3509 = vld [vmem:[%s3418 + $0x90] sm:$0xf]
      %v3510 = vsel %vm3421, %v3308, %v3509
      %3511 = vst [vmem:[%s3418 + $0x90] sm:$0xf] %v3510
      %3512 = vst.msk [vmem:[%s3418 + $0x94] sm:$0xf] %vm3425, %v3317
      %v3513 = vld [vmem:[%s3418 + $0x98] sm:$0x1]
      %v3514 = vsel %vm3428, %v3318, %v3513
      %3515 = vst [vmem:[%s3418 + $0x98] sm:$0x1] %v3514
      %v3516 = vld [vmem:[%s3418 + $0x9c] sm:$0xf]
      %v3517 = vsel %vm3421, %v3325, %v3516
      %3518 = vst [vmem:[%s3418 + $0x9c] sm:$0xf] %v3517
      %3519 = vst.msk [vmem:[%s3418 + $0xa0] sm:$0xf] %vm3425, %v3334
      %v3520 = vld [vmem:[%s3418 + $0xa4] sm:$0x1]
      %v3521 = vsel %vm3428, %v3335, %v3520
      %3522 = vst [vmem:[%s3418 + $0xa4] sm:$0x1] %v3521
      %v3523 = vld [vmem:[%s3418 + $0xa8] sm:$0xf]
      %v3524 = vsel %vm3421, %v3342, %v3523
      %3525 = vst [vmem:[%s3418 + $0xa8] sm:$0xf] %v3524
      %3526 = vst.msk [vmem:[%s3418 + $0xac] sm:$0xf] %vm3425, %v3351
      %v3527 = vld [vmem:[%s3418 + $0xb0] sm:$0x1]
      %v3528 = vsel %vm3428, %v3352, %v3527
      %3529 = vst [vmem:[%s3418 + $0xb0] sm:$0x1] %v3528
      %v3530 = vld [vmem:[%s3418 + $0xb4] sm:$0xf]
      %v3531 = vsel %vm3421, %v3359, %v3530
      %3532 = vst [vmem:[%s3418 + $0xb4] sm:$0xf] %v3531
      %3533 = vst.msk [vmem:[%s3418 + $0xb8] sm:$0xf] %vm3425, %v3368
      %v3534 = vld [vmem:[%s3418 + $0xbc] sm:$0x1]
      %v3535 = vsel %vm3428, %v3369, %v3534
      %3536 = vst [vmem:[%s3418 + $0xbc] sm:$0x1] %v3535
      %v3537 = vld [vmem:[#allocation3] sm:$0xf]
      %v3538 = vsel %vm3421, %v3121, %v3537
      %3539 = vst [vmem:[#allocation3] sm:$0xf] %v3538
      %3540 = vst.msk [vmem:[#allocation3 + $0x4] sm:$0xf] %vm3425, %v3130
      %v3541 = vld [vmem:[#allocation3 + $0x8] sm:$0x1]
      %v3542 = vsel %vm3428, %v3131, %v3541
      %3543 = vst [vmem:[#allocation3 + $0x8] sm:$0x1] %v3542
      %s3544 = scalar_lea.vmem [#allocation3], 204
      %v3545 = vld [vmem:[%s3544] sm:$0xf]
      %v3546 = vsel %vm3421, %v3342, %v3545
      %3547 = vst [vmem:[%s3544] sm:$0xf] %v3546
      %3548 = vst.msk [vmem:[%s3544 + $0x4] sm:$0xf] %vm3425, %v3351
      %v3549 = vld [vmem:[%s3544 + $0x8] sm:$0x1]
      %v3550 = vsel %vm3428, %v3352, %v3549
      %3551 = vst [vmem:[%s3544 + $0x8] sm:$0x1] %v3550
      %v3552 = vld [vmem:[#allocation3] sm:$0x2]
      %v3553 = vld [vmem:[#allocation3 + $0xc] sm:$0x2]
      %v3554 = vld [vmem:[#allocation3 + $0x18] sm:$0x2]
      %v3555 = vld [vmem:[#allocation3 + $0x24] sm:$0x2]
      %v3556 = vld [vmem:[#allocation3 + $0x30] sm:$0x2]
      %v3557 = vld [vmem:[#allocation3 + $0x3c] sm:$0x2]
      %v3558 = vld [vmem:[#allocation3 + $0x48] sm:$0x2]
      %v3559 = vld [vmem:[#allocation3 + $0x54] sm:$0x2]
      %v3560 = vld [vmem:[#allocation3 + $0x60] sm:$0x2]
      %v3561 = vld [vmem:[#allocation3 + $0x6c] sm:$0x2]
      %v3562 = vld [vmem:[#allocation3 + $0x78] sm:$0x2]
      %v3563 = vld [vmem:[#allocation3 + $0x84] sm:$0x2]
      %v3564 = vld [vmem:[#allocation3 + $0x90] sm:$0x2]
      %v3565 = vld [vmem:[#allocation3 + $0x9c] sm:$0x2]
      %v3566 = vld [vmem:[#allocation3 + $0xa8] sm:$0x2]
      %v3567 = vld [vmem:[#allocation3 + $0xb4] sm:$0x2]
      %v3568 = vld [vmem:[#allocation3 + $0xc0] sm:$0x2]
      %v3569 = vld [vmem:[#allocation3 + $0xcc] sm:$0x2]
      %v3588 = vrot.slane %v3552, 5
      %v3589 = vrot.slane %v3588, 4
      %v3590 = vrot.slane %v3553, 5
      %v3591 = vrot.slane %v3590, 4
      %v3592 = vrot.slane %v3554, 5
      %v3593 = vrot.slane %v3592, 4
      %v3594 = vrot.slane %v3555, 5
      %v3595 = vrot.slane %v3594, 4
      %v3596 = vrot.slane %v3556, 5
      %v3597 = vrot.slane %v3596, 4
      %v3598 = vrot.slane %v3557, 5
      %v3599 = vrot.slane %v3598, 4
      %v3600 = vrot.slane %v3558, 5
      %v3601 = vrot.slane %v3600, 4
      %v3602 = vrot.slane %v3559, 5
      %v3603 = vrot.slane %v3602, 4
      %v3604 = vrot.slane %v3560, 5
      %v3605 = vrot.slane %v3604, 4
      %v3606 = vrot.slane %v3561, 5
      %v3607 = vrot.slane %v3606, 4
      %v3608 = vrot.slane %v3562, 5
      %v3609 = vrot.slane %v3608, 4
      %v3610 = vrot.slane %v3563, 5
      %v3611 = vrot.slane %v3610, 4
      %v3612 = vrot.slane %v3564, 5
      %v3613 = vrot.slane %v3612, 4
      %v3614 = vrot.slane %v3565, 5
      %v3615 = vrot.slane %v3614, 4
      %v3616 = vrot.slane %v3566, 5
      %v3617 = vrot.slane %v3616, 4
      %v3618 = vrot.slane %v3567, 5
      %v3619 = vrot.slane %v3618, 4
      %v3620 = vrot.slane %v3568, 5
      %v3621 = vrot.slane %v3620, 4
      %v3622 = vrot.slane %v3569, 5
      %v3623 = vrot.slane %v3622, 4
      %v3642 = vld [vmem:[#allocation3] sm:$0x1]
      %v3643 = vsel %vm3428, %v3589, %v3642
      %3644 = vst [vmem:[#allocation3] sm:$0x1] %v3643
      %v3645 = vld [vmem:[#allocation3 + $0xc] sm:$0x1]
      %v3646 = vsel %vm3428, %v3591, %v3645
      %3647 = vst [vmem:[#allocation3 + $0xc] sm:$0x1] %v3646
      %v3648 = vld [vmem:[#allocation3 + $0x18] sm:$0x1]
      %v3649 = vsel %vm3428, %v3593, %v3648
      %3650 = vst [vmem:[#allocation3 + $0x18] sm:$0x1] %v3649
      %v3651 = vld [vmem:[#allocation3 + $0x24] sm:$0x1]
      %v3652 = vsel %vm3428, %v3595, %v3651
      %3653 = vst [vmem:[#allocation3 + $0x24] sm:$0x1] %v3652
      %v3654 = vld [vmem:[#allocation3 + $0x30] sm:$0x1]
      %v3655 = vsel %vm3428, %v3597, %v3654
      %3656 = vst [vmem:[#allocation3 + $0x30] sm:$0x1] %v3655
      %v3657 = vld [vmem:[#allocation3 + $0x3c] sm:$0x1]
      %v3658 = vsel %vm3428, %v3599, %v3657
      %3659 = vst [vmem:[#allocation3 + $0x3c] sm:$0x1] %v3658
      %v3660 = vld [vmem:[#allocation3 + $0x48] sm:$0x1]
      %v3661 = vsel %vm3428, %v3601, %v3660
      %3662 = vst [vmem:[#allocation3 + $0x48] sm:$0x1] %v3661
      %v3663 = vld [vmem:[#allocation3 + $0x54] sm:$0x1]
      %v3664 = vsel %vm3428, %v3603, %v3663
      %3665 = vst [vmem:[#allocation3 + $0x54] sm:$0x1] %v3664
      %v3666 = vld [vmem:[#allocation3 + $0x60] sm:$0x1]
      %v3667 = vsel %vm3428, %v3605, %v3666
      %3668 = vst [vmem:[#allocation3 + $0x60] sm:$0x1] %v3667
      %v3669 = vld [vmem:[#allocation3 + $0x6c] sm:$0x1]
      %v3670 = vsel %vm3428, %v3607, %v3669
      %3671 = vst [vmem:[#allocation3 + $0x6c] sm:$0x1] %v3670
      %v3672 = vld [vmem:[#allocation3 + $0x78] sm:$0x1]
      %v3673 = vsel %vm3428, %v3609, %v3672
      %3674 = vst [vmem:[#allocation3 + $0x78] sm:$0x1] %v3673
      %v3675 = vld [vmem:[#allocation3 + $0x84] sm:$0x1]
      %v3676 = vsel %vm3428, %v3611, %v3675
      %3677 = vst [vmem:[#allocation3 + $0x84] sm:$0x1] %v3676
      %v3678 = vld [vmem:[#allocation3 + $0x90] sm:$0x1]
      %v3679 = vsel %vm3428, %v3613, %v3678
      %3680 = vst [vmem:[#allocation3 + $0x90] sm:$0x1] %v3679
      %v3681 = vld [vmem:[#allocation3 + $0x9c] sm:$0x1]
      %v3682 = vsel %vm3428, %v3615, %v3681
      %3683 = vst [vmem:[#allocation3 + $0x9c] sm:$0x1] %v3682
      %v3684 = vld [vmem:[#allocation3 + $0xa8] sm:$0x1]
      %v3685 = vsel %vm3428, %v3617, %v3684
      %3686 = vst [vmem:[#allocation3 + $0xa8] sm:$0x1] %v3685
      %v3687 = vld [vmem:[#allocation3 + $0xb4] sm:$0x1]
      %v3688 = vsel %vm3428, %v3619, %v3687
      %3689 = vst [vmem:[#allocation3 + $0xb4] sm:$0x1] %v3688
      %v3690 = vld [vmem:[#allocation3 + $0xc0] sm:$0x1]
      %v3691 = vsel %vm3428, %v3621, %v3690
      %3692 = vst [vmem:[#allocation3 + $0xc0] sm:$0x1] %v3691
      %v3693 = vld [vmem:[#allocation3 + $0xcc] sm:$0x1]
      %v3694 = vsel %vm3428, %v3623, %v3693
      %3695 = vst [vmem:[#allocation3 + $0xcc] sm:$0x1] %v3694
      %v3696 = vld [vmem:[#allocation3 + $0x4] sm:$0x8]
      %v3697 = vld [vmem:[#allocation3 + $0x10] sm:$0x8]
      %v3698 = vld [vmem:[#allocation3 + $0x1c] sm:$0x8]
      %v3699 = vld [vmem:[#allocation3 + $0x28] sm:$0x8]
      %v3700 = vld [vmem:[#allocation3 + $0x34] sm:$0x8]
      %v3701 = vld [vmem:[#allocation3 + $0x40] sm:$0x8]
      %v3702 = vld [vmem:[#allocation3 + $0x4c] sm:$0x8]
      %v3703 = vld [vmem:[#allocation3 + $0x58] sm:$0x8]
      %v3704 = vld [vmem:[#allocation3 + $0x64] sm:$0x8]
      %v3705 = vld [vmem:[#allocation3 + $0x70] sm:$0x8]
      %v3706 = vld [vmem:[#allocation3 + $0x7c] sm:$0x8]
      %v3707 = vld [vmem:[#allocation3 + $0x88] sm:$0x8]
      %v3708 = vld [vmem:[#allocation3 + $0x94] sm:$0x8]
      %v3709 = vld [vmem:[#allocation3 + $0xa0] sm:$0x8]
      %v3710 = vld [vmem:[#allocation3 + $0xac] sm:$0x8]
      %v3711 = vld [vmem:[#allocation3 + $0xb8] sm:$0x8]
      %v3712 = vld [vmem:[#allocation3 + $0xc4] sm:$0x8]
      %v3713 = vld [vmem:[#allocation3 + $0xd0] sm:$0x8]
      %v3732 = vrot.slane %v3696, 7
      %v3733 = vrot.slane %v3732, 4
      %v3734 = vrot.slane %v3697, 7
      %v3735 = vrot.slane %v3734, 4
      %v3736 = vrot.slane %v3698, 7
      %v3737 = vrot.slane %v3736, 4
      %v3738 = vrot.slane %v3699, 7
      %v3739 = vrot.slane %v3738, 4
      %v3740 = vrot.slane %v3700, 7
      %v3741 = vrot.slane %v3740, 4
      %v3742 = vrot.slane %v3701, 7
      %v3743 = vrot.slane %v3742, 4
      %v3744 = vrot.slane %v3702, 7
      %v3745 = vrot.slane %v3744, 4
      %v3746 = vrot.slane %v3703, 7
      %v3747 = vrot.slane %v3746, 4
      %v3748 = vrot.slane %v3704, 7
      %v3749 = vrot.slane %v3748, 4
      %v3750 = vrot.slane %v3705, 7
      %v3751 = vrot.slane %v3750, 4
      %v3752 = vrot.slane %v3706, 7
      %v3753 = vrot.slane %v3752, 4
      %v3754 = vrot.slane %v3707, 7
      %v3755 = vrot.slane %v3754, 4
      %v3756 = vrot.slane %v3708, 7
      %v3757 = vrot.slane %v3756, 4
      %v3758 = vrot.slane %v3709, 7
      %v3759 = vrot.slane %v3758, 4
      %v3760 = vrot.slane %v3710, 7
      %v3761 = vrot.slane %v3760, 4
      %v3762 = vrot.slane %v3711, 7
      %v3763 = vrot.slane %v3762, 4
      %v3764 = vrot.slane %v3712, 7
      %v3765 = vrot.slane %v3764, 4
      %v3766 = vrot.slane %v3713, 7
      %v3767 = vrot.slane %v3766, 4
      %vm3786 = vmand %vm3427, %vm3420
      %v3787 = vld [vmem:[#allocation3 + $0x8] sm:$0x1]
      %v3788 = vsel %vm3786, %v3733, %v3787
      %3789 = vst [vmem:[#allocation3 + $0x8] sm:$0x1] %v3788
      %v3790 = vld [vmem:[#allocation3 + $0x14] sm:$0x1]
      %v3791 = vsel %vm3786, %v3735, %v3790
      %3792 = vst [vmem:[#allocation3 + $0x14] sm:$0x1] %v3791
      %v3793 = vld [vmem:[#allocation3 + $0x20] sm:$0x1]
      %v3794 = vsel %vm3786, %v3737, %v3793
      %3795 = vst [vmem:[#allocation3 + $0x20] sm:$0x1] %v3794
      %v3796 = vld [vmem:[#allocation3 + $0x2c] sm:$0x1]
      %v3797 = vsel %vm3786, %v3739, %v3796
      %3798 = vst [vmem:[#allocation3 + $0x2c] sm:$0x1] %v3797
      %v3799 = vld [vmem:[#allocation3 + $0x38] sm:$0x1]
      %v3800 = vsel %vm3786, %v3741, %v3799
      %3801 = vst [vmem:[#allocation3 + $0x38] sm:$0x1] %v3800
      %v3802 = vld [vmem:[#allocation3 + $0x44] sm:$0x1]
      %v3803 = vsel %vm3786, %v3743, %v3802
      %3804 = vst [vmem:[#allocation3 + $0x44] sm:$0x1] %v3803
      %v3805 = vld [vmem:[#allocation3 + $0x50] sm:$0x1]
      %v3806 = vsel %vm3786, %v3745, %v3805
      %3807 = vst [vmem:[#allocation3 + $0x50] sm:$0x1] %v3806
      %v3808 = vld [vmem:[#allocation3 + $0x5c] sm:$0x1]
      %v3809 = vsel %vm3786, %v3747, %v3808
      %3810 = vst [vmem:[#allocation3 + $0x5c] sm:$0x1] %v3809
      %v3811 = vld [vmem:[#allocation3 + $0x68] sm:$0x1]
      %v3812 = vsel %vm3786, %v3749, %v3811
      %3813 = vst [vmem:[#allocation3 + $0x68] sm:$0x1] %v3812
      %v3814 = vld [vmem:[#allocation3 + $0x74] sm:$0x1]
      %v3815 = vsel %vm3786, %v3751, %v3814
      %3816 = vst [vmem:[#allocation3 + $0x74] sm:$0x1] %v3815
      %v3817 = vld [vmem:[#allocation3 + $0x80] sm:$0x1]
      %v3818 = vsel %vm3786, %v3753, %v3817
      %3819 = vst [vmem:[#allocation3 + $0x80] sm:$0x1] %v3818
      %v3820 = vld [vmem:[#allocation3 + $0x8c] sm:$0x1]
      %v3821 = vsel %vm3786, %v3755, %v3820
      %3822 = vst [vmem:[#allocation3 + $0x8c] sm:$0x1] %v3821
      %v3823 = vld [vmem:[#allocation3 + $0x98] sm:$0x1]
      %v3824 = vsel %vm3786, %v3757, %v3823
      %3825 = vst [vmem:[#allocation3 + $0x98] sm:$0x1] %v3824
      %v3826 = vld [vmem:[#allocation3 + $0xa4] sm:$0x1]
      %v3827 = vsel %vm3786, %v3759, %v3826
      %3828 = vst [vmem:[#allocation3 + $0xa4] sm:$0x1] %v3827
      %v3829 = vld [vmem:[#allocation3 + $0xb0] sm:$0x1]
      %v3830 = vsel %vm3786, %v3761, %v3829
      %3831 = vst [vmem:[#allocation3 + $0xb0] sm:$0x1] %v3830
      %v3832 = vld [vmem:[#allocation3 + $0xbc] sm:$0x1]
      %v3833 = vsel %vm3786, %v3763, %v3832
      %3834 = vst [vmem:[#allocation3 + $0xbc] sm:$0x1] %v3833
      %v3835 = vld [vmem:[#allocation3 + $0xc8] sm:$0x1]
      %v3836 = vsel %vm3786, %v3765, %v3835
      %3837 = vst [vmem:[#allocation3 + $0xc8] sm:$0x1] %v3836
      %v3838 = vld [vmem:[#allocation3 + $0xd4] sm:$0x1]
      %v3839 = vsel %vm3786, %v3767, %v3838
      %3840 = vst [vmem:[#allocation3 + $0xd4] sm:$0x1] %v3839
      %v3841 = vld [vmem:[#allocation3] sm:$0xf]
      %v3842 = vld [vmem:[#allocation3 + $0x4] sm:$0xf]
      %v3843 = vld [vmem:[#allocation3 + $0x8] sm:$0xf]
      %v3844 = vld [vmem:[#allocation3 + $0xc] sm:$0xf]
      %v3845 = vld [vmem:[#allocation3 + $0x10] sm:$0xf]
      %v3846 = vld [vmem:[#allocation3 + $0x14] sm:$0xf]
      %v3847 = vld [vmem:[#allocation3 + $0x18] sm:$0xf]
      %v3848 = vld [vmem:[#allocation3 + $0x1c] sm:$0xf]
      %v3849 = vld [vmem:[#allocation3 + $0x20] sm:$0xf]
      %v3850 = vld [vmem:[#allocation3 + $0x24] sm:$0xf]
      %v3851 = vld [vmem:[#allocation3 + $0x28] sm:$0xf]
      %v3852 = vld [vmem:[#allocation3 + $0x2c] sm:$0xf]
      %v3853 = vld [vmem:[#allocation3 + $0x30] sm:$0xf]
      %v3854 = vld [vmem:[#allocation3 + $0x34] sm:$0xf]
      %v3855 = vld [vmem:[#allocation3 + $0x38] sm:$0xf]
      %v3856 = vld [vmem:[#allocation3 + $0x3c] sm:$0xf]
      %v3857 = vld [vmem:[#allocation3 + $0x40] sm:$0xf]
      %v3858 = vld [vmem:[#allocation3 + $0x44] sm:$0xf]
      %v3859 = vld [vmem:[#allocation3 + $0x48] sm:$0xf]
      %v3860 = vld [vmem:[#allocation3 + $0x4c] sm:$0xf]
      %v3861 = vld [vmem:[#allocation3 + $0x50] sm:$0xf]
      %v3862 = vld [vmem:[#allocation3 + $0x54] sm:$0xf]
      %v3863 = vld [vmem:[#allocation3 + $0x58] sm:$0xf]
      %v3864 = vld [vmem:[#allocation3 + $0x5c] sm:$0xf]
      %v3865 = vld [vmem:[#allocation3 + $0x60] sm:$0xf]
      %v3866 = vld [vmem:[#allocation3 + $0x64] sm:$0xf]
      %v3867 = vld [vmem:[#allocation3 + $0x68] sm:$0xf]
      %v3868 = vld [vmem:[#allocation3 + $0x6c] sm:$0xf]
      %v3869 = vld [vmem:[#allocation3 + $0x70] sm:$0xf]
      %v3870 = vld [vmem:[#allocation3 + $0x74] sm:$0xf]
      %v3871 = vld [vmem:[#allocation3 + $0x78] sm:$0xf]
      %v3872 = vld [vmem:[#allocation3 + $0x7c] sm:$0xf]
      %v3873 = vld [vmem:[#allocation3 + $0x80] sm:$0xf]
      %v3874 = vld [vmem:[#allocation3 + $0x84] sm:$0xf]
      %v3875 = vld [vmem:[#allocation3 + $0x88] sm:$0xf]
      %v3876 = vld [vmem:[#allocation3 + $0x8c] sm:$0xf]
      %v3877 = vld [vmem:[#allocation3 + $0x90] sm:$0xf]
      %v3878 = vld [vmem:[#allocation3 + $0x94] sm:$0xf]
      %v3879 = vld [vmem:[#allocation3 + $0x98] sm:$0xf]
      %v3880 = vld [vmem:[#allocation3 + $0x9c] sm:$0xf]
      %v3881 = vld [vmem:[#allocation3 + $0xa0] sm:$0xf]
      %v3882 = vld [vmem:[#allocation3 + $0xa4] sm:$0xf]
      %v3883 = vld [vmem:[#allocation3 + $0xa8] sm:$0xf]
      %v3884 = vld [vmem:[#allocation3 + $0xac] sm:$0xf]
      %v3885 = vld [vmem:[#allocation3 + $0xb0] sm:$0xf]
      %v3886 = vld [vmem:[#allocation3 + $0xb4] sm:$0xf]
      %v3887 = vld [vmem:[#allocation3 + $0xb8] sm:$0xf]
      %v3888 = vld [vmem:[#allocation3 + $0xbc] sm:$0xf]
      %v3921 = vunpack.c.l.b16 %v3841
      %v3922 = vunpack.c.l.b16 %v3842
      %v3923 = vunpack.c.l.b16 %v3844
      %v3924 = vunpack.c.l.b16 %v3845
      %v3925 = vunpack.c.l.b16 %v3847
      %v3926 = vunpack.c.l.b16 %v3848
      %v3927 = vunpack.c.l.b16 %v3850
      %v3928 = vunpack.c.l.b16 %v3851
      %v3929 = vunpack.c.l.b16 %v3853
      %v3930 = vunpack.c.l.b16 %v3854
      %v3931 = vunpack.c.l.b16 %v3856
      %v3932 = vunpack.c.l.b16 %v3857
      %v3933 = vunpack.c.l.b16 %v3859
      %v3934 = vunpack.c.l.b16 %v3860
      %v3935 = vunpack.c.l.b16 %v3862
      %v3936 = vunpack.c.l.b16 %v3863
      %v3937 = vunpack.c.l.b16 %v3865
      %v3938 = vunpack.c.l.b16 %v3866
      %v3939 = vunpack.c.l.b16 %v3868
      %v3940 = vunpack.c.l.b16 %v3869
      %v3941 = vunpack.c.l.b16 %v3871
      %v3942 = vunpack.c.l.b16 %v3872
      %v3943 = vunpack.c.l.b16 %v3874
      %v3944 = vunpack.c.l.b16 %v3875
      %v3945 = vunpack.c.l.b16 %v3877
      %v3946 = vunpack.c.l.b16 %v3878
      %v3947 = vunpack.c.l.b16 %v3880
      %v3948 = vunpack.c.l.b16 %v3881
      %v3949 = vunpack.c.l.b16 %v3883
      %v3950 = vunpack.c.l.b16 %v3884
      %v3951 = vunpack.c.l.b16 %v3886
      %v3952 = vunpack.c.l.b16 %v3887
      %v3953 = vpack.c.b16 %v3922, %v3921
      %v3954 = vpack.c.b16 %v3924, %v3923
      %v3955 = vpack.c.b16 %v3926, %v3925
      %v3956 = vpack.c.b16 %v3928, %v3927
      %v3957 = vpack.c.b16 %v3930, %v3929
      %v3958 = vpack.c.b16 %v3932, %v3931
      %v3959 = vpack.c.b16 %v3934, %v3933
      %v3960 = vpack.c.b16 %v3936, %v3935
      %v3961 = vpack.c.b16 %v3938, %v3937
      %v3962 = vpack.c.b16 %v3940, %v3939
      %v3963 = vpack.c.b16 %v3942, %v3941
      %v3964 = vpack.c.b16 %v3944, %v3943
      %v3965 = vpack.c.b16 %v3946, %v3945
      %v3966 = vpack.c.b16 %v3948, %v3947
      %v3967 = vpack.c.b16 %v3950, %v3949
      %v3968 = vpack.c.b16 %v3952, %v3951
      %v3985 = vunpack.c.l.b16 %v3843
      %v3986 = vunpack.c.l.b16 %v3846
      %v3987 = vunpack.c.l.b16 %v3849
      %v3988 = vunpack.c.l.b16 %v3852
      %v3989 = vunpack.c.l.b16 %v3855
      %v3990 = vunpack.c.l.b16 %v3858
      %v3991 = vunpack.c.l.b16 %v3861
      %v3992 = vunpack.c.l.b16 %v3864
      %v3993 = vunpack.c.l.b16 %v3867
      %v3994 = vunpack.c.l.b16 %v3870
      %v3995 = vunpack.c.l.b16 %v3873
      %v3996 = vunpack.c.l.b16 %v3876
      %v3997 = vunpack.c.l.b16 %v3879
      %v3998 = vunpack.c.l.b16 %v3882
      %v3999 = vunpack.c.l.b16 %v3885
      %v4000 = vunpack.c.l.b16 %v3888
      %v4001 = vpack.c.b16 %v3985, %v3985
      %v4002 = vpack.c.b16 %v3986, %v3986
      %v4003 = vpack.c.b16 %v3987, %v3987
      %v4004 = vpack.c.b16 %v3988, %v3988
      %v4005 = vpack.c.b16 %v3989, %v3989
      %v4006 = vpack.c.b16 %v3990, %v3990
      %v4007 = vpack.c.b16 %v3991, %v3991
      %v4008 = vpack.c.b16 %v3992, %v3992
      %v4009 = vpack.c.b16 %v3993, %v3993
      %v4010 = vpack.c.b16 %v3994, %v3994
      %v4011 = vpack.c.b16 %v3995, %v3995
      %v4012 = vpack.c.b16 %v3996, %v3996
      %v4013 = vpack.c.b16 %v3997, %v3997
      %v4014 = vpack.c.b16 %v3998, %v3998
      %v4015 = vpack.c.b16 %v3999, %v3999
      %v4016 = vpack.c.b16 %v4000, %v4000
      %v4018 = vshrl.u32 %v3953, 16
      %v4020 = vshll.u32 %v3953, 16
      %v4022 = vrot.slane %v4020, 1
      %v4023 = vor.u32 %v4018, %v4022
      %v4025 = vshll.u32 %v4001, 16
      %v4027 = vrot.slane %v4025, 1
      %v4028 = vsel %vm395, %v4023, %v4027
      %v4030 = vshrl.u32 %v3954, 16
      %v4032 = vshll.u32 %v3954, 16
      %v4034 = vrot.slane %v4032, 1
      %v4035 = vor.u32 %v4030, %v4034
      %v4037 = vshll.u32 %v4002, 16
      %v4039 = vrot.slane %v4037, 1
      %v4040 = vsel %vm395, %v4035, %v4039
      %v4042 = vshrl.u32 %v3955, 16
      %v4044 = vshll.u32 %v3955, 16
      %v4046 = vrot.slane %v4044, 1
      %v4047 = vor.u32 %v4042, %v4046
      %v4049 = vshll.u32 %v4003, 16
      %v4051 = vrot.slane %v4049, 1
      %v4052 = vsel %vm395, %v4047, %v4051
      %v4054 = vshrl.u32 %v3956, 16
      %v4056 = vshll.u32 %v3956, 16
      %v4058 = vrot.slane %v4056, 1
      %v4059 = vor.u32 %v4054, %v4058
      %v4061 = vshll.u32 %v4004, 16
      %v4063 = vrot.slane %v4061, 1
      %v4064 = vsel %vm395, %v4059, %v4063
      %v4066 = vshrl.u32 %v3957, 16
      %v4068 = vshll.u32 %v3957, 16
      %v4070 = vrot.slane %v4068, 1
      %v4071 = vor.u32 %v4066, %v4070
      %v4073 = vshll.u32 %v4005, 16
      %v4075 = vrot.slane %v4073, 1
      %v4076 = vsel %vm395, %v4071, %v4075
      %v4078 = vshrl.u32 %v3958, 16
      %v4080 = vshll.u32 %v3958, 16
      %v4082 = vrot.slane %v4080, 1
      %v4083 = vor.u32 %v4078, %v4082
      %v4085 = vshll.u32 %v4006, 16
      %v4087 = vrot.slane %v4085, 1
      %v4088 = vsel %vm395, %v4083, %v4087
      %v4090 = vshrl.u32 %v3959, 16
      %v4092 = vshll.u32 %v3959, 16
      %v4094 = vrot.slane %v4092, 1
      %v4095 = vor.u32 %v4090, %v4094
      %v4097 = vshll.u32 %v4007, 16
      %v4099 = vrot.slane %v4097, 1
      %v4100 = vsel %vm395, %v4095, %v4099
      %v4102 = vshrl.u32 %v3960, 16
      %v4104 = vshll.u32 %v3960, 16
      %v4106 = vrot.slane %v4104, 1
      %v4107 = vor.u32 %v4102, %v4106
      %v4109 = vshll.u32 %v4008, 16
      %v4111 = vrot.slane %v4109, 1
      %v4112 = vsel %vm395, %v4107, %v4111
      %v4114 = vshrl.u32 %v3961, 16
      %v4116 = vshll.u32 %v3961, 16
      %v4118 = vrot.slane %v4116, 1
      %v4119 = vor.u32 %v4114, %v4118
      %v4121 = vshll.u32 %v4009, 16
      %v4123 = vrot.slane %v4121, 1
      %v4124 = vsel %vm395, %v4119, %v4123
      %v4126 = vshrl.u32 %v3962, 16
      %v4128 = vshll.u32 %v3962, 16
      %v4130 = vrot.slane %v4128, 1
      %v4131 = vor.u32 %v4126, %v4130
      %v4133 = vshll.u32 %v4010, 16
      %v4135 = vrot.slane %v4133, 1
      %v4136 = vsel %vm395, %v4131, %v4135
      %v4138 = vshrl.u32 %v3963, 16
      %v4140 = vshll.u32 %v3963, 16
      %v4142 = vrot.slane %v4140, 1
      %v4143 = vor.u32 %v4138, %v4142
      %v4145 = vshll.u32 %v4011, 16
      %v4147 = vrot.slane %v4145, 1
      %v4148 = vsel %vm395, %v4143, %v4147
      %v4150 = vshrl.u32 %v3964, 16
      %v4152 = vshll.u32 %v3964, 16
      %v4154 = vrot.slane %v4152, 1
      %v4155 = vor.u32 %v4150, %v4154
      %v4157 = vshll.u32 %v4012, 16
      %v4159 = vrot.slane %v4157, 1
      %v4160 = vsel %vm395, %v4155, %v4159
      %v4162 = vshrl.u32 %v3965, 16
      %v4164 = vshll.u32 %v3965, 16
      %v4166 = vrot.slane %v4164, 1
      %v4167 = vor.u32 %v4162, %v4166
      %v4169 = vshll.u32 %v4013, 16
      %v4171 = vrot.slane %v4169, 1
      %v4172 = vsel %vm395, %v4167, %v4171
      %v4174 = vshrl.u32 %v3966, 16
      %v4176 = vshll.u32 %v3966, 16
      %v4178 = vrot.slane %v4176, 1
      %v4179 = vor.u32 %v4174, %v4178
      %v4181 = vshll.u32 %v4014, 16
      %v4183 = vrot.slane %v4181, 1
      %v4184 = vsel %vm395, %v4179, %v4183
      %v4186 = vshrl.u32 %v3967, 16
      %v4188 = vshll.u32 %v3967, 16
      %v4190 = vrot.slane %v4188, 1
      %v4191 = vor.u32 %v4186, %v4190
      %v4193 = vshll.u32 %v4015, 16
      %v4195 = vrot.slane %v4193, 1
      %v4196 = vsel %vm395, %v4191, %v4195
      %v4198 = vshrl.u32 %v3968, 16
      %v4200 = vshll.u32 %v3968, 16
      %v4202 = vrot.slane %v4200, 1
      %v4203 = vor.u32 %v4198, %v4202
      %v4205 = vshll.u32 %v4016, 16
      %v4207 = vrot.slane %v4205, 1
      %v4208 = vsel %vm395, %v4203, %v4207
      %4209 = vrot.lane.b32.xlu0 %v4028, 4
      %v4210 = vpop.permute.xlu0 %4209
      %4211 = vrot.lane.b32.xlu0 %v4040, 4
      %v4212 = vpop.permute.xlu0 %4211
      %4213 = vrot.lane.b32.xlu0 %v4052, 4
      %v4214 = vpop.permute.xlu0 %4213
      %4215 = vrot.lane.b32.xlu0 %v4064, 4
      %v4216 = vpop.permute.xlu0 %4215
      %4217 = vrot.lane.b32.xlu0 %v4076, 4
      %v4218 = vpop.permute.xlu0 %4217
      %4219 = vrot.lane.b32.xlu0 %v4088, 4
      %v4220 = vpop.permute.xlu0 %4219
      %4221 = vrot.lane.b32.xlu0 %v4100, 4
      %v4222 = vpop.permute.xlu0 %4221
      %4223 = vrot.lane.b32.xlu0 %v4112, 4
      %v4224 = vpop.permute.xlu0 %4223
      %4225 = vrot.lane.b32.xlu0 %v4124, 4
      %v4226 = vpop.permute.xlu0 %4225
      %4227 = vrot.lane.b32.xlu0 %v4136, 4
      %v4228 = vpop.permute.xlu0 %4227
      %4229 = vrot.lane.b32.xlu0 %v4148, 4
      %v4230 = vpop.permute.xlu0 %4229
      %4231 = vrot.lane.b32.xlu0 %v4160, 4
      %v4232 = vpop.permute.xlu0 %4231
      %4233 = vrot.lane.b32.xlu0 %v4172, 4
      %v4234 = vpop.permute.xlu0 %4233
      %4235 = vrot.lane.b32.xlu0 %v4184, 4
      %v4236 = vpop.permute.xlu0 %4235
      %4237 = vrot.lane.b32.xlu0 %v4196, 4
      %v4238 = vpop.permute.xlu0 %4237
      %4239 = vrot.lane.b32.xlu0 %v4208, 4
      %v4240 = vpop.permute.xlu0 %4239
      %v4241 = vrot.slane %v3953, 1
      %v4242 = vrot.slane %v4001, 1
      %v4243 = vsel %vm620, %v4241, %v4242
      %v4244 = vrot.slane %v3954, 1
      %v4245 = vrot.slane %v4002, 1
      %v4246 = vsel %vm620, %v4244, %v4245
      %v4247 = vrot.slane %v3955, 1
      %v4248 = vrot.slane %v4003, 1
      %v4249 = vsel %vm620, %v4247, %v4248
      %v4250 = vrot.slane %v3956, 1
      %v4251 = vrot.slane %v4004, 1
      %v4252 = vsel %vm620, %v4250, %v4251
      %v4253 = vrot.slane %v3957, 1
      %v4254 = vrot.slane %v4005, 1
      %v4255 = vsel %vm620, %v4253, %v4254
      %v4256 = vrot.slane %v3958, 1
      %v4257 = vrot.slane %v4006, 1
      %v4258 = vsel %vm620, %v4256, %v4257
      %v4259 = vrot.slane %v3959, 1
      %v4260 = vrot.slane %v4007, 1
      %v4261 = vsel %vm620, %v4259, %v4260
      %v4262 = vrot.slane %v3960, 1
      %v4263 = vrot.slane %v4008, 1
      %v4264 = vsel %vm620, %v4262, %v4263
      %v4265 = vrot.slane %v3961, 1
      %v4266 = vrot.slane %v4009, 1
      %v4267 = vsel %vm620, %v4265, %v4266
      %v4268 = vrot.slane %v3962, 1
      %v4269 = vrot.slane %v4010, 1
      %v4270 = vsel %vm620, %v4268, %v4269
      %v4271 = vrot.slane %v3963, 1
      %v4272 = vrot.slane %v4011, 1
      %v4273 = vsel %vm620, %v4271, %v4272
      %v4274 = vrot.slane %v3964, 1
      %v4275 = vrot.slane %v4012, 1
      %v4276 = vsel %vm620, %v4274, %v4275
      %v4277 = vrot.slane %v3965, 1
      %v4278 = vrot.slane %v4013, 1
      %v4279 = vsel %vm620, %v4277, %v4278
      %v4280 = vrot.slane %v3966, 1
      %v4281 = vrot.slane %v4014, 1
      %v4282 = vsel %vm620, %v4280, %v4281
      %v4283 = vrot.slane %v3967, 1
      %v4284 = vrot.slane %v4015, 1
      %v4285 = vsel %vm620, %v4283, %v4284
      %v4286 = vrot.slane %v3968, 1
      %v4287 = vrot.slane %v4016, 1
      %v4288 = vsel %vm620, %v4286, %v4287
      %4289 = vrot.lane.b32.xlu0 %v4243, 8
      %v4290 = vpop.permute.xlu0 %4289
      %4291 = vrot.lane.b32.xlu0 %v4246, 8
      %v4292 = vpop.permute.xlu0 %4291
      %4293 = vrot.lane.b32.xlu0 %v4249, 8
      %v4294 = vpop.permute.xlu0 %4293
      %4295 = vrot.lane.b32.xlu0 %v4252, 8
      %v4296 = vpop.permute.xlu0 %4295
      %4297 = vrot.lane.b32.xlu0 %v4255, 8
      %v4298 = vpop.permute.xlu0 %4297
      %4299 = vrot.lane.b32.xlu0 %v4258, 8
      %v4300 = vpop.permute.xlu0 %4299
      %4301 = vrot.lane.b32.xlu0 %v4261, 8
      %v4302 = vpop.permute.xlu0 %4301
      %4303 = vrot.lane.b32.xlu0 %v4264, 8
      %v4304 = vpop.permute.xlu0 %4303
      %4305 = vrot.lane.b32.xlu0 %v4267, 8
      %v4306 = vpop.permute.xlu0 %4305
      %4307 = vrot.lane.b32.xlu0 %v4270, 8
      %v4308 = vpop.permute.xlu0 %4307
      %4309 = vrot.lane.b32.xlu0 %v4273, 8
      %v4310 = vpop.permute.xlu0 %4309
      %4311 = vrot.lane.b32.xlu0 %v4276, 8
      %v4312 = vpop.permute.xlu0 %4311
      %4313 = vrot.lane.b32.xlu0 %v4279, 8
      %v4314 = vpop.permute.xlu0 %4313
      %4315 = vrot.lane.b32.xlu0 %v4282, 8
      %v4316 = vpop.permute.xlu0 %4315
      %4317 = vrot.lane.b32.xlu0 %v4285, 8
      %v4318 = vpop.permute.xlu0 %4317
      %4319 = vrot.lane.b32.xlu0 %v4288, 8
      %v4320 = vpop.permute.xlu0 %4319
      %v4322 = vsel %vm701, %v3953, %v4210
      %v4324 = vsel %vm701, %v3954, %v4212
      %v4326 = vsel %vm701, %v3955, %v4214
      %v4328 = vsel %vm701, %v3956, %v4216
      %v4330 = vsel %vm701, %v3957, %v4218
      %v4332 = vsel %vm701, %v3958, %v4220
      %v4334 = vsel %vm701, %v3959, %v4222
      %v4336 = vsel %vm701, %v3960, %v4224
      %v4338 = vsel %vm701, %v3961, %v4226
      %v4340 = vsel %vm701, %v3962, %v4228
      %v4342 = vsel %vm701, %v3963, %v4230
      %v4344 = vsel %vm701, %v3964, %v4232
      %v4346 = vsel %vm701, %v3965, %v4234
      %v4348 = vsel %vm701, %v3966, %v4236
      %v4350 = vsel %vm701, %v3967, %v4238
      %v4352 = vsel %vm701, %v3968, %v4240
      %v4354 = vsel %vm734, %v4322, %v4290
      %v4356 = vsel %vm734, %v4324, %v4292
      %v4358 = vsel %vm734, %v4326, %v4294
      %v4360 = vsel %vm734, %v4328, %v4296
      %v4362 = vsel %vm734, %v4330, %v4298
      %v4364 = vsel %vm734, %v4332, %v4300
      %v4366 = vsel %vm734, %v4334, %v4302
      %v4368 = vsel %vm734, %v4336, %v4304
      %v4370 = vsel %vm734, %v4338, %v4306
      %v4372 = vsel %vm734, %v4340, %v4308
      %v4374 = vsel %vm734, %v4342, %v4310
      %v4376 = vsel %vm734, %v4344, %v4312
      %v4378 = vsel %vm734, %v4346, %v4314
      %v4380 = vsel %vm734, %v4348, %v4316
      %v4382 = vsel %vm734, %v4350, %v4318
      %v4384 = vsel %vm734, %v4352, %v4320
      %v4385 = vld [vmem:[%s3] sm:$0xf]
      %v4386 = vld [vmem:[%s3 + $0x4] sm:$0x3]
      %v4389 = vunpack.c.l.b16 %v4385
      %v4390 = vunpack.c.l.b16 %v4386
      %v4391 = vpack.c.b16 %v4390, %v4389
      %v4392 = vsel %vm774, %v4354, 0
      %v4394 = vsel %vm774, %v4356, 0
      %v4396 = vsel %vm774, %v4358, 0
      %v4398 = vsel %vm774, %v4360, 0
      %v4400 = vsel %vm774, %v4362, 0
      %v4402 = vsel %vm774, %v4364, 0
      %v4404 = vsel %vm774, %v4366, 0
      %v4406 = vsel %vm774, %v4368, 0
      %v4408 = vsel %vm774, %v4370, 0
      %v4410 = vsel %vm774, %v4372, 0
      %v4412 = vsel %vm774, %v4374, 0
      %v4414 = vsel %vm774, %v4376, 0
      %v4416 = vsel %vm774, %v4378, 0
      %v4418 = vsel %vm774, %v4380, 0
      %v4420 = vsel %vm774, %v4382, 0
      %v4422 = vsel %vm774, %v4384, 0
      %v4425 = vsel %vm807, %v4391, 0
      %4427 = vmatprep.subr.bf16.mxu0 0
      %4428 = vmatpush1.bf16.msra.mxu0 %v4425
      %4429 = vmatprep.subr.bf16.mxu0 0
      %4430 = vmatpush1.bf16.msra.mxu0 0
      %4431 = vmatprep.subr.bf16.mxu0 0
      %4432 = vmatpush1.bf16.msra.mxu0 0
      %4433 = vmatprep.subr.bf16.mxu0 0
      %4434 = vmatpush1.bf16.msra.mxu0 0
      %4435 = vmatprep.subr.bf16.mxu0 0
      %4436 = vmatpush1.bf16.msra.mxu0 0
      %4437 = vmatprep.subr.bf16.mxu0 0
      %4438 = vmatpush1.bf16.msra.mxu0 0
      %4439 = vmatprep.subr.bf16.mxu0 0
      %4440 = vmatpush1.bf16.msra.mxu0 0
      %4441 = vmatprep.subr.bf16.mxu0 0
      %4442 = vmatpush1.bf16.msra.mxu0 0
      %4443 = vmatprep.subr.bf16.mxu0 0
      %4444 = vmatpush1.bf16.msra.mxu0 0
      %4445 = vmatprep.subr.bf16.mxu0 0
      %4446 = vmatpush1.bf16.msra.mxu0 0
      %4447 = vmatprep.subr.bf16.mxu0 0
      %4448 = vmatpush1.bf16.msra.mxu0 0
      %4449 = vmatprep.subr.bf16.mxu0 0
      %4450 = vmatpush1.bf16.msra.mxu0 0
      %4451 = vmatprep.subr.bf16.mxu0 0
      %4452 = vmatpush1.bf16.msra.mxu0 0
      %4453 = vmatprep.subr.bf16.mxu0 0
      %4454 = vmatpush1.bf16.msra.mxu0 0
      %4455 = vmatprep.subr.bf16.mxu0 0
      %4456 = vmatpush1.bf16.msra.mxu0 0
      %4457 = vmatprep.subr.bf16.mxu0 0
      %4458 = vmatpush1.bf16.msra.mxu0 0
      %4459 = vmatprep.mubr.bf16.mxu0 0
      %4460 = vmatmul.mubr.bf16.gmra.mrb[0].mxu0 %v4392
      %v4461 = vpop.f32.mrb[0].mxu0
      %v4462 = vadd.f32 0.0, %v4461
      %v4463 = vpop.f32.mrb[0].mxu0
      %v4464 = vpop.f32.mrb[0].mxu0
      %v4465 = vadd.f32 0.0, %v4464
      %v4466 = vpop.f32.mrb[0].mxu0
      %4467 = vmatprep.mubr.bf16.mxu0 0
      %4468 = vmatmul.mubr.bf16.gmra.mrb[0].mxu0 %v4394
      %v4469 = vpop.f32.mrb[0].mxu0
      %v4470 = vadd.f32 0.0, %v4469
      %v4471 = vpop.f32.mrb[0].mxu0
      %v4472 = vpop.f32.mrb[0].mxu0
      %v4473 = vadd.f32 0.0, %v4472
      %v4474 = vpop.f32.mrb[0].mxu0
      %4475 = vmatprep.mubr.bf16.mxu0 0
      %4476 = vmatmul.mubr.bf16.gmra.mrb[0].mxu0 %v4396
      %v4477 = vpop.f32.mrb[0].mxu0
      %v4478 = vadd.f32 0.0, %v4477
      %v4479 = vpop.f32.mrb[0].mxu0
      %v4480 = vpop.f32.mrb[0].mxu0
      %v4481 = vadd.f32 0.0, %v4480
      %v4482 = vpop.f32.mrb[0].mxu0
      %4483 = vmatprep.mubr.bf16.mxu0 0
      %4484 = vmatmul.mubr.bf16.gmra.mrb[0].mxu0 %v4398
      %v4485 = vpop.f32.mrb[0].mxu0
      %v4486 = vadd.f32 0.0, %v4485
      %v4487 = vpop.f32.mrb[0].mxu0
      %v4488 = vpop.f32.mrb[0].mxu0
      %v4489 = vadd.f32 0.0, %v4488
      %v4490 = vpop.f32.mrb[0].mxu0
      %4491 = vmatprep.mubr.bf16.mxu0 0
      %4492 = vmatmul.mubr.bf16.gmra.mrb[0].mxu0 %v4400
      %v4493 = vpop.f32.mrb[0].mxu0
      %v4494 = vadd.f32 0.0, %v4493
      %v4495 = vpop.f32.mrb[0].mxu0
      %v4496 = vpop.f32.mrb[0].mxu0
      %v4497 = vadd.f32 0.0, %v4496
      %v4498 = vpop.f32.mrb[0].mxu0
      %4499 = vmatprep.mubr.bf16.mxu0 0
      %4500 = vmatmul.mubr.bf16.gmra.mrb[0].mxu0 %v4402
      %v4501 = vpop.f32.mrb[0].mxu0
      %v4502 = vadd.f32 0.0, %v4501
      %v4503 = vpop.f32.mrb[0].mxu0
      %v4504 = vpop.f32.mrb[0].mxu0
      %v4505 = vadd.f32 0.0, %v4504
      %v4506 = vpop.f32.mrb[0].mxu0
      %4507 = vmatprep.mubr.bf16.mxu0 0
      %4508 = vmatmul.mubr.bf16.gmra.mrb[0].mxu0 %v4404
      %v4509 = vpop.f32.mrb[0].mxu0
      %v4510 = vadd.f32 0.0, %v4509
      %v4511 = vpop.f32.mrb[0].mxu0
      %v4512 = vpop.f32.mrb[0].mxu0
      %v4513 = vadd.f32 0.0, %v4512
      %v4514 = vpop.f32.mrb[0].mxu0
      %4515 = vmatprep.mubr.bf16.mxu0 0
      %4516 = vmatmul.mubr.bf16.gmra.mrb[0].mxu0 %v4406
      %v4517 = vpop.f32.mrb[0].mxu0
      %v4518 = vadd.f32 0.0, %v4517
      %v4519 = vpop.f32.mrb[0].mxu0
      %v4520 = vpop.f32.mrb[0].mxu0
      %v4521 = vadd.f32 0.0, %v4520
      %v4522 = vpop.f32.mrb[0].mxu0
      %4523 = vmatprep.mubr.bf16.mxu0 0
      %4524 = vmatmul.mubr.bf16.gmra.mrb[0].mxu0 %v4408
      %v4525 = vpop.f32.mrb[0].mxu0
      %v4526 = vadd.f32 0.0, %v4525
      %v4527 = vpop.f32.mrb[0].mxu0
      %v4528 = vpop.f32.mrb[0].mxu0
      %v4529 = vadd.f32 0.0, %v4528
      %v4530 = vpop.f32.mrb[0].mxu0
      %4531 = vmatprep.mubr.bf16.mxu0 0
      %4532 = vmatmul.mubr.bf16.gmra.mrb[0].mxu0 %v4410
      %v4533 = vpop.f32.mrb[0].mxu0
      %v4534 = vadd.f32 0.0, %v4533
      %v4535 = vpop.f32.mrb[0].mxu0
      %v4536 = vpop.f32.mrb[0].mxu0
      %v4537 = vadd.f32 0.0, %v4536
      %v4538 = vpop.f32.mrb[0].mxu0
      %4539 = vmatprep.mubr.bf16.mxu0 0
      %4540 = vmatmul.mubr.bf16.gmra.mrb[0].mxu0 %v4412
      %v4541 = vpop.f32.mrb[0].mxu0
      %v4542 = vadd.f32 0.0, %v4541
      %v4543 = vpop.f32.mrb[0].mxu0
      %v4544 = vpop.f32.mrb[0].mxu0
      %v4545 = vadd.f32 0.0, %v4544
      %v4546 = vpop.f32.mrb[0].mxu0
      %4547 = vmatprep.mubr.bf16.mxu0 0
      %4548 = vmatmul.mubr.bf16.gmra.mrb[0].mxu0 %v4414
      %v4549 = vpop.f32.mrb[0].mxu0
      %v4550 = vadd.f32 0.0, %v4549
      %v4551 = vpop.f32.mrb[0].mxu0
      %v4552 = vpop.f32.mrb[0].mxu0
      %v4553 = vadd.f32 0.0, %v4552
      %v4554 = vpop.f32.mrb[0].mxu0
      %4555 = vmatprep.mubr.bf16.mxu0 0
      %4556 = vmatmul.mubr.bf16.gmra.mrb[0].mxu0 %v4416
      %v4557 = vpop.f32.mrb[0].mxu0
      %v4558 = vadd.f32 0.0, %v4557
      %v4559 = vpop.f32.mrb[0].mxu0
      %v4560 = vpop.f32.mrb[0].mxu0
      %v4561 = vadd.f32 0.0, %v4560
      %v4562 = vpop.f32.mrb[0].mxu0
      %4563 = vmatprep.mubr.bf16.mxu0 0
      %4564 = vmatmul.mubr.bf16.gmra.mrb[0].mxu0 %v4418
      %v4565 = vpop.f32.mrb[0].mxu0
      %v4566 = vadd.f32 0.0, %v4565
      %v4567 = vpop.f32.mrb[0].mxu0
      %v4568 = vpop.f32.mrb[0].mxu0
      %v4569 = vadd.f32 0.0, %v4568
      %v4570 = vpop.f32.mrb[0].mxu0
      %4571 = vmatprep.mubr.bf16.mxu0 0
      %4572 = vmatmul.mubr.bf16.gmra.mrb[0].mxu0 %v4420
      %v4573 = vpop.f32.mrb[0].mxu0
      %v4574 = vadd.f32 0.0, %v4573
      %v4575 = vpop.f32.mrb[0].mxu0
      %v4576 = vpop.f32.mrb[0].mxu0
      %v4577 = vadd.f32 0.0, %v4576
      %v4578 = vpop.f32.mrb[0].mxu0
      %4579 = vmatprep.mubr.bf16.mxu0 0
      %4580 = vmatmul.mubr.bf16.gmra.mrb[0].mxu0 %v4422
      %v4581 = vpop.f32.mrb[0].mxu0
      %v4582 = vadd.f32 0.0, %v4581
      %v4583 = vpop.f32.mrb[0].mxu0
      %v4584 = vpop.f32.mrb[0].mxu0
      %v4585 = vadd.f32 0.0, %v4584
      %v4586 = vpop.f32.mrb[0].mxu0
      %4587 = vdwg.mxu0
      %4588 = vst.msk [vmem:[#allocation2] sm:$0xff] %vm701, %v4462
      %4589 = vst.msk [vmem:[#allocation2 + $0x8] sm:$0xff] %vm701, %v4465
      %4590 = vst.msk [vmem:[#allocation2 + $0x10] sm:$0xff] %vm701, %v4470
      %4591 = vst.msk [vmem:[#allocation2 + $0x18] sm:$0xff] %vm701, %v4473
      %4592 = vst.msk [vmem:[#allocation2 + $0x20] sm:$0xff] %vm701, %v4478
      %4593 = vst.msk [vmem:[#allocation2 + $0x28] sm:$0xff] %vm701, %v4481
      %4594 = vst.msk [vmem:[#allocation2 + $0x30] sm:$0xff] %vm701, %v4486
      %4595 = vst.msk [vmem:[#allocation2 + $0x38] sm:$0xff] %vm701, %v4489
      %4596 = vst.msk [vmem:[#allocation2 + $0x40] sm:$0xff] %vm701, %v4494
      %4597 = vst.msk [vmem:[#allocation2 + $0x48] sm:$0xff] %vm701, %v4497
      %4598 = vst.msk [vmem:[#allocation2 + $0x50] sm:$0xff] %vm701, %v4502
      %4599 = vst.msk [vmem:[#allocation2 + $0x58] sm:$0xff] %vm701, %v4505
      %4600 = vst.msk [vmem:[#allocation2 + $0x60] sm:$0xff] %vm701, %v4510
      %4601 = vst.msk [vmem:[#allocation2 + $0x68] sm:$0xff] %vm701, %v4513
      %4602 = vst.msk [vmem:[#allocation2 + $0x70] sm:$0xff] %vm701, %v4518
      %4603 = vst.msk [vmem:[#allocation2 + $0x78] sm:$0xff] %vm701, %v4521
      %4604 = vst.msk [vmem:[#allocation2 + $0x80] sm:$0xff] %vm701, %v4526
      %4605 = vst.msk [vmem:[#allocation2 + $0x88] sm:$0xff] %vm701, %v4529
      %4606 = vst.msk [vmem:[#allocation2 + $0x90] sm:$0xff] %vm701, %v4534
      %4607 = vst.msk [vmem:[#allocation2 + $0x98] sm:$0xff] %vm701, %v4537
      %4608 = vst.msk [vmem:[#allocation2 + $0xa0] sm:$0xff] %vm701, %v4542
      %4609 = vst.msk [vmem:[#allocation2 + $0xa8] sm:$0xff] %vm701, %v4545
      %4610 = vst.msk [vmem:[#allocation2 + $0xb0] sm:$0xff] %vm701, %v4550
      %4611 = vst.msk [vmem:[#allocation2 + $0xb8] sm:$0xff] %vm701, %v4553
      %4612 = vst.msk [vmem:[#allocation2 + $0xc0] sm:$0xff] %vm701, %v4558
      %4613 = vst.msk [vmem:[#allocation2 + $0xc8] sm:$0xff] %vm701, %v4561
      %4614 = vst.msk [vmem:[#allocation2 + $0xd0] sm:$0xff] %vm701, %v4566
      %4615 = vst.msk [vmem:[#allocation2 + $0xd8] sm:$0xff] %vm701, %v4569
      %4616 = vst.msk [vmem:[#allocation2 + $0xe0] sm:$0xff] %vm701, %v4574
      %4617 = vst.msk [vmem:[#allocation2 + $0xe8] sm:$0xff] %vm701, %v4577
      %4618 = vst.msk [vmem:[#allocation2 + $0xf0] sm:$0xff] %vm701, %v4582
      %4619 = vst.msk [vmem:[#allocation2 + $0xf8] sm:$0xff] %vm701, %v4585
      %v4620 = vld [vmem:[%s3418] sm:$0xf]
      %v4621 = vld [vmem:[%s3418 + $0x4] sm:$0xf]
      %v4622 = vld [vmem:[%s3418 + $0x8] sm:$0xf]
      %v4623 = vld [vmem:[%s3418 + $0xc] sm:$0xf]
      %v4624 = vld [vmem:[%s3418 + $0x10] sm:$0xf]
      %v4625 = vld [vmem:[%s3418 + $0x14] sm:$0xf]
      %v4626 = vld [vmem:[%s3418 + $0x18] sm:$0xf]
      %v4627 = vld [vmem:[%s3418 + $0x1c] sm:$0xf]
      %v4628 = vld [vmem:[%s3418 + $0x20] sm:$0xf]
      %v4629 = vld [vmem:[%s3418 + $0x24] sm:$0xf]
      %v4630 = vld [vmem:[%s3418 + $0x28] sm:$0xf]
      %v4631 = vld [vmem:[%s3418 + $0x2c] sm:$0xf]
      %v4632 = vld [vmem:[%s3418 + $0x30] sm:$0xf]
      %v4633 = vld [vmem:[%s3418 + $0x34] sm:$0xf]
      %v4634 = vld [vmem:[%s3418 + $0x38] sm:$0xf]
      %v4635 = vld [vmem:[%s3418 + $0x3c] sm:$0xf]
      %v4636 = vld [vmem:[%s3418 + $0x40] sm:$0xf]
      %v4637 = vld [vmem:[%s3418 + $0x44] sm:$0xf]
      %v4638 = vld [vmem:[%s3418 + $0x48] sm:$0xf]
      %v4639 = vld [vmem:[%s3418 + $0x4c] sm:$0xf]
      %v4640 = vld [vmem:[%s3418 + $0x50] sm:$0xf]
      %v4641 = vld [vmem:[%s3418 + $0x54] sm:$0xf]
      %v4642 = vld [vmem:[%s3418 + $0x58] sm:$0xf]
      %v4643 = vld [vmem:[%s3418 + $0x5c] sm:$0xf]
      %v4644 = vld [vmem:[%s3418 + $0x60] sm:$0xf]
      %v4645 = vld [vmem:[%s3418 + $0x64] sm:$0xf]
      %v4646 = vld [vmem:[%s3418 + $0x68] sm:$0xf]
      %v4647 = vld [vmem:[%s3418 + $0x6c] sm:$0xf]
      %v4648 = vld [vmem:[%s3418 + $0x70] sm:$0xf]
      %v4649 = vld [vmem:[%s3418 + $0x74] sm:$0xf]
      %v4650 = vld [vmem:[%s3418 + $0x78] sm:$0xf]
      %v4651 = vld [vmem:[%s3418 + $0x7c] sm:$0xf]
      %v4652 = vld [vmem:[%s3418 + $0x80] sm:$0xf]
      %v4653 = vld [vmem:[%s3418 + $0x84] sm:$0xf]
      %v4654 = vld [vmem:[%s3418 + $0x88] sm:$0xf]
      %v4655 = vld [vmem:[%s3418 + $0x8c] sm:$0xf]
      %v4656 = vld [vmem:[%s3418 + $0x90] sm:$0xf]
      %v4657 = vld [vmem:[%s3418 + $0x94] sm:$0xf]
      %v4658 = vld [vmem:[%s3418 + $0x98] sm:$0xf]
      %v4659 = vld [vmem:[%s3418 + $0x9c] sm:$0xf]
      %v4660 = vld [vmem:[%s3418 + $0xa0] sm:$0xf]
      %v4661 = vld [vmem:[%s3418 + $0xa4] sm:$0xf]
      %v4662 = vld [vmem:[%s3418 + $0xa8] sm:$0xf]
      %v4663 = vld [vmem:[%s3418 + $0xac] sm:$0xf]
      %v4664 = vld [vmem:[%s3418 + $0xb0] sm:$0xf]
      %v4665 = vld [vmem:[%s3418 + $0xb4] sm:$0xf]
      %v4666 = vld [vmem:[%s3418 + $0xb8] sm:$0xf]
      %v4667 = vld [vmem:[%s3418 + $0xbc] sm:$0xf]
      %v4700 = vunpack.c.l.b16 %v4620
      %v4701 = vunpack.c.l.b16 %v4621
      %v4702 = vunpack.c.l.b16 %v4623
      %v4703 = vunpack.c.l.b16 %v4624
      %v4704 = vunpack.c.l.b16 %v4626
      %v4705 = vunpack.c.l.b16 %v4627
      %v4706 = vunpack.c.l.b16 %v4629
      %v4707 = vunpack.c.l.b16 %v4630
      %v4708 = vunpack.c.l.b16 %v4632
      %v4709 = vunpack.c.l.b16 %v4633
      %v4710 = vunpack.c.l.b16 %v4635
      %v4711 = vunpack.c.l.b16 %v4636
      %v4712 = vunpack.c.l.b16 %v4638
      %v4713 = vunpack.c.l.b16 %v4639
      %v4714 = vunpack.c.l.b16 %v4641
      %v4715 = vunpack.c.l.b16 %v4642
      %v4716 = vunpack.c.l.b16 %v4644
      %v4717 = vunpack.c.l.b16 %v4645
      %v4718 = vunpack.c.l.b16 %v4647
      %v4719 = vunpack.c.l.b16 %v4648
      %v4720 = vunpack.c.l.b16 %v4650
      %v4721 = vunpack.c.l.b16 %v4651
      %v4722 = vunpack.c.l.b16 %v4653
      %v4723 = vunpack.c.l.b16 %v4654
      %v4724 = vunpack.c.l.b16 %v4656
      %v4725 = vunpack.c.l.b16 %v4657
      %v4726 = vunpack.c.l.b16 %v4659
      %v4727 = vunpack.c.l.b16 %v4660
      %v4728 = vunpack.c.l.b16 %v4662
      %v4729 = vunpack.c.l.b16 %v4663
      %v4730 = vunpack.c.l.b16 %v4665
      %v4731 = vunpack.c.l.b16 %v4666
      %v4732 = vpack.c.b16 %v4701, %v4700
      %v4733 = vpack.c.b16 %v4703, %v4702
      %v4734 = vpack.c.b16 %v4705, %v4704
      %v4735 = vpack.c.b16 %v4707, %v4706
      %v4736 = vpack.c.b16 %v4709, %v4708
      %v4737 = vpack.c.b16 %v4711, %v4710
      %v4738 = vpack.c.b16 %v4713, %v4712
      %v4739 = vpack.c.b16 %v4715, %v4714
      %v4740 = vpack.c.b16 %v4717, %v4716
      %v4741 = vpack.c.b16 %v4719, %v4718
      %v4742 = vpack.c.b16 %v4721, %v4720
      %v4743 = vpack.c.b16 %v4723, %v4722
      %v4744 = vpack.c.b16 %v4725, %v4724
      %v4745 = vpack.c.b16 %v4727, %v4726
      %v4746 = vpack.c.b16 %v4729, %v4728
      %v4747 = vpack.c.b16 %v4731, %v4730
      %v4764 = vunpack.c.l.b16 %v4622
      %v4765 = vunpack.c.l.b16 %v4625
      %v4766 = vunpack.c.l.b16 %v4628
      %v4767 = vunpack.c.l.b16 %v4631
      %v4768 = vunpack.c.l.b16 %v4634
      %v4769 = vunpack.c.l.b16 %v4637
      %v4770 = vunpack.c.l.b16 %v4640
      %v4771 = vunpack.c.l.b16 %v4643
      %v4772 = vunpack.c.l.b16 %v4646
      %v4773 = vunpack.c.l.b16 %v4649
      %v4774 = vunpack.c.l.b16 %v4652
      %v4775 = vunpack.c.l.b16 %v4655
      %v4776 = vunpack.c.l.b16 %v4658
      %v4777 = vunpack.c.l.b16 %v4661
      %v4778 = vunpack.c.l.b16 %v4664
      %v4779 = vunpack.c.l.b16 %v4667
      %v4780 = vpack.c.b16 %v4764, %v4764
      %v4781 = vpack.c.b16 %v4765, %v4765
      %v4782 = vpack.c.b16 %v4766, %v4766
      %v4783 = vpack.c.b16 %v4767, %v4767
      %v4784 = vpack.c.b16 %v4768, %v4768
      %v4785 = vpack.c.b16 %v4769, %v4769
      %v4786 = vpack.c.b16 %v4770, %v4770
      %v4787 = vpack.c.b16 %v4771, %v4771
      %v4788 = vpack.c.b16 %v4772, %v4772
      %v4789 = vpack.c.b16 %v4773, %v4773
      %v4790 = vpack.c.b16 %v4774, %v4774
      %v4791 = vpack.c.b16 %v4775, %v4775
      %v4792 = vpack.c.b16 %v4776, %v4776
      %v4793 = vpack.c.b16 %v4777, %v4777
      %v4794 = vpack.c.b16 %v4778, %v4778
      %v4795 = vpack.c.b16 %v4779, %v4779
      %v4797 = vshrl.u32 %v4732, 16
      %v4799 = vshll.u32 %v4732, 16
      %v4801 = vrot.slane %v4799, 1
      %v4802 = vor.u32 %v4797, %v4801
      %v4804 = vshll.u32 %v4780, 16
      %v4806 = vrot.slane %v4804, 1
      %v4807 = vsel %vm395, %v4802, %v4806
      %v4809 = vshrl.u32 %v4733, 16
      %v4811 = vshll.u32 %v4733, 16
      %v4813 = vrot.slane %v4811, 1
      %v4814 = vor.u32 %v4809, %v4813
      %v4816 = vshll.u32 %v4781, 16
      %v4818 = vrot.slane %v4816, 1
      %v4819 = vsel %vm395, %v4814, %v4818
      %v4821 = vshrl.u32 %v4734, 16
      %v4823 = vshll.u32 %v4734, 16
      %v4825 = vrot.slane %v4823, 1
      %v4826 = vor.u32 %v4821, %v4825
      %v4828 = vshll.u32 %v4782, 16
      %v4830 = vrot.slane %v4828, 1
      %v4831 = vsel %vm395, %v4826, %v4830
      %v4833 = vshrl.u32 %v4735, 16
      %v4835 = vshll.u32 %v4735, 16
      %v4837 = vrot.slane %v4835, 1
      %v4838 = vor.u32 %v4833, %v4837
      %v4840 = vshll.u32 %v4783, 16
      %v4842 = vrot.slane %v4840, 1
      %v4843 = vsel %vm395, %v4838, %v4842
      %v4845 = vshrl.u32 %v4736, 16
      %v4847 = vshll.u32 %v4736, 16
      %v4849 = vrot.slane %v4847, 1
      %v4850 = vor.u32 %v4845, %v4849
      %v4852 = vshll.u32 %v4784, 16
      %v4854 = vrot.slane %v4852, 1
      %v4855 = vsel %vm395, %v4850, %v4854
      %v4857 = vshrl.u32 %v4737, 16
      %v4859 = vshll.u32 %v4737, 16
      %v4861 = vrot.slane %v4859, 1
      %v4862 = vor.u32 %v4857, %v4861
      %v4864 = vshll.u32 %v4785, 16
      %v4866 = vrot.slane %v4864, 1
      %v4867 = vsel %vm395, %v4862, %v4866
      %v4869 = vshrl.u32 %v4738, 16
      %v4871 = vshll.u32 %v4738, 16
      %v4873 = vrot.slane %v4871, 1
      %v4874 = vor.u32 %v4869, %v4873
      %v4876 = vshll.u32 %v4786, 16
      %v4878 = vrot.slane %v4876, 1
      %v4879 = vsel %vm395, %v4874, %v4878
      %v4881 = vshrl.u32 %v4739, 16
      %v4883 = vshll.u32 %v4739, 16
      %v4885 = vrot.slane %v4883, 1
      %v4886 = vor.u32 %v4881, %v4885
      %v4888 = vshll.u32 %v4787, 16
      %v4890 = vrot.slane %v4888, 1
      %v4891 = vsel %vm395, %v4886, %v4890
      %v4893 = vshrl.u32 %v4740, 16
      %v4895 = vshll.u32 %v4740, 16
      %v4897 = vrot.slane %v4895, 1
      %v4898 = vor.u32 %v4893, %v4897
      %v4900 = vshll.u32 %v4788, 16
      %v4902 = vrot.slane %v4900, 1
      %v4903 = vsel %vm395, %v4898, %v4902
      %v4905 = vshrl.u32 %v4741, 16
      %v4907 = vshll.u32 %v4741, 16
      %v4909 = vrot.slane %v4907, 1
      %v4910 = vor.u32 %v4905, %v4909
      %v4912 = vshll.u32 %v4789, 16
      %v4914 = vrot.slane %v4912, 1
      %v4915 = vsel %vm395, %v4910, %v4914
      %v4917 = vshrl.u32 %v4742, 16
      %v4919 = vshll.u32 %v4742, 16
      %v4921 = vrot.slane %v4919, 1
      %v4922 = vor.u32 %v4917, %v4921
      %v4924 = vshll.u32 %v4790, 16
      %v4926 = vrot.slane %v4924, 1
      %v4927 = vsel %vm395, %v4922, %v4926
      %v4929 = vshrl.u32 %v4743, 16
      %v4931 = vshll.u32 %v4743, 16
      %v4933 = vrot.slane %v4931, 1
      %v4934 = vor.u32 %v4929, %v4933
      %v4936 = vshll.u32 %v4791, 16
      %v4938 = vrot.slane %v4936, 1
      %v4939 = vsel %vm395, %v4934, %v4938
      %v4941 = vshrl.u32 %v4744, 16
      %v4943 = vshll.u32 %v4744, 16
      %v4945 = vrot.slane %v4943, 1
      %v4946 = vor.u32 %v4941, %v4945
      %v4948 = vshll.u32 %v4792, 16
      %v4950 = vrot.slane %v4948, 1
      %v4951 = vsel %vm395, %v4946, %v4950
      %v4953 = vshrl.u32 %v4745, 16
      %v4955 = vshll.u32 %v4745, 16
      %v4957 = vrot.slane %v4955, 1
      %v4958 = vor.u32 %v4953, %v4957
      %v4960 = vshll.u32 %v4793, 16
      %v4962 = vrot.slane %v4960, 1
      %v4963 = vsel %vm395, %v4958, %v4962
      %v4965 = vshrl.u32 %v4746, 16
      %v4967 = vshll.u32 %v4746, 16
      %v4969 = vrot.slane %v4967, 1
      %v4970 = vor.u32 %v4965, %v4969
      %v4972 = vshll.u32 %v4794, 16
      %v4974 = vrot.slane %v4972, 1
      %v4975 = vsel %vm395, %v4970, %v4974
      %v4977 = vshrl.u32 %v4747, 16
      %v4979 = vshll.u32 %v4747, 16
      %v4981 = vrot.slane %v4979, 1
      %v4982 = vor.u32 %v4977, %v4981
      %v4984 = vshll.u32 %v4795, 16
      %v4986 = vrot.slane %v4984, 1
      %v4987 = vsel %vm395, %v4982, %v4986
      %4988 = vrot.lane.b32.xlu0 %v4807, 4
      %v4989 = vpop.permute.xlu0 %4988
      %4990 = vrot.lane.b32.xlu0 %v4819, 4
      %v4991 = vpop.permute.xlu0 %4990
      %4992 = vrot.lane.b32.xlu0 %v4831, 4
      %v4993 = vpop.permute.xlu0 %4992
      %4994 = vrot.lane.b32.xlu0 %v4843, 4
      %v4995 = vpop.permute.xlu0 %4994
      %4996 = vrot.lane.b32.xlu0 %v4855, 4
      %v4997 = vpop.permute.xlu0 %4996
      %4998 = vrot.lane.b32.xlu0 %v4867, 4
      %v4999 = vpop.permute.xlu0 %4998
      %5000 = vrot.lane.b32.xlu0 %v4879, 4
      %v5001 = vpop.permute.xlu0 %5000
      %5002 = vrot.lane.b32.xlu0 %v4891, 4
      %v5003 = vpop.permute.xlu0 %5002
      %5004 = vrot.lane.b32.xlu0 %v4903, 4
      %v5005 = vpop.permute.xlu0 %5004
      %5006 = vrot.lane.b32.xlu0 %v4915, 4
      %v5007 = vpop.permute.xlu0 %5006
      %5008 = vrot.lane.b32.xlu0 %v4927, 4
      %v5009 = vpop.permute.xlu0 %5008
      %5010 = vrot.lane.b32.xlu0 %v4939, 4
      %v5011 = vpop.permute.xlu0 %5010
      %5012 = vrot.lane.b32.xlu0 %v4951, 4
      %v5013 = vpop.permute.xlu0 %5012
      %5014 = vrot.lane.b32.xlu0 %v4963, 4
      %v5015 = vpop.permute.xlu0 %5014
      %5016 = vrot.lane.b32.xlu0 %v4975, 4
      %v5017 = vpop.permute.xlu0 %5016
      %5018 = vrot.lane.b32.xlu0 %v4987, 4
      %v5019 = vpop.permute.xlu0 %5018
      %v5020 = vrot.slane %v4732, 1
      %v5021 = vrot.slane %v4780, 1
      %v5022 = vsel %vm620, %v5020, %v5021
      %v5023 = vrot.slane %v4733, 1
      %v5024 = vrot.slane %v4781, 1
      %v5025 = vsel %vm620, %v5023, %v5024
      %v5026 = vrot.slane %v4734, 1
      %v5027 = vrot.slane %v4782, 1
      %v5028 = vsel %vm620, %v5026, %v5027
      %v5029 = vrot.slane %v4735, 1
      %v5030 = vrot.slane %v4783, 1
      %v5031 = vsel %vm620, %v5029, %v5030
      %v5032 = vrot.slane %v4736, 1
      %v5033 = vrot.slane %v4784, 1
      %v5034 = vsel %vm620, %v5032, %v5033
      %v5035 = vrot.slane %v4737, 1
      %v5036 = vrot.slane %v4785, 1
      %v5037 = vsel %vm620, %v5035, %v5036
      %v5038 = vrot.slane %v4738, 1
      %v5039 = vrot.slane %v4786, 1
      %v5040 = vsel %vm620, %v5038, %v5039
      %v5041 = vrot.slane %v4739, 1
      %v5042 = vrot.slane %v4787, 1
      %v5043 = vsel %vm620, %v5041, %v5042
      %v5044 = vrot.slane %v4740, 1
      %v5045 = vrot.slane %v4788, 1
      %v5046 = vsel %vm620, %v5044, %v5045
      %v5047 = vrot.slane %v4741, 1
      %v5048 = vrot.slane %v4789, 1
      %v5049 = vsel %vm620, %v5047, %v5048
      %v5050 = vrot.slane %v4742, 1
      %v5051 = vrot.slane %v4790, 1
      %v5052 = vsel %vm620, %v5050, %v5051
      %v5053 = vrot.slane %v4743, 1
      %v5054 = vrot.slane %v4791, 1
      %v5055 = vsel %vm620, %v5053, %v5054
      %v5056 = vrot.slane %v4744, 1
      %v5057 = vrot.slane %v4792, 1
      %v5058 = vsel %vm620, %v5056, %v5057
      %v5059 = vrot.slane %v4745, 1
      %v5060 = vrot.slane %v4793, 1
      %v5061 = vsel %vm620, %v5059, %v5060
      %v5062 = vrot.slane %v4746, 1
      %v5063 = vrot.slane %v4794, 1
      %v5064 = vsel %vm620, %v5062, %v5063
      %v5065 = vrot.slane %v4747, 1
      %v5066 = vrot.slane %v4795, 1
      %v5067 = vsel %vm620, %v5065, %v5066
      %5068 = vrot.lane.b32.xlu0 %v5022, 8
      %v5069 = vpop.permute.xlu0 %5068
      %5070 = vrot.lane.b32.xlu0 %v5025, 8
      %v5071 = vpop.permute.xlu0 %5070
      %5072 = vrot.lane.b32.xlu0 %v5028, 8
      %v5073 = vpop.permute.xlu0 %5072
      %5074 = vrot.lane.b32.xlu0 %v5031, 8
      %v5075 = vpop.permute.xlu0 %5074
      %5076 = vrot.lane.b32.xlu0 %v5034, 8
      %v5077 = vpop.permute.xlu0 %5076
      %5078 = vrot.lane.b32.xlu0 %v5037, 8
      %v5079 = vpop.permute.xlu0 %5078
      %5080 = vrot.lane.b32.xlu0 %v5040, 8
      %v5081 = vpop.permute.xlu0 %5080
      %5082 = vrot.lane.b32.xlu0 %v5043, 8
      %v5083 = vpop.permute.xlu0 %5082
      %5084 = vrot.lane.b32.xlu0 %v5046, 8
      %v5085 = vpop.permute.xlu0 %5084
      %5086 = vrot.lane.b32.xlu0 %v5049, 8
      %v5087 = vpop.permute.xlu0 %5086
      %5088 = vrot.lane.b32.xlu0 %v5052, 8
      %v5089 = vpop.permute.xlu0 %5088
      %5090 = vrot.lane.b32.xlu0 %v5055, 8
      %v5091 = vpop.permute.xlu0 %5090
      %5092 = vrot.lane.b32.xlu0 %v5058, 8
      %v5093 = vpop.permute.xlu0 %5092
      %5094 = vrot.lane.b32.xlu0 %v5061, 8
      %v5095 = vpop.permute.xlu0 %5094
      %5096 = vrot.lane.b32.xlu0 %v5064, 8
      %v5097 = vpop.permute.xlu0 %5096
      %5098 = vrot.lane.b32.xlu0 %v5067, 8
      %v5099 = vpop.permute.xlu0 %5098
      %v5101 = vsel %vm701, %v4732, %v4989
      %v5103 = vsel %vm701, %v4733, %v4991
      %v5105 = vsel %vm701, %v4734, %v4993
      %v5107 = vsel %vm701, %v4735, %v4995
      %v5109 = vsel %vm701, %v4736, %v4997
      %v5111 = vsel %vm701, %v4737, %v4999
      %v5113 = vsel %vm701, %v4738, %v5001
      %v5115 = vsel %vm701, %v4739, %v5003
      %v5117 = vsel %vm701, %v4740, %v5005
      %v5119 = vsel %vm701, %v4741, %v5007
      %v5121 = vsel %vm701, %v4742, %v5009
      %v5123 = vsel %vm701, %v4743, %v5011
      %v5125 = vsel %vm701, %v4744, %v5013
      %v5127 = vsel %vm701, %v4745, %v5015
      %v5129 = vsel %vm701, %v4746, %v5017
      %v5131 = vsel %vm701, %v4747, %v5019
      %v5133 = vsel %vm734, %v5101, %v5069
      %v5135 = vsel %vm734, %v5103, %v5071
      %v5137 = vsel %vm734, %v5105, %v5073
      %v5139 = vsel %vm734, %v5107, %v5075
      %v5141 = vsel %vm734, %v5109, %v5077
      %v5143 = vsel %vm734, %v5111, %v5079
      %v5145 = vsel %vm734, %v5113, %v5081
      %v5147 = vsel %vm734, %v5115, %v5083
      %v5149 = vsel %vm734, %v5117, %v5085
      %v5151 = vsel %vm734, %v5119, %v5087
      %v5153 = vsel %vm734, %v5121, %v5089
      %v5155 = vsel %vm734, %v5123, %v5091
      %v5157 = vsel %vm734, %v5125, %v5093
      %v5159 = vsel %vm734, %v5127, %v5095
      %v5161 = vsel %vm734, %v5129, %v5097
      %v5163 = vsel %vm734, %v5131, %v5099
      %s5164 = scalar_lea.vmem %s3, 8
      %v5165 = vld [vmem:[%s5164] sm:$0xf]
      %v5166 = vld [vmem:[%s5164 + $0x4] sm:$0x3]
      %v5169 = vunpack.c.l.b16 %v5165
      %v5170 = vunpack.c.l.b16 %v5166
      %v5171 = vpack.c.b16 %v5170, %v5169
      %v5172 = vsel %vm774, %v5133, 0
      %v5174 = vsel %vm774, %v5135, 0
      %v5176 = vsel %vm774, %v5137, 0
      %v5178 = vsel %vm774, %v5139, 0
      %v5180 = vsel %vm774, %v5141, 0
      %v5182 = vsel %vm774, %v5143, 0
      %v5184 = vsel %vm774, %v5145, 0
      %v5186 = vsel %vm774, %v5147, 0
      %v5188 = vsel %vm774, %v5149, 0
      %v5190 = vsel %vm774, %v5151, 0
      %v5192 = vsel %vm774, %v5153, 0
      %v5194 = vsel %vm774, %v5155, 0
      %v5196 = vsel %vm774, %v5157, 0
      %v5198 = vsel %vm774, %v5159, 0
      %v5200 = vsel %vm774, %v5161, 0
      %v5202 = vsel %vm774, %v5163, 0
      %v5205 = vsel %vm807, %v5171, 0
      %5207 = vmatprep.subr.bf16.mxu0 0
      %5208 = vmatpush1.bf16.msra.mxu0 %v5205
      %5209 = vmatprep.subr.bf16.mxu0 0
      %5210 = vmatpush1.bf16.msra.mxu0 0
      %5211 = vmatprep.subr.bf16.mxu0 0
      %5212 = vmatpush1.bf16.msra.mxu0 0
      %5213 = vmatprep.subr.bf16.mxu0 0
      %5214 = vmatpush1.bf16.msra.mxu0 0
      %5215 = vmatprep.subr.bf16.mxu0 0
      %5216 = vmatpush1.bf16.msra.mxu0 0
      %5217 = vmatprep.subr.bf16.mxu0 0
      %5218 = vmatpush1.bf16.msra.mxu0 0
      %5219 = vmatprep.subr.bf16.mxu0 0
      %5220 = vmatpush1.bf16.msra.mxu0 0
      %5221 = vmatprep.subr.bf16.mxu0 0
      %5222 = vmatpush1.bf16.msra.mxu0 0
      %5223 = vmatprep.subr.bf16.mxu0 0
      %5224 = vmatpush1.bf16.msra.mxu0 0
      %5225 = vmatprep.subr.bf16.mxu0 0
      %5226 = vmatpush1.bf16.msra.mxu0 0
      %5227 = vmatprep.subr.bf16.mxu0 0
      %5228 = vmatpush1.bf16.msra.mxu0 0
      %5229 = vmatprep.subr.bf16.mxu0 0
      %5230 = vmatpush1.bf16.msra.mxu0 0
      %5231 = vmatprep.subr.bf16.mxu0 0
      %5232 = vmatpush1.bf16.msra.mxu0 0
      %5233 = vmatprep.subr.bf16.mxu0 0
      %5234 = vmatpush1.bf16.msra.mxu0 0
      %5235 = vmatprep.subr.bf16.mxu0 0
      %5236 = vmatpush1.bf16.msra.mxu0 0
      %5237 = vmatprep.subr.bf16.mxu0 0
      %5238 = vmatpush1.bf16.msra.mxu0 0
      %5239 = vmatprep.mubr.bf16.mxu0 0
      %5240 = vmatmul.mubr.bf16.gmra.mrb[0].mxu0 %v5172
      %v5241 = vpop.f32.mrb[0].mxu0
      %v5242 = vadd.f32 0.0, %v5241
      %v5243 = vpop.f32.mrb[0].mxu0
      %v5244 = vpop.f32.mrb[0].mxu0
      %v5245 = vadd.f32 0.0, %v5244
      %v5246 = vpop.f32.mrb[0].mxu0
      %5247 = vmatprep.mubr.bf16.mxu0 0
      %5248 = vmatmul.mubr.bf16.gmra.mrb[0].mxu0 %v5174
      %v5249 = vpop.f32.mrb[0].mxu0
      %v5250 = vadd.f32 0.0, %v5249
      %v5251 = vpop.f32.mrb[0].mxu0
      %v5252 = vpop.f32.mrb[0].mxu0
      %v5253 = vadd.f32 0.0, %v5252
      %v5254 = vpop.f32.mrb[0].mxu0
      %5255 = vmatprep.mubr.bf16.mxu0 0
      %5256 = vmatmul.mubr.bf16.gmra.mrb[0].mxu0 %v5176
      %v5257 = vpop.f32.mrb[0].mxu0
      %v5258 = vadd.f32 0.0, %v5257
      %v5259 = vpop.f32.mrb[0].mxu0
      %v5260 = vpop.f32.mrb[0].mxu0
      %v5261 = vadd.f32 0.0, %v5260
      %v5262 = vpop.f32.mrb[0].mxu0
      %5263 = vmatprep.mubr.bf16.mxu0 0
      %5264 = vmatmul.mubr.bf16.gmra.mrb[0].mxu0 %v5178
      %v5265 = vpop.f32.mrb[0].mxu0
      %v5266 = vadd.f32 0.0, %v5265
      %v5267 = vpop.f32.mrb[0].mxu0
      %v5268 = vpop.f32.mrb[0].mxu0
      %v5269 = vadd.f32 0.0, %v5268
      %v5270 = vpop.f32.mrb[0].mxu0
      %5271 = vmatprep.mubr.bf16.mxu0 0
      %5272 = vmatmul.mubr.bf16.gmra.mrb[0].mxu0 %v5180
      %v5273 = vpop.f32.mrb[0].mxu0
      %v5274 = vadd.f32 0.0, %v5273
      %v5275 = vpop.f32.mrb[0].mxu0
      %v5276 = vpop.f32.mrb[0].mxu0
      %v5277 = vadd.f32 0.0, %v5276
      %v5278 = vpop.f32.mrb[0].mxu0
      %5279 = vmatprep.mubr.bf16.mxu0 0
      %5280 = vmatmul.mubr.bf16.gmra.mrb[0].mxu0 %v5182
      %v5281 = vpop.f32.mrb[0].mxu0
      %v5282 = vadd.f32 0.0, %v5281
      %v5283 = vpop.f32.mrb[0].mxu0
      %v5284 = vpop.f32.mrb[0].mxu0
      %v5285 = vadd.f32 0.0, %v5284
      %v5286 = vpop.f32.mrb[0].mxu0
      %5287 = vmatprep.mubr.bf16.mxu0 0
      %5288 = vmatmul.mubr.bf16.gmra.mrb[0].mxu0 %v5184
      %v5289 = vpop.f32.mrb[0].mxu0
      %v5290 = vadd.f32 0.0, %v5289
      %v5291 = vpop.f32.mrb[0].mxu0
      %v5292 = vpop.f32.mrb[0].mxu0
      %v5293 = vadd.f32 0.0, %v5292
      %v5294 = vpop.f32.mrb[0].mxu0
      %5295 = vmatprep.mubr.bf16.mxu0 0
      %5296 = vmatmul.mubr.bf16.gmra.mrb[0].mxu0 %v5186
      %v5297 = vpop.f32.mrb[0].mxu0
      %v5298 = vadd.f32 0.0, %v5297
      %v5299 = vpop.f32.mrb[0].mxu0
      %v5300 = vpop.f32.mrb[0].mxu0
      %v5301 = vadd.f32 0.0, %v5300
      %v5302 = vpop.f32.mrb[0].mxu0
      %5303 = vmatprep.mubr.bf16.mxu0 0
      %5304 = vmatmul.mubr.bf16.gmra.mrb[0].mxu0 %v5188
      %v5305 = vpop.f32.mrb[0].mxu0
      %v5306 = vadd.f32 0.0, %v5305
      %v5307 = vpop.f32.mrb[0].mxu0
      %v5308 = vpop.f32.mrb[0].mxu0
      %v5309 = vadd.f32 0.0, %v5308
      %v5310 = vpop.f32.mrb[0].mxu0
      %5311 = vmatprep.mubr.bf16.mxu0 0
      %5312 = vmatmul.mubr.bf16.gmra.mrb[0].mxu0 %v5190
      %v5313 = vpop.f32.mrb[0].mxu0
      %v5314 = vadd.f32 0.0, %v5313
      %v5315 = vpop.f32.mrb[0].mxu0
      %v5316 = vpop.f32.mrb[0].mxu0
      %v5317 = vadd.f32 0.0, %v5316
      %v5318 = vpop.f32.mrb[0].mxu0
      %5319 = vmatprep.mubr.bf16.mxu0 0
      %5320 = vmatmul.mubr.bf16.gmra.mrb[0].mxu0 %v5192
      %v5321 = vpop.f32.mrb[0].mxu0
      %v5322 = vadd.f32 0.0, %v5321
      %v5323 = vpop.f32.mrb[0].mxu0
      %v5324 = vpop.f32.mrb[0].mxu0
      %v5325 = vadd.f32 0.0, %v5324
      %v5326 = vpop.f32.mrb[0].mxu0
      %5327 = vmatprep.mubr.bf16.mxu0 0
      %5328 = vmatmul.mubr.bf16.gmra.mrb[0].mxu0 %v5194
      %v5329 = vpop.f32.mrb[0].mxu0
      %v5330 = vadd.f32 0.0, %v5329
      %v5331 = vpop.f32.mrb[0].mxu0
      %v5332 = vpop.f32.mrb[0].mxu0
      %v5333 = vadd.f32 0.0, %v5332
      %v5334 = vpop.f32.mrb[0].mxu0
      %5335 = vmatprep.mubr.bf16.mxu0 0
      %5336 = vmatmul.mubr.bf16.gmra.mrb[0].mxu0 %v5196
      %v5337 = vpop.f32.mrb[0].mxu0
      %v5338 = vadd.f32 0.0, %v5337
      %v5339 = vpop.f32.mrb[0].mxu0
      %v5340 = vpop.f32.mrb[0].mxu0
      %v5341 = vadd.f32 0.0, %v5340
      %v5342 = vpop.f32.mrb[0].mxu0
      %5343 = vmatprep.mubr.bf16.mxu0 0
      %5344 = vmatmul.mubr.bf16.gmra.mrb[0].mxu0 %v5198
      %v5345 = vpop.f32.mrb[0].mxu0
      %v5346 = vadd.f32 0.0, %v5345
      %v5347 = vpop.f32.mrb[0].mxu0
      %v5348 = vpop.f32.mrb[0].mxu0
      %v5349 = vadd.f32 0.0, %v5348
      %v5350 = vpop.f32.mrb[0].mxu0
      %5351 = vmatprep.mubr.bf16.mxu0 0
      %5352 = vmatmul.mubr.bf16.gmra.mrb[0].mxu0 %v5200
      %v5353 = vpop.f32.mrb[0].mxu0
      %v5354 = vadd.f32 0.0, %v5353
      %v5355 = vpop.f32.mrb[0].mxu0
      %v5356 = vpop.f32.mrb[0].mxu0
      %v5357 = vadd.f32 0.0, %v5356
      %v5358 = vpop.f32.mrb[0].mxu0
      %5359 = vmatprep.mubr.bf16.mxu0 0
      %5360 = vmatmul.mubr.bf16.gmra.mrb[0].mxu0 %v5202
      %v5361 = vpop.f32.mrb[0].mxu0
      %v5362 = vadd.f32 0.0, %v5361
      %v5363 = vpop.f32.mrb[0].mxu0
      %v5364 = vpop.f32.mrb[0].mxu0
      %v5365 = vadd.f32 0.0, %v5364
      %v5366 = vpop.f32.mrb[0].mxu0
      %5367 = vdwg.mxu0
      %v5368 = vld [vmem:[#allocation2] sm:$0xff]
      %v5369 = vld [vmem:[#allocation2 + $0x8] sm:$0xff]
      %v5370 = vld [vmem:[#allocation2 + $0x10] sm:$0xff]
      %v5371 = vld [vmem:[#allocation2 + $0x18] sm:$0xff]
      %v5372 = vld [vmem:[#allocation2 + $0x20] sm:$0xff]
      %v5373 = vld [vmem:[#allocation2 + $0x28] sm:$0xff]
      %v5374 = vld [vmem:[#allocation2 + $0x30] sm:$0xff]
      %v5375 = vld [vmem:[#allocation2 + $0x38] sm:$0xff]
      %v5376 = vld [vmem:[#allocation2 + $0x40] sm:$0xff]
      %v5377 = vld [vmem:[#allocation2 + $0x48] sm:$0xff]
      %v5378 = vld [vmem:[#allocation2 + $0x50] sm:$0xff]
      %v5379 = vld [vmem:[#allocation2 + $0x58] sm:$0xff]
      %v5380 = vld [vmem:[#allocation2 + $0x60] sm:$0xff]
      %v5381 = vld [vmem:[#allocation2 + $0x68] sm:$0xff]
      %v5382 = vld [vmem:[#allocation2 + $0x70] sm:$0xff]
      %v5383 = vld [vmem:[#allocation2 + $0x78] sm:$0xff]
      %v5384 = vld [vmem:[#allocation2 + $0x80] sm:$0xff]
      %v5385 = vld [vmem:[#allocation2 + $0x88] sm:$0xff]
      %v5386 = vld [vmem:[#allocation2 + $0x90] sm:$0xff]
      %v5387 = vld [vmem:[#allocation2 + $0x98] sm:$0xff]
      %v5388 = vld [vmem:[#allocation2 + $0xa0] sm:$0xff]
      %v5389 = vld [vmem:[#allocation2 + $0xa8] sm:$0xff]
      %v5390 = vld [vmem:[#allocation2 + $0xb0] sm:$0xff]
      %v5391 = vld [vmem:[#allocation2 + $0xb8] sm:$0xff]
      %v5392 = vld [vmem:[#allocation2 + $0xc0] sm:$0xff]
      %v5393 = vld [vmem:[#allocation2 + $0xc8] sm:$0xff]
      %v5394 = vld [vmem:[#allocation2 + $0xd0] sm:$0xff]
      %v5395 = vld [vmem:[#allocation2 + $0xd8] sm:$0xff]
      %v5396 = vld [vmem:[#allocation2 + $0xe0] sm:$0xff]
      %v5397 = vld [vmem:[#allocation2 + $0xe8] sm:$0xff]
      %v5398 = vld [vmem:[#allocation2 + $0xf0] sm:$0xff]
      %v5399 = vld [vmem:[#allocation2 + $0xf8] sm:$0xff]
      %v5400 = vadd.f32 %v5368, %v5242
      %v5401 = vadd.f32 %v5369, %v5245
      %v5402 = vadd.f32 %v5370, %v5250
      %v5403 = vadd.f32 %v5371, %v5253
      %v5404 = vadd.f32 %v5372, %v5258
      %v5405 = vadd.f32 %v5373, %v5261
      %v5406 = vadd.f32 %v5374, %v5266
      %v5407 = vadd.f32 %v5375, %v5269
      %v5408 = vadd.f32 %v5376, %v5274
      %v5409 = vadd.f32 %v5377, %v5277
      %v5410 = vadd.f32 %v5378, %v5282
      %v5411 = vadd.f32 %v5379, %v5285
      %v5412 = vadd.f32 %v5380, %v5290
      %v5413 = vadd.f32 %v5381, %v5293
      %v5414 = vadd.f32 %v5382, %v5298
      %v5415 = vadd.f32 %v5383, %v5301
      %v5416 = vadd.f32 %v5384, %v5306
      %v5417 = vadd.f32 %v5385, %v5309
      %v5418 = vadd.f32 %v5386, %v5314
      %v5419 = vadd.f32 %v5387, %v5317
      %v5420 = vadd.f32 %v5388, %v5322
      %v5421 = vadd.f32 %v5389, %v5325
      %v5422 = vadd.f32 %v5390, %v5330
      %v5423 = vadd.f32 %v5391, %v5333
      %v5424 = vadd.f32 %v5392, %v5338
      %v5425 = vadd.f32 %v5393, %v5341
      %v5426 = vadd.f32 %v5394, %v5346
      %v5427 = vadd.f32 %v5395, %v5349
      %v5428 = vadd.f32 %v5396, %v5354
      %v5429 = vadd.f32 %v5397, %v5357
      %v5430 = vadd.f32 %v5398, %v5362
      %v5431 = vadd.f32 %v5399, %v5365
      %5432 = vst.msk [vmem:[#allocation2] sm:$0xff] %vm701, %v5400
      %5433 = vst.msk [vmem:[#allocation2 + $0x8] sm:$0xff] %vm701, %v5401
      %5434 = vst.msk [vmem:[#allocation2 + $0x10] sm:$0xff] %vm701, %v5402
      %5435 = vst.msk [vmem:[#allocation2 + $0x18] sm:$0xff] %vm701, %v5403
      %5436 = vst.msk [vmem:[#allocation2 + $0x20] sm:$0xff] %vm701, %v5404
      %5437 = vst.msk [vmem:[#allocation2 + $0x28] sm:$0xff] %vm701, %v5405
      %5438 = vst.msk [vmem:[#allocation2 + $0x30] sm:$0xff] %vm701, %v5406
      %5439 = vst.msk [vmem:[#allocation2 + $0x38] sm:$0xff] %vm701, %v5407
      %5440 = vst.msk [vmem:[#allocation2 + $0x40] sm:$0xff] %vm701, %v5408
      %5441 = vst.msk [vmem:[#allocation2 + $0x48] sm:$0xff] %vm701, %v5409
      %5442 = vst.msk [vmem:[#allocation2 + $0x50] sm:$0xff] %vm701, %v5410
      %5443 = vst.msk [vmem:[#allocation2 + $0x58] sm:$0xff] %vm701, %v5411
      %5444 = vst.msk [vmem:[#allocation2 + $0x60] sm:$0xff] %vm701, %v5412
      %5445 = vst.msk [vmem:[#allocation2 + $0x68] sm:$0xff] %vm701, %v5413
      %5446 = vst.msk [vmem:[#allocation2 + $0x70] sm:$0xff] %vm701, %v5414
      %5447 = vst.msk [vmem:[#allocation2 + $0x78] sm:$0xff] %vm701, %v5415
      %5448 = vst.msk [vmem:[#allocation2 + $0x80] sm:$0xff] %vm701, %v5416
      %5449 = vst.msk [vmem:[#allocation2 + $0x88] sm:$0xff] %vm701, %v5417
      %5450 = vst.msk [vmem:[#allocation2 + $0x90] sm:$0xff] %vm701, %v5418
      %5451 = vst.msk [vmem:[#allocation2 + $0x98] sm:$0xff] %vm701, %v5419
      %5452 = vst.msk [vmem:[#allocation2 + $0xa0] sm:$0xff] %vm701, %v5420
      %5453 = vst.msk [vmem:[#allocation2 + $0xa8] sm:$0xff] %vm701, %v5421
      %5454 = vst.msk [vmem:[#allocation2 + $0xb0] sm:$0xff] %vm701, %v5422
      %5455 = vst.msk [vmem:[#allocation2 + $0xb8] sm:$0xff] %vm701, %v5423
      %5456 = vst.msk [vmem:[#allocation2 + $0xc0] sm:$0xff] %vm701, %v5424
      %5457 = vst.msk [vmem:[#allocation2 + $0xc8] sm:$0xff] %vm701, %v5425
      %5458 = vst.msk [vmem:[#allocation2 + $0xd0] sm:$0xff] %vm701, %v5426
      %5459 = vst.msk [vmem:[#allocation2 + $0xd8] sm:$0xff] %vm701, %v5427
      %5460 = vst.msk [vmem:[#allocation2 + $0xe0] sm:$0xff] %vm701, %v5428
      %5461 = vst.msk [vmem:[#allocation2 + $0xe8] sm:$0xff] %vm701, %v5429
      %5462 = vst.msk [vmem:[#allocation2 + $0xf0] sm:$0xff] %vm701, %v5430
      %5463 = vst.msk [vmem:[#allocation2 + $0xf8] sm:$0xff] %vm701, %v5431
      %s5464 = scalar_lea.vmem [#allocation3], 24
      %v5465 = vld [vmem:[%s5464] sm:$0xf]
      %v5466 = vld [vmem:[%s5464 + $0x4] sm:$0xf]
      %v5467 = vld [vmem:[%s5464 + $0x8] sm:$0xf]
      %v5468 = vld [vmem:[%s5464 + $0xc] sm:$0xf]
      %v5469 = vld [vmem:[%s5464 + $0x10] sm:$0xf]
      %v5470 = vld [vmem:[%s5464 + $0x14] sm:$0xf]
      %v5471 = vld [vmem:[%s5464 + $0x18] sm:$0xf]
      %v5472 = vld [vmem:[%s5464 + $0x1c] sm:$0xf]
      %v5473 = vld [vmem:[%s5464 + $0x20] sm:$0xf]
      %v5474 = vld [vmem:[%s5464 + $0x24] sm:$0xf]
      %v5475 = vld [vmem:[%s5464 + $0x28] sm:$0xf]
      %v5476 = vld [vmem:[%s5464 + $0x2c] sm:$0xf]
      %v5477 = vld [vmem:[%s5464 + $0x30] sm:$0xf]
      %v5478 = vld [vmem:[%s5464 + $0x34] sm:$0xf]
      %v5479 = vld [vmem:[%s5464 + $0x38] sm:$0xf]
      %v5480 = vld [vmem:[%s5464 + $0x3c] sm:$0xf]
      %v5481 = vld [vmem:[%s5464 + $0x40] sm:$0xf]
      %v5482 = vld [vmem:[%s5464 + $0x44] sm:$0xf]
      %v5483 = vld [vmem:[%s5464 + $0x48] sm:$0xf]
      %v5484 = vld [vmem:[%s5464 + $0x4c] sm:$0xf]
      %v5485 = vld [vmem:[%s5464 + $0x50] sm:$0xf]
      %v5486 = vld [vmem:[%s5464 + $0x54] sm:$0xf]
      %v5487 = vld [vmem:[%s5464 + $0x58] sm:$0xf]
      %v5488 = vld [vmem:[%s5464 + $0x5c] sm:$0xf]
      %v5489 = vld [vmem:[%s5464 + $0x60] sm:$0xf]
      %v5490 = vld [vmem:[%s5464 + $0x64] sm:$0xf]
      %v5491 = vld [vmem:[%s5464 + $0x68] sm:$0xf]
      %v5492 = vld [vmem:[%s5464 + $0x6c] sm:$0xf]
      %v5493 = vld [vmem:[%s5464 + $0x70] sm:$0xf]
      %v5494 = vld [vmem:[%s5464 + $0x74] sm:$0xf]
      %v5495 = vld [vmem:[%s5464 + $0x78] sm:$0xf]
      %v5496 = vld [vmem:[%s5464 + $0x7c] sm:$0xf]
      %v5497 = vld [vmem:[%s5464 + $0x80] sm:$0xf]
      %v5498 = vld [vmem:[%s5464 + $0x84] sm:$0xf]
      %v5499 = vld [vmem:[%s5464 + $0x88] sm:$0xf]
      %v5500 = vld [vmem:[%s5464 + $0x8c] sm:$0xf]
      %v5501 = vld [vmem:[%s5464 + $0x90] sm:$0xf]
      %v5502 = vld [vmem:[%s5464 + $0x94] sm:$0xf]
      %v5503 = vld [vmem:[%s5464 + $0x98] sm:$0xf]
      %v5504 = vld [vmem:[%s5464 + $0x9c] sm:$0xf]
      %v5505 = vld [vmem:[%s5464 + $0xa0] sm:$0xf]
      %v5506 = vld [vmem:[%s5464 + $0xa4] sm:$0xf]
      %v5507 = vld [vmem:[%s5464 + $0xa8] sm:$0xf]
      %v5508 = vld [vmem:[%s5464 + $0xac] sm:$0xf]
      %v5509 = vld [vmem:[%s5464 + $0xb0] sm:$0xf]
      %v5510 = vld [vmem:[%s5464 + $0xb4] sm:$0xf]
      %v5511 = vld [vmem:[%s5464 + $0xb8] sm:$0xf]
      %v5512 = vld [vmem:[%s5464 + $0xbc] sm:$0xf]
      %v5545 = vunpack.c.l.b16 %v5465
      %v5546 = vunpack.c.l.b16 %v5466
      %v5547 = vunpack.c.l.b16 %v5468
      %v5548 = vunpack.c.l.b16 %v5469
      %v5549 = vunpack.c.l.b16 %v5471
      %v5550 = vunpack.c.l.b16 %v5472
      %v5551 = vunpack.c.l.b16 %v5474
      %v5552 = vunpack.c.l.b16 %v5475
      %v5553 = vunpack.c.l.b16 %v5477
      %v5554 = vunpack.c.l.b16 %v5478
      %v5555 = vunpack.c.l.b16 %v5480
      %v5556 = vunpack.c.l.b16 %v5481
      %v5557 = vunpack.c.l.b16 %v5483
      %v5558 = vunpack.c.l.b16 %v5484
      %v5559 = vunpack.c.l.b16 %v5486
      %v5560 = vunpack.c.l.b16 %v5487
      %v5561 = vunpack.c.l.b16 %v5489
      %v5562 = vunpack.c.l.b16 %v5490
      %v5563 = vunpack.c.l.b16 %v5492
      %v5564 = vunpack.c.l.b16 %v5493
      %v5565 = vunpack.c.l.b16 %v5495
      %v5566 = vunpack.c.l.b16 %v5496
      %v5567 = vunpack.c.l.b16 %v5498
      %v5568 = vunpack.c.l.b16 %v5499
      %v5569 = vunpack.c.l.b16 %v5501
      %v5570 = vunpack.c.l.b16 %v5502
      %v5571 = vunpack.c.l.b16 %v5504
      %v5572 = vunpack.c.l.b16 %v5505
      %v5573 = vunpack.c.l.b16 %v5507
      %v5574 = vunpack.c.l.b16 %v5508
      %v5575 = vunpack.c.l.b16 %v5510
      %v5576 = vunpack.c.l.b16 %v5511
      %v5577 = vpack.c.b16 %v5546, %v5545
      %v5578 = vpack.c.b16 %v5548, %v5547
      %v5579 = vpack.c.b16 %v5550, %v5549
      %v5580 = vpack.c.b16 %v5552, %v5551
      %v5581 = vpack.c.b16 %v5554, %v5553
      %v5582 = vpack.c.b16 %v5556, %v5555
      %v5583 = vpack.c.b16 %v5558, %v5557
      %v5584 = vpack.c.b16 %v5560, %v5559
      %v5585 = vpack.c.b16 %v5562, %v5561
      %v5586 = vpack.c.b16 %v5564, %v5563
      %v5587 = vpack.c.b16 %v5566, %v5565
      %v5588 = vpack.c.b16 %v5568, %v5567
      %v5589 = vpack.c.b16 %v5570, %v5569
      %v5590 = vpack.c.b16 %v5572, %v5571
      %v5591 = vpack.c.b16 %v5574, %v5573
      %v5592 = vpack.c.b16 %v5576, %v5575
      %v5609 = vunpack.c.l.b16 %v5467
      %v5610 = vunpack.c.l.b16 %v5470
      %v5611 = vunpack.c.l.b16 %v5473
      %v5612 = vunpack.c.l.b16 %v5476
      %v5613 = vunpack.c.l.b16 %v5479
      %v5614 = vunpack.c.l.b16 %v5482
      %v5615 = vunpack.c.l.b16 %v5485
      %v5616 = vunpack.c.l.b16 %v5488
      %v5617 = vunpack.c.l.b16 %v5491
      %v5618 = vunpack.c.l.b16 %v5494
      %v5619 = vunpack.c.l.b16 %v5497
      %v5620 = vunpack.c.l.b16 %v5500
      %v5621 = vunpack.c.l.b16 %v5503
      %v5622 = vunpack.c.l.b16 %v5506
      %v5623 = vunpack.c.l.b16 %v5509
      %v5624 = vunpack.c.l.b16 %v5512
      %v5625 = vpack.c.b16 %v5609, %v5609
      %v5626 = vpack.c.b16 %v5610, %v5610
      %v5627 = vpack.c.b16 %v5611, %v5611
      %v5628 = vpack.c.b16 %v5612, %v5612
      %v5629 = vpack.c.b16 %v5613, %v5613
      %v5630 = vpack.c.b16 %v5614, %v5614
      %v5631 = vpack.c.b16 %v5615, %v5615
      %v5632 = vpack.c.b16 %v5616, %v5616
      %v5633 = vpack.c.b16 %v5617, %v5617
      %v5634 = vpack.c.b16 %v5618, %v5618
      %v5635 = vpack.c.b16 %v5619, %v5619
      %v5636 = vpack.c.b16 %v5620, %v5620
      %v5637 = vpack.c.b16 %v5621, %v5621
      %v5638 = vpack.c.b16 %v5622, %v5622
      %v5639 = vpack.c.b16 %v5623, %v5623
      %v5640 = vpack.c.b16 %v5624, %v5624
      %v5642 = vshrl.u32 %v5577, 16
      %v5644 = vshll.u32 %v5577, 16
      %v5646 = vrot.slane %v5644, 1
      %v5647 = vor.u32 %v5642, %v5646
      %v5649 = vshll.u32 %v5625, 16
      %v5651 = vrot.slane %v5649, 1
      %v5652 = vsel %vm395, %v5647, %v5651
      %v5654 = vshrl.u32 %v5578, 16
      %v5656 = vshll.u32 %v5578, 16
      %v5658 = vrot.slane %v5656, 1
      %v5659 = vor.u32 %v5654, %v5658
      %v5661 = vshll.u32 %v5626, 16
      %v5663 = vrot.slane %v5661, 1
      %v5664 = vsel %vm395, %v5659, %v5663
      %v5666 = vshrl.u32 %v5579, 16
      %v5668 = vshll.u32 %v5579, 16
      %v5670 = vrot.slane %v5668, 1
      %v5671 = vor.u32 %v5666, %v5670
      %v5673 = vshll.u32 %v5627, 16
      %v5675 = vrot.slane %v5673, 1
      %v5676 = vsel %vm395, %v5671, %v5675
      %v5678 = vshrl.u32 %v5580, 16
      %v5680 = vshll.u32 %v5580, 16
      %v5682 = vrot.slane %v5680, 1
      %v5683 = vor.u32 %v5678, %v5682
      %v5685 = vshll.u32 %v5628, 16
      %v5687 = vrot.slane %v5685, 1
      %v5688 = vsel %vm395, %v5683, %v5687
      %v5690 = vshrl.u32 %v5581, 16
      %v5692 = vshll.u32 %v5581, 16
      %v5694 = vrot.slane %v5692, 1
      %v5695 = vor.u32 %v5690, %v5694
      %v5697 = vshll.u32 %v5629, 16
      %v5699 = vrot.slane %v5697, 1
      %v5700 = vsel %vm395, %v5695, %v5699
      %v5702 = vshrl.u32 %v5582, 16
      %v5704 = vshll.u32 %v5582, 16
      %v5706 = vrot.slane %v5704, 1
      %v5707 = vor.u32 %v5702, %v5706
      %v5709 = vshll.u32 %v5630, 16
      %v5711 = vrot.slane %v5709, 1
      %v5712 = vsel %vm395, %v5707, %v5711
      %v5714 = vshrl.u32 %v5583, 16
      %v5716 = vshll.u32 %v5583, 16
      %v5718 = vrot.slane %v5716, 1
      %v5719 = vor.u32 %v5714, %v5718
      %v5721 = vshll.u32 %v5631, 16
      %v5723 = vrot.slane %v5721, 1
      %v5724 = vsel %vm395, %v5719, %v5723
      %v5726 = vshrl.u32 %v5584, 16
      %v5728 = vshll.u32 %v5584, 16
      %v5730 = vrot.slane %v5728, 1
      %v5731 = vor.u32 %v5726, %v5730
      %v5733 = vshll.u32 %v5632, 16
      %v5735 = vrot.slane %v5733, 1
      %v5736 = vsel %vm395, %v5731, %v5735
      %v5738 = vshrl.u32 %v5585, 16
      %v5740 = vshll.u32 %v5585, 16
      %v5742 = vrot.slane %v5740, 1
      %v5743 = vor.u32 %v5738, %v5742
      %v5745 = vshll.u32 %v5633, 16
      %v5747 = vrot.slane %v5745, 1
      %v5748 = vsel %vm395, %v5743, %v5747
      %v5750 = vshrl.u32 %v5586, 16
      %v5752 = vshll.u32 %v5586, 16
      %v5754 = vrot.slane %v5752, 1
      %v5755 = vor.u32 %v5750, %v5754
      %v5757 = vshll.u32 %v5634, 16
      %v5759 = vrot.slane %v5757, 1
      %v5760 = vsel %vm395, %v5755, %v5759
      %v5762 = vshrl.u32 %v5587, 16
      %v5764 = vshll.u32 %v5587, 16
      %v5766 = vrot.slane %v5764, 1
      %v5767 = vor.u32 %v5762, %v5766
      %v5769 = vshll.u32 %v5635, 16
      %v5771 = vrot.slane %v5769, 1
      %v5772 = vsel %vm395, %v5767, %v5771
      %v5774 = vshrl.u32 %v5588, 16
      %v5776 = vshll.u32 %v5588, 16
      %v5778 = vrot.slane %v5776, 1
      %v5779 = vor.u32 %v5774, %v5778
      %v5781 = vshll.u32 %v5636, 16
      %v5783 = vrot.slane %v5781, 1
      %v5784 = vsel %vm395, %v5779, %v5783
      %v5786 = vshrl.u32 %v5589, 16
      %v5788 = vshll.u32 %v5589, 16
      %v5790 = vrot.slane %v5788, 1
      %v5791 = vor.u32 %v5786, %v5790
      %v5793 = vshll.u32 %v5637, 16
      %v5795 = vrot.slane %v5793, 1
      %v5796 = vsel %vm395, %v5791, %v5795
      %v5798 = vshrl.u32 %v5590, 16
      %v5800 = vshll.u32 %v5590, 16
      %v5802 = vrot.slane %v5800, 1
      %v5803 = vor.u32 %v5798, %v5802
      %v5805 = vshll.u32 %v5638, 16
      %v5807 = vrot.slane %v5805, 1
      %v5808 = vsel %vm395, %v5803, %v5807
      %v5810 = vshrl.u32 %v5591, 16
      %v5812 = vshll.u32 %v5591, 16
      %v5814 = vrot.slane %v5812, 1
      %v5815 = vor.u32 %v5810, %v5814
      %v5817 = vshll.u32 %v5639, 16
      %v5819 = vrot.slane %v5817, 1
      %v5820 = vsel %vm395, %v5815, %v5819
      %v5822 = vshrl.u32 %v5592, 16
      %v5824 = vshll.u32 %v5592, 16
      %v5826 = vrot.slane %v5824, 1
      %v5827 = vor.u32 %v5822, %v5826
      %v5829 = vshll.u32 %v5640, 16
      %v5831 = vrot.slane %v5829, 1
      %v5832 = vsel %vm395, %v5827, %v5831
      %5833 = vrot.lane.b32.xlu0 %v5652, 4
      %v5834 = vpop.permute.xlu0 %5833
      %5835 = vrot.lane.b32.xlu0 %v5664, 4
      %v5836 = vpop.permute.xlu0 %5835
      %5837 = vrot.lane.b32.xlu0 %v5676, 4
      %v5838 = vpop.permute.xlu0 %5837
      %5839 = vrot.lane.b32.xlu0 %v5688, 4
      %v5840 = vpop.permute.xlu0 %5839
      %5841 = vrot.lane.b32.xlu0 %v5700, 4
      %v5842 = vpop.permute.xlu0 %5841
      %5843 = vrot.lane.b32.xlu0 %v5712, 4
      %v5844 = vpop.permute.xlu0 %5843
      %5845 = vrot.lane.b32.xlu0 %v5724, 4
      %v5846 = vpop.permute.xlu0 %5845
      %5847 = vrot.lane.b32.xlu0 %v5736, 4
      %v5848 = vpop.permute.xlu0 %5847
      %5849 = vrot.lane.b32.xlu0 %v5748, 4
      %v5850 = vpop.permute.xlu0 %5849
      %5851 = vrot.lane.b32.xlu0 %v5760, 4
      %v5852 = vpop.permute.xlu0 %5851
      %5853 = vrot.lane.b32.xlu0 %v5772, 4
      %v5854 = vpop.permute.xlu0 %5853
      %5855 = vrot.lane.b32.xlu0 %v5784, 4
      %v5856 = vpop.permute.xlu0 %5855
      %5857 = vrot.lane.b32.xlu0 %v5796, 4
      %v5858 = vpop.permute.xlu0 %5857
      %5859 = vrot.lane.b32.xlu0 %v5808, 4
      %v5860 = vpop.permute.xlu0 %5859
      %5861 = vrot.lane.b32.xlu0 %v5820, 4
      %v5862 = vpop.permute.xlu0 %5861
      %5863 = vrot.lane.b32.xlu0 %v5832, 4
      %v5864 = vpop.permute.xlu0 %5863
      %v5865 = vrot.slane %v5577, 1
      %v5866 = vrot.slane %v5625, 1
      %v5867 = vsel %vm620, %v5865, %v5866
      %v5868 = vrot.slane %v5578, 1
      %v5869 = vrot.slane %v5626, 1
      %v5870 = vsel %vm620, %v5868, %v5869
      %v5871 = vrot.slane %v5579, 1
      %v5872 = vrot.slane %v5627, 1
      %v5873 = vsel %vm620, %v5871, %v5872
      %v5874 = vrot.slane %v5580, 1
      %v5875 = vrot.slane %v5628, 1
      %v5876 = vsel %vm620, %v5874, %v5875
      %v5877 = vrot.slane %v5581, 1
      %v5878 = vrot.slane %v5629, 1
      %v5879 = vsel %vm620, %v5877, %v5878
      %v5880 = vrot.slane %v5582, 1
      %v5881 = vrot.slane %v5630, 1
      %v5882 = vsel %vm620, %v5880, %v5881
      %v5883 = vrot.slane %v5583, 1
      %v5884 = vrot.slane %v5631, 1
      %v5885 = vsel %vm620, %v5883, %v5884
      %v5886 = vrot.slane %v5584, 1
      %v5887 = vrot.slane %v5632, 1
      %v5888 = vsel %vm620, %v5886, %v5887
      %v5889 = vrot.slane %v5585, 1
      %v5890 = vrot.slane %v5633, 1
      %v5891 = vsel %vm620, %v5889, %v5890
      %v5892 = vrot.slane %v5586, 1
      %v5893 = vrot.slane %v5634, 1
      %v5894 = vsel %vm620, %v5892, %v5893
      %v5895 = vrot.slane %v5587, 1
      %v5896 = vrot.slane %v5635, 1
      %v5897 = vsel %vm620, %v5895, %v5896
      %v5898 = vrot.slane %v5588, 1
      %v5899 = vrot.slane %v5636, 1
      %v5900 = vsel %vm620, %v5898, %v5899
      %v5901 = vrot.slane %v5589, 1
      %v5902 = vrot.slane %v5637, 1
      %v5903 = vsel %vm620, %v5901, %v5902
      %v5904 = vrot.slane %v5590, 1
      %v5905 = vrot.slane %v5638, 1
      %v5906 = vsel %vm620, %v5904, %v5905
      %v5907 = vrot.slane %v5591, 1
      %v5908 = vrot.slane %v5639, 1
      %v5909 = vsel %vm620, %v5907, %v5908
      %v5910 = vrot.slane %v5592, 1
      %v5911 = vrot.slane %v5640, 1
      %v5912 = vsel %vm620, %v5910, %v5911
      %5913 = vrot.lane.b32.xlu0 %v5867, 8
      %v5914 = vpop.permute.xlu0 %5913
      %5915 = vrot.lane.b32.xlu0 %v5870, 8
      %v5916 = vpop.permute.xlu0 %5915
      %5917 = vrot.lane.b32.xlu0 %v5873, 8
      %v5918 = vpop.permute.xlu0 %5917
      %5919 = vrot.lane.b32.xlu0 %v5876, 8
      %v5920 = vpop.permute.xlu0 %5919
      %5921 = vrot.lane.b32.xlu0 %v5879, 8
      %v5922 = vpop.permute.xlu0 %5921
      %5923 = vrot.lane.b32.xlu0 %v5882, 8
      %v5924 = vpop.permute.xlu0 %5923
      %5925 = vrot.lane.b32.xlu0 %v5885, 8
      %v5926 = vpop.permute.xlu0 %5925
      %5927 = vrot.lane.b32.xlu0 %v5888, 8
      %v5928 = vpop.permute.xlu0 %5927
      %5929 = vrot.lane.b32.xlu0 %v5891, 8
      %v5930 = vpop.permute.xlu0 %5929
      %5931 = vrot.lane.b32.xlu0 %v5894, 8
      %v5932 = vpop.permute.xlu0 %5931
      %5933 = vrot.lane.b32.xlu0 %v5897, 8
      %v5934 = vpop.permute.xlu0 %5933
      %5935 = vrot.lane.b32.xlu0 %v5900, 8
      %v5936 = vpop.permute.xlu0 %5935
      %5937 = vrot.lane.b32.xlu0 %v5903, 8
      %v5938 = vpop.permute.xlu0 %5937
      %5939 = vrot.lane.b32.xlu0 %v5906, 8
      %v5940 = vpop.permute.xlu0 %5939
      %5941 = vrot.lane.b32.xlu0 %v5909, 8
      %v5942 = vpop.permute.xlu0 %5941
      %5943 = vrot.lane.b32.xlu0 %v5912, 8
      %v5944 = vpop.permute.xlu0 %5943
      %v5946 = vsel %vm701, %v5577, %v5834
      %v5948 = vsel %vm701, %v5578, %v5836
      %v5950 = vsel %vm701, %v5579, %v5838
      %v5952 = vsel %vm701, %v5580, %v5840
      %v5954 = vsel %vm701, %v5581, %v5842
      %v5956 = vsel %vm701, %v5582, %v5844
      %v5958 = vsel %vm701, %v5583, %v5846
      %v5960 = vsel %vm701, %v5584, %v5848
      %v5962 = vsel %vm701, %v5585, %v5850
      %v5964 = vsel %vm701, %v5586, %v5852
      %v5966 = vsel %vm701, %v5587, %v5854
      %v5968 = vsel %vm701, %v5588, %v5856
      %v5970 = vsel %vm701, %v5589, %v5858
      %v5972 = vsel %vm701, %v5590, %v5860
      %v5974 = vsel %vm701, %v5591, %v5862
      %v5976 = vsel %vm701, %v5592, %v5864
      %v5978 = vsel %vm734, %v5946, %v5914
      %v5980 = vsel %vm734, %v5948, %v5916
      %v5982 = vsel %vm734, %v5950, %v5918
      %v5984 = vsel %vm734, %v5952, %v5920
      %v5986 = vsel %vm734, %v5954, %v5922
      %v5988 = vsel %vm734, %v5956, %v5924
      %v5990 = vsel %vm734, %v5958, %v5926
      %v5992 = vsel %vm734, %v5960, %v5928
      %v5994 = vsel %vm734, %v5962, %v5930
      %v5996 = vsel %vm734, %v5964, %v5932
      %v5998 = vsel %vm734, %v5966, %v5934
      %v6000 = vsel %vm734, %v5968, %v5936
      %v6002 = vsel %vm734, %v5970, %v5938
      %v6004 = vsel %vm734, %v5972, %v5940
      %v6006 = vsel %vm734, %v5974, %v5942
      %v6008 = vsel %vm734, %v5976, %v5944
      %s6009 = scalar_lea.vmem %s3, 16
      %v6010 = vld [vmem:[%s6009] sm:$0xf]
      %v6011 = vld [vmem:[%s6009 + $0x4] sm:$0x3]
      %v6014 = vunpack.c.l.b16 %v6010
      %v6015 = vunpack.c.l.b16 %v6011
      %v6016 = vpack.c.b16 %v6015, %v6014
      %v6017 = vsel %vm774, %v5978, 0
      %v6019 = vsel %vm774, %v5980, 0
      %v6021 = vsel %vm774, %v5982, 0
      %v6023 = vsel %vm774, %v5984, 0
      %v6025 = vsel %vm774, %v5986, 0
      %v6027 = vsel %vm774, %v5988, 0
      %v6029 = vsel %vm774, %v5990, 0
      %v6031 = vsel %vm774, %v5992, 0
      %v6033 = vsel %vm774, %v5994, 0
      %v6035 = vsel %vm774, %v5996, 0
      %v6037 = vsel %vm774, %v5998, 0
      %v6039 = vsel %vm774, %v6000, 0
      %v6041 = vsel %vm774, %v6002, 0
      %v6043 = vsel %vm774, %v6004, 0
      %v6045 = vsel %vm774, %v6006, 0
      %v6047 = vsel %vm774, %v6008, 0
      %v6050 = vsel %vm807, %v6016, 0
      %6052 = vmatprep.subr.bf16.mxu0 0
      %6053 = vmatpush1.bf16.msra.mxu0 %v6050
      %6054 = vmatprep.subr.bf16.mxu0 0
      %6055 = vmatpush1.bf16.msra.mxu0 0
      %6056 = vmatprep.subr.bf16.mxu0 0
      %6057 = vmatpush1.bf16.msra.mxu0 0
      %6058 = vmatprep.subr.bf16.mxu0 0
      %6059 = vmatpush1.bf16.msra.mxu0 0
      %6060 = vmatprep.subr.bf16.mxu0 0
      %6061 = vmatpush1.bf16.msra.mxu0 0
      %6062 = vmatprep.subr.bf16.mxu0 0
      %6063 = vmatpush1.bf16.msra.mxu0 0
      %6064 = vmatprep.subr.bf16.mxu0 0
      %6065 = vmatpush1.bf16.msra.mxu0 0
      %6066 = vmatprep.subr.bf16.mxu0 0
      %6067 = vmatpush1.bf16.msra.mxu0 0
      %6068 = vmatprep.subr.bf16.mxu0 0
      %6069 = vmatpush1.bf16.msra.mxu0 0
      %6070 = vmatprep.subr.bf16.mxu0 0
      %6071 = vmatpush1.bf16.msra.mxu0 0
      %6072 = vmatprep.subr.bf16.mxu0 0
      %6073 = vmatpush1.bf16.msra.mxu0 0
      %6074 = vmatprep.subr.bf16.mxu0 0
      %6075 = vmatpush1.bf16.msra.mxu0 0
      %6076 = vmatprep.subr.bf16.mxu0 0
      %6077 = vmatpush1.bf16.msra.mxu0 0
      %6078 = vmatprep.subr.bf16.mxu0 0
      %6079 = vmatpush1.bf16.msra.mxu0 0
      %6080 = vmatprep.subr.bf16.mxu0 0
      %6081 = vmatpush1.bf16.msra.mxu0 0
      %6082 = vmatprep.subr.bf16.mxu0 0
      %6083 = vmatpush1.bf16.msra.mxu0 0
      %6084 = vmatprep.mubr.bf16.mxu0 0
      %6085 = vmatmul.mubr.bf16.gmra.mrb[0].mxu0 %v6017
      %v6086 = vpop.f32.mrb[0].mxu0
      %v6087 = vadd.f32 0.0, %v6086
      %v6088 = vpop.f32.mrb[0].mxu0
      %v6089 = vpop.f32.mrb[0].mxu0
      %v6090 = vadd.f32 0.0, %v6089
      %v6091 = vpop.f32.mrb[0].mxu0
      %6092 = vmatprep.mubr.bf16.mxu0 0
      %6093 = vmatmul.mubr.bf16.gmra.mrb[0].mxu0 %v6019
      %v6094 = vpop.f32.mrb[0].mxu0
      %v6095 = vadd.f32 0.0, %v6094
      %v6096 = vpop.f32.mrb[0].mxu0
      %v6097 = vpop.f32.mrb[0].mxu0
      %v6098 = vadd.f32 0.0, %v6097
      %v6099 = vpop.f32.mrb[0].mxu0
      %6100 = vmatprep.mubr.bf16.mxu0 0
      %6101 = vmatmul.mubr.bf16.gmra.mrb[0].mxu0 %v6021
      %v6102 = vpop.f32.mrb[0].mxu0
      %v6103 = vadd.f32 0.0, %v6102
      %v6104 = vpop.f32.mrb[0].mxu0
      %v6105 = vpop.f32.mrb[0].mxu0
      %v6106 = vadd.f32 0.0, %v6105
      %v6107 = vpop.f32.mrb[0].mxu0
      %6108 = vmatprep.mubr.bf16.mxu0 0
      %6109 = vmatmul.mubr.bf16.gmra.mrb[0].mxu0 %v6023
      %v6110 = vpop.f32.mrb[0].mxu0
      %v6111 = vadd.f32 0.0, %v6110
      %v6112 = vpop.f32.mrb[0].mxu0
      %v6113 = vpop.f32.mrb[0].mxu0
      %v6114 = vadd.f32 0.0, %v6113
      %v6115 = vpop.f32.mrb[0].mxu0
      %6116 = vmatprep.mubr.bf16.mxu0 0
      %6117 = vmatmul.mubr.bf16.gmra.mrb[0].mxu0 %v6025
      %v6118 = vpop.f32.mrb[0].mxu0
      %v6119 = vadd.f32 0.0, %v6118
      %v6120 = vpop.f32.mrb[0].mxu0
      %v6121 = vpop.f32.mrb[0].mxu0
      %v6122 = vadd.f32 0.0, %v6121
      %v6123 = vpop.f32.mrb[0].mxu0
      %6124 = vmatprep.mubr.bf16.mxu0 0
      %6125 = vmatmul.mubr.bf16.gmra.mrb[0].mxu0 %v6027
      %v6126 = vpop.f32.mrb[0].mxu0
      %v6127 = vadd.f32 0.0, %v6126
      %v6128 = vpop.f32.mrb[0].mxu0
      %v6129 = vpop.f32.mrb[0].mxu0
      %v6130 = vadd.f32 0.0, %v6129
      %v6131 = vpop.f32.mrb[0].mxu0
      %6132 = vmatprep.mubr.bf16.mxu0 0
      %6133 = vmatmul.mubr.bf16.gmra.mrb[0].mxu0 %v6029
      %v6134 = vpop.f32.mrb[0].mxu0
      %v6135 = vadd.f32 0.0, %v6134
      %v6136 = vpop.f32.mrb[0].mxu0
      %v6137 = vpop.f32.mrb[0].mxu0
      %v6138 = vadd.f32 0.0, %v6137
      %v6139 = vpop.f32.mrb[0].mxu0
      %6140 = vmatprep.mubr.bf16.mxu0 0
      %6141 = vmatmul.mubr.bf16.gmra.mrb[0].mxu0 %v6031
      %v6142 = vpop.f32.mrb[0].mxu0
      %v6143 = vadd.f32 0.0, %v6142
      %v6144 = vpop.f32.mrb[0].mxu0
      %v6145 = vpop.f32.mrb[0].mxu0
      %v6146 = vadd.f32 0.0, %v6145
      %v6147 = vpop.f32.mrb[0].mxu0
      %6148 = vmatprep.mubr.bf16.mxu0 0
      %6149 = vmatmul.mubr.bf16.gmra.mrb[0].mxu0 %v6033
      %v6150 = vpop.f32.mrb[0].mxu0
      %v6151 = vadd.f32 0.0, %v6150
      %v6152 = vpop.f32.mrb[0].mxu0
      %v6153 = vpop.f32.mrb[0].mxu0
      %v6154 = vadd.f32 0.0, %v6153
      %v6155 = vpop.f32.mrb[0].mxu0
      %6156 = vmatprep.mubr.bf16.mxu0 0
      %6157 = vmatmul.mubr.bf16.gmra.mrb[0].mxu0 %v6035
      %v6158 = vpop.f32.mrb[0].mxu0
      %v6159 = vadd.f32 0.0, %v6158
      %v6160 = vpop.f32.mrb[0].mxu0
      %v6161 = vpop.f32.mrb[0].mxu0
      %v6162 = vadd.f32 0.0, %v6161
      %v6163 = vpop.f32.mrb[0].mxu0
      %6164 = vmatprep.mubr.bf16.mxu0 0
      %6165 = vmatmul.mubr.bf16.gmra.mrb[0].mxu0 %v6037
      %v6166 = vpop.f32.mrb[0].mxu0
      %v6167 = vadd.f32 0.0, %v6166
      %v6168 = vpop.f32.mrb[0].mxu0
      %v6169 = vpop.f32.mrb[0].mxu0
      %v6170 = vadd.f32 0.0, %v6169
      %v6171 = vpop.f32.mrb[0].mxu0
      %6172 = vmatprep.mubr.bf16.mxu0 0
      %6173 = vmatmul.mubr.bf16.gmra.mrb[0].mxu0 %v6039
      %v6174 = vpop.f32.mrb[0].mxu0
      %v6175 = vadd.f32 0.0, %v6174
      %v6176 = vpop.f32.mrb[0].mxu0
      %v6177 = vpop.f32.mrb[0].mxu0
      %v6178 = vadd.f32 0.0, %v6177
      %v6179 = vpop.f32.mrb[0].mxu0
      %6180 = vmatprep.mubr.bf16.mxu0 0
      %6181 = vmatmul.mubr.bf16.gmra.mrb[0].mxu0 %v6041
      %v6182 = vpop.f32.mrb[0].mxu0
      %v6183 = vadd.f32 0.0, %v6182
      %v6184 = vpop.f32.mrb[0].mxu0
      %v6185 = vpop.f32.mrb[0].mxu0
      %v6186 = vadd.f32 0.0, %v6185
      %v6187 = vpop.f32.mrb[0].mxu0
      %6188 = vmatprep.mubr.bf16.mxu0 0
      %6189 = vmatmul.mubr.bf16.gmra.mrb[0].mxu0 %v6043
      %v6190 = vpop.f32.mrb[0].mxu0
      %v6191 = vadd.f32 0.0, %v6190
      %v6192 = vpop.f32.mrb[0].mxu0
      %v6193 = vpop.f32.mrb[0].mxu0
      %v6194 = vadd.f32 0.0, %v6193
      %v6195 = vpop.f32.mrb[0].mxu0
      %6196 = vmatprep.mubr.bf16.mxu0 0
      %6197 = vmatmul.mubr.bf16.gmra.mrb[0].mxu0 %v6045
      %v6198 = vpop.f32.mrb[0].mxu0
      %v6199 = vadd.f32 0.0, %v6198
      %v6200 = vpop.f32.mrb[0].mxu0
      %v6201 = vpop.f32.mrb[0].mxu0
      %v6202 = vadd.f32 0.0, %v6201
      %v6203 = vpop.f32.mrb[0].mxu0
      %6204 = vmatprep.mubr.bf16.mxu0 0
      %6205 = vmatmul.mubr.bf16.gmra.mrb[0].mxu0 %v6047
      %v6206 = vpop.f32.mrb[0].mxu0
      %v6207 = vadd.f32 0.0, %v6206
      %v6208 = vpop.f32.mrb[0].mxu0
      %v6209 = vpop.f32.mrb[0].mxu0
      %v6210 = vadd.f32 0.0, %v6209
      %v6211 = vpop.f32.mrb[0].mxu0
      %6212 = vdwg.mxu0
      %v6213 = vld [vmem:[#allocation2] sm:$0xff]
      %v6214 = vld [vmem:[#allocation2 + $0x8] sm:$0xff]
      %v6215 = vld [vmem:[#allocation2 + $0x10] sm:$0xff]
      %v6216 = vld [vmem:[#allocation2 + $0x18] sm:$0xff]
      %v6217 = vld [vmem:[#allocation2 + $0x20] sm:$0xff]
      %v6218 = vld [vmem:[#allocation2 + $0x28] sm:$0xff]
      %v6219 = vld [vmem:[#allocation2 + $0x30] sm:$0xff]
      %v6220 = vld [vmem:[#allocation2 + $0x38] sm:$0xff]
      %v6221 = vld [vmem:[#allocation2 + $0x40] sm:$0xff]
      %v6222 = vld [vmem:[#allocation2 + $0x48] sm:$0xff]
      %v6223 = vld [vmem:[#allocation2 + $0x50] sm:$0xff]
      %v6224 = vld [vmem:[#allocation2 + $0x58] sm:$0xff]
      %v6225 = vld [vmem:[#allocation2 + $0x60] sm:$0xff]
      %v6226 = vld [vmem:[#allocation2 + $0x68] sm:$0xff]
      %v6227 = vld [vmem:[#allocation2 + $0x70] sm:$0xff]
      %v6228 = vld [vmem:[#allocation2 + $0x78] sm:$0xff]
      %v6229 = vld [vmem:[#allocation2 + $0x80] sm:$0xff]
      %v6230 = vld [vmem:[#allocation2 + $0x88] sm:$0xff]
      %v6231 = vld [vmem:[#allocation2 + $0x90] sm:$0xff]
      %v6232 = vld [vmem:[#allocation2 + $0x98] sm:$0xff]
      %v6233 = vld [vmem:[#allocation2 + $0xa0] sm:$0xff]
      %v6234 = vld [vmem:[#allocation2 + $0xa8] sm:$0xff]
      %v6235 = vld [vmem:[#allocation2 + $0xb0] sm:$0xff]
      %v6236 = vld [vmem:[#allocation2 + $0xb8] sm:$0xff]
      %v6237 = vld [vmem:[#allocation2 + $0xc0] sm:$0xff]
      %v6238 = vld [vmem:[#allocation2 + $0xc8] sm:$0xff]
      %v6239 = vld [vmem:[#allocation2 + $0xd0] sm:$0xff]
      %v6240 = vld [vmem:[#allocation2 + $0xd8] sm:$0xff]
      %v6241 = vld [vmem:[#allocation2 + $0xe0] sm:$0xff]
      %v6242 = vld [vmem:[#allocation2 + $0xe8] sm:$0xff]
      %v6243 = vld [vmem:[#allocation2 + $0xf0] sm:$0xff]
      %v6244 = vld [vmem:[#allocation2 + $0xf8] sm:$0xff]
      %v6245 = vadd.f32 %v6213, %v6087
      %v6246 = vadd.f32 %v6214, %v6090
      %v6247 = vadd.f32 %v6215, %v6095
      %v6248 = vadd.f32 %v6216, %v6098
      %v6249 = vadd.f32 %v6217, %v6103
      %v6250 = vadd.f32 %v6218, %v6106
      %v6251 = vadd.f32 %v6219, %v6111
      %v6252 = vadd.f32 %v6220, %v6114
      %v6253 = vadd.f32 %v6221, %v6119
      %v6254 = vadd.f32 %v6222, %v6122
      %v6255 = vadd.f32 %v6223, %v6127
      %v6256 = vadd.f32 %v6224, %v6130
      %v6257 = vadd.f32 %v6225, %v6135
      %v6258 = vadd.f32 %v6226, %v6138
      %v6259 = vadd.f32 %v6227, %v6143
      %v6260 = vadd.f32 %v6228, %v6146
      %v6261 = vadd.f32 %v6229, %v6151
      %v6262 = vadd.f32 %v6230, %v6154
      %v6263 = vadd.f32 %v6231, %v6159
      %v6264 = vadd.f32 %v6232, %v6162
      %v6265 = vadd.f32 %v6233, %v6167
      %v6266 = vadd.f32 %v6234, %v6170
      %v6267 = vadd.f32 %v6235, %v6175
      %v6268 = vadd.f32 %v6236, %v6178
      %v6269 = vadd.f32 %v6237, %v6183
      %v6270 = vadd.f32 %v6238, %v6186
      %v6271 = vadd.f32 %v6239, %v6191
      %v6272 = vadd.f32 %v6240, %v6194
      %v6273 = vadd.f32 %v6241, %v6199
      %v6274 = vadd.f32 %v6242, %v6202
      %v6275 = vadd.f32 %v6243, %v6207
      %v6276 = vadd.f32 %v6244, %v6210
      %6277 = vst.msk [vmem:[#allocation2] sm:$0xff] %vm701, %v6245
      %6278 = vst.msk [vmem:[#allocation2 + $0x8] sm:$0xff] %vm701, %v6246
      %6279 = vst.msk [vmem:[#allocation2 + $0x10] sm:$0xff] %vm701, %v6247
      %6280 = vst.msk [vmem:[#allocation2 + $0x18] sm:$0xff] %vm701, %v6248
      %6281 = vst.msk [vmem:[#allocation2 + $0x20] sm:$0xff] %vm701, %v6249
      %6282 = vst.msk [vmem:[#allocation2 + $0x28] sm:$0xff] %vm701, %v6250
      %6283 = vst.msk [vmem:[#allocation2 + $0x30] sm:$0xff] %vm701, %v6251
      %6284 = vst.msk [vmem:[#allocation2 + $0x38] sm:$0xff] %vm701, %v6252
      %6285 = vst.msk [vmem:[#allocation2 + $0x40] sm:$0xff] %vm701, %v6253
      %6286 = vst.msk [vmem:[#allocation2 + $0x48] sm:$0xff] %vm701, %v6254
      %6287 = vst.msk [vmem:[#allocation2 + $0x50] sm:$0xff] %vm701, %v6255
      %6288 = vst.msk [vmem:[#allocation2 + $0x58] sm:$0xff] %vm701, %v6256
      %6289 = vst.msk [vmem:[#allocation2 + $0x60] sm:$0xff] %vm701, %v6257
      %6290 = vst.msk [vmem:[#allocation2 + $0x68] sm:$0xff] %vm701, %v6258
      %6291 = vst.msk [vmem:[#allocation2 + $0x70] sm:$0xff] %vm701, %v6259
      %6292 = vst.msk [vmem:[#allocation2 + $0x78] sm:$0xff] %vm701, %v6260
      %6293 = vst.msk [vmem:[#allocation2 + $0x80] sm:$0xff] %vm701, %v6261
      %6294 = vst.msk [vmem:[#allocation2 + $0x88] sm:$0xff] %vm701, %v6262
      %6295 = vst.msk [vmem:[#allocation2 + $0x90] sm:$0xff] %vm701, %v6263
      %6296 = vst.msk [vmem:[#allocation2 + $0x98] sm:$0xff] %vm701, %v6264
      %6297 = vst.msk [vmem:[#allocation2 + $0xa0] sm:$0xff] %vm701, %v6265
      %6298 = vst.msk [vmem:[#allocation2 + $0xa8] sm:$0xff] %vm701, %v6266
      %6299 = vst.msk [vmem:[#allocation2 + $0xb0] sm:$0xff] %vm701, %v6267
      %6300 = vst.msk [vmem:[#allocation2 + $0xb8] sm:$0xff] %vm701, %v6268
      %6301 = vst.msk [vmem:[#allocation2 + $0xc0] sm:$0xff] %vm701, %v6269
      %6302 = vst.msk [vmem:[#allocation2 + $0xc8] sm:$0xff] %vm701, %v6270
      %6303 = vst.msk [vmem:[#allocation2 + $0xd0] sm:$0xff] %vm701, %v6271
      %6304 = vst.msk [vmem:[#allocation2 + $0xd8] sm:$0xff] %vm701, %v6272
      %6305 = vst.msk [vmem:[#allocation2 + $0xe0] sm:$0xff] %vm701, %v6273
      %6306 = vst.msk [vmem:[#allocation2 + $0xe8] sm:$0xff] %vm701, %v6274
      %6307 = vst.msk [vmem:[#allocation2 + $0xf0] sm:$0xff] %vm701, %v6275
      %6308 = vst.msk [vmem:[#allocation2 + $0xf8] sm:$0xff] %vm701, %v6276
      %v6309 = vld [vmem:[#allocation2] sm:$0xff]
      %v6310 = vld [vmem:[#allocation2 + $0x8] sm:$0xff]
      %v6311 = vld [vmem:[#allocation2 + $0x10] sm:$0xff]
      %v6312 = vld [vmem:[#allocation2 + $0x18] sm:$0xff]
      %v6313 = vld [vmem:[#allocation2 + $0x20] sm:$0xff]
      %v6314 = vld [vmem:[#allocation2 + $0x28] sm:$0xff]
      %v6315 = vld [vmem:[#allocation2 + $0x30] sm:$0xff]
      %v6316 = vld [vmem:[#allocation2 + $0x38] sm:$0xff]
      %v6317 = vld [vmem:[#allocation2 + $0x40] sm:$0xff]
      %v6318 = vld [vmem:[#allocation2 + $0x48] sm:$0xff]
      %v6319 = vld [vmem:[#allocation2 + $0x50] sm:$0xff]
      %v6320 = vld [vmem:[#allocation2 + $0x58] sm:$0xff]
      %v6321 = vld [vmem:[#allocation2 + $0x60] sm:$0xff]
      %v6322 = vld [vmem:[#allocation2 + $0x68] sm:$0xff]
      %v6323 = vld [vmem:[#allocation2 + $0x70] sm:$0xff]
      %v6324 = vld [vmem:[#allocation2 + $0x78] sm:$0xff]
      %v6325 = vld [vmem:[#allocation2 + $0x80] sm:$0xff]
      %v6326 = vld [vmem:[#allocation2 + $0x88] sm:$0xff]
      %v6327 = vld [vmem:[#allocation2 + $0x90] sm:$0xff]
      %v6328 = vld [vmem:[#allocation2 + $0x98] sm:$0xff]
      %v6329 = vld [vmem:[#allocation2 + $0xa0] sm:$0xff]
      %v6330 = vld [vmem:[#allocation2 + $0xa8] sm:$0xff]
      %v6331 = vld [vmem:[#allocation2 + $0xb0] sm:$0xff]
      %v6332 = vld [vmem:[#allocation2 + $0xb8] sm:$0xff]
      %v6333 = vld [vmem:[#allocation2 + $0xc0] sm:$0xff]
      %v6334 = vld [vmem:[#allocation2 + $0xc8] sm:$0xff]
      %v6335 = vld [vmem:[#allocation2 + $0xd0] sm:$0xff]
      %v6336 = vld [vmem:[#allocation2 + $0xd8] sm:$0xff]
      %v6337 = vld [vmem:[#allocation2 + $0xe0] sm:$0xff]
      %v6338 = vld [vmem:[#allocation2 + $0xe8] sm:$0xff]
      %v6339 = vld [vmem:[#allocation2 + $0xf0] sm:$0xff]
      %v6340 = vld [vmem:[#allocation2 + $0xf8] sm:$0xff]
      %v6341 = vsel %vm701, %v6309, 0.0
      %v6342 = vsel %vm701, %v6310, 0.0
      %v6343 = vadd.f32 %v6341, %v6342
      %v6344 = vsel %vm701, %v6311, 0.0
      %v6345 = vadd.f32 %v6343, %v6344
      %v6346 = vsel %vm701, %v6312, 0.0
      %v6347 = vadd.f32 %v6345, %v6346
      %v6348 = vsel %vm701, %v6313, 0.0
      %v6349 = vadd.f32 %v6347, %v6348
      %v6350 = vsel %vm701, %v6314, 0.0
      %v6351 = vadd.f32 %v6349, %v6350
      %v6352 = vsel %vm701, %v6315, 0.0
      %v6353 = vadd.f32 %v6351, %v6352
      %v6354 = vsel %vm701, %v6316, 0.0
      %v6355 = vadd.f32 %v6353, %v6354
      %v6356 = vsel %vm701, %v6317, 0.0
      %v6357 = vadd.f32 %v6355, %v6356
      %v6358 = vsel %vm701, %v6318, 0.0
      %v6359 = vadd.f32 %v6357, %v6358
      %v6360 = vsel %vm701, %v6319, 0.0
      %v6361 = vadd.f32 %v6359, %v6360
      %v6362 = vsel %vm701, %v6320, 0.0
      %v6363 = vadd.f32 %v6361, %v6362
      %v6364 = vsel %vm701, %v6321, 0.0
      %v6365 = vadd.f32 %v6363, %v6364
      %v6366 = vsel %vm701, %v6322, 0.0
      %v6367 = vadd.f32 %v6365, %v6366
      %v6368 = vsel %vm701, %v6323, 0.0
      %v6369 = vadd.f32 %v6367, %v6368
      %v6370 = vsel %vm701, %v6324, 0.0
      %v6371 = vadd.f32 %v6369, %v6370
      %v6372 = vsel %vm701, %v6325, 0.0
      %v6373 = vadd.f32 %v6371, %v6372
      %v6374 = vsel %vm701, %v6326, 0.0
      %v6375 = vadd.f32 %v6373, %v6374
      %v6376 = vsel %vm701, %v6327, 0.0
      %v6377 = vadd.f32 %v6375, %v6376
      %v6378 = vsel %vm701, %v6328, 0.0
      %v6379 = vadd.f32 %v6377, %v6378
      %v6380 = vsel %vm701, %v6329, 0.0
      %v6381 = vadd.f32 %v6379, %v6380
      %v6382 = vsel %vm701, %v6330, 0.0
      %v6383 = vadd.f32 %v6381, %v6382
      %v6384 = vsel %vm701, %v6331, 0.0
      %v6385 = vadd.f32 %v6383, %v6384
      %v6386 = vsel %vm701, %v6332, 0.0
      %v6387 = vadd.f32 %v6385, %v6386
      %v6388 = vsel %vm701, %v6333, 0.0
      %v6389 = vadd.f32 %v6387, %v6388
      %v6390 = vsel %vm701, %v6334, 0.0
      %v6391 = vadd.f32 %v6389, %v6390
      %v6392 = vsel %vm701, %v6335, 0.0
      %v6393 = vadd.f32 %v6391, %v6392
      %v6394 = vsel %vm701, %v6336, 0.0
      %v6395 = vadd.f32 %v6393, %v6394
      %v6396 = vsel %vm701, %v6337, 0.0
      %v6397 = vadd.f32 %v6395, %v6396
      %v6398 = vsel %vm701, %v6338, 0.0
      %v6399 = vadd.f32 %v6397, %v6398
      %v6400 = vsel %vm701, %v6339, 0.0
      %v6401 = vadd.f32 %v6399, %v6400
      %v6402 = vsel %vm701, %v6340, 0.0
      %v6403 = vadd.f32 %v6401, %v6402
      %v6404 = vrot.slane %v6403, 4
      %v6405 = vadd.f32 %v6403, %v6404
      %v6406 = vrot.slane %v6405, 2
      %v6407 = vadd.f32 %v6405, %v6406
      %v6408 = vrot.slane %v6407, 1
      %v6409 = vadd.f32 %v6407, %v6408
      %v6410 = vmul.f32 %v6409, 0.00390625
      %v6411 = vmul.f32 %v6309, %v6309
      %v6412 = vmul.f32 %v6310, %v6310
      %v6413 = vmul.f32 %v6311, %v6311
      %v6414 = vmul.f32 %v6312, %v6312
      %v6415 = vmul.f32 %v6313, %v6313
      %v6416 = vmul.f32 %v6314, %v6314
      %v6417 = vmul.f32 %v6315, %v6315
      %v6418 = vmul.f32 %v6316, %v6316
      %v6419 = vmul.f32 %v6317, %v6317
      %v6420 = vmul.f32 %v6318, %v6318
      %v6421 = vmul.f32 %v6319, %v6319
      %v6422 = vmul.f32 %v6320, %v6320
      %v6423 = vmul.f32 %v6321, %v6321
      %v6424 = vmul.f32 %v6322, %v6322
      %v6425 = vmul.f32 %v6323, %v6323
      %v6426 = vmul.f32 %v6324, %v6324
      %v6427 = vmul.f32 %v6325, %v6325
      %v6428 = vmul.f32 %v6326, %v6326
      %v6429 = vmul.f32 %v6327, %v6327
      %v6430 = vmul.f32 %v6328, %v6328
      %v6431 = vmul.f32 %v6329, %v6329
      %v6432 = vmul.f32 %v6330, %v6330
      %v6433 = vmul.f32 %v6331, %v6331
      %v6434 = vmul.f32 %v6332, %v6332
      %v6435 = vmul.f32 %v6333, %v6333
      %v6436 = vmul.f32 %v6334, %v6334
      %v6437 = vmul.f32 %v6335, %v6335
      %v6438 = vmul.f32 %v6336, %v6336
      %v6439 = vmul.f32 %v6337, %v6337
      %v6440 = vmul.f32 %v6338, %v6338
      %v6441 = vmul.f32 %v6339, %v6339
      %v6442 = vmul.f32 %v6340, %v6340
      %v6443 = vsel %vm701, %v6411, 0.0
      %v6444 = vsel %vm701, %v6412, 0.0
      %v6445 = vadd.f32 %v6443, %v6444
      %v6446 = vsel %vm701, %v6413, 0.0
      %v6447 = vadd.f32 %v6445, %v6446
      %v6448 = vsel %vm701, %v6414, 0.0
      %v6449 = vadd.f32 %v6447, %v6448
      %v6450 = vsel %vm701, %v6415, 0.0
      %v6451 = vadd.f32 %v6449, %v6450
      %v6452 = vsel %vm701, %v6416, 0.0
      %v6453 = vadd.f32 %v6451, %v6452
      %v6454 = vsel %vm701, %v6417, 0.0
      %v6455 = vadd.f32 %v6453, %v6454
      %v6456 = vsel %vm701, %v6418, 0.0
      %v6457 = vadd.f32 %v6455, %v6456
      %v6458 = vsel %vm701, %v6419, 0.0
      %v6459 = vadd.f32 %v6457, %v6458
      %v6460 = vsel %vm701, %v6420, 0.0
      %v6461 = vadd.f32 %v6459, %v6460
      %v6462 = vsel %vm701, %v6421, 0.0
      %v6463 = vadd.f32 %v6461, %v6462
      %v6464 = vsel %vm701, %v6422, 0.0
      %v6465 = vadd.f32 %v6463, %v6464
      %v6466 = vsel %vm701, %v6423, 0.0
      %v6467 = vadd.f32 %v6465, %v6466
      %v6468 = vsel %vm701, %v6424, 0.0
      %v6469 = vadd.f32 %v6467, %v6468
      %v6470 = vsel %vm701, %v6425, 0.0
      %v6471 = vadd.f32 %v6469, %v6470
      %v6472 = vsel %vm701, %v6426, 0.0
      %v6473 = vadd.f32 %v6471, %v6472
      %v6474 = vsel %vm701, %v6427, 0.0
      %v6475 = vadd.f32 %v6473, %v6474
      %v6476 = vsel %vm701, %v6428, 0.0
      %v6477 = vadd.f32 %v6475, %v6476
      %v6478 = vsel %vm701, %v6429, 0.0
      %v6479 = vadd.f32 %v6477, %v6478
      %v6480 = vsel %vm701, %v6430, 0.0
      %v6481 = vadd.f32 %v6479, %v6480
      %v6482 = vsel %vm701, %v6431, 0.0
      %v6483 = vadd.f32 %v6481, %v6482
      %v6484 = vsel %vm701, %v6432, 0.0
      %v6485 = vadd.f32 %v6483, %v6484
      %v6486 = vsel %vm701, %v6433, 0.0
      %v6487 = vadd.f32 %v6485, %v6486
      %v6488 = vsel %vm701, %v6434, 0.0
      %v6489 = vadd.f32 %v6487, %v6488
      %v6490 = vsel %vm701, %v6435, 0.0
      %v6491 = vadd.f32 %v6489, %v6490
      %v6492 = vsel %vm701, %v6436, 0.0
      %v6493 = vadd.f32 %v6491, %v6492
      %v6494 = vsel %vm701, %v6437, 0.0
      %v6495 = vadd.f32 %v6493, %v6494
      %v6496 = vsel %vm701, %v6438, 0.0
      %v6497 = vadd.f32 %v6495, %v6496
      %v6498 = vsel %vm701, %v6439, 0.0
      %v6499 = vadd.f32 %v6497, %v6498
      %v6500 = vsel %vm701, %v6440, 0.0
      %v6501 = vadd.f32 %v6499, %v6500
      %v6502 = vsel %vm701, %v6441, 0.0
      %v6503 = vadd.f32 %v6501, %v6502
      %v6504 = vsel %vm701, %v6442, 0.0
      %v6505 = vadd.f32 %v6503, %v6504
      %v6506 = vrot.slane %v6505, 4
      %v6507 = vadd.f32 %v6505, %v6506
      %v6508 = vrot.slane %v6507, 2
      %v6509 = vadd.f32 %v6507, %v6508
      %v6510 = vrot.slane %v6509, 1
      %v6511 = vadd.f32 %v6509, %v6510
      %v6512 = vmul.f32 %v6511, 0.00390625
      %v6513 = vmul.f32 %v6410, %v6410
      %v6514 = vsub.f32 %v6512, %v6513
      %v6515 = vmax.f32 %v6514, 0.0
      %v6516 = vsub.f32 %v6309, %v6410
      %v6517 = vsub.f32 %v6310, %v6410
      %v6518 = vsub.f32 %v6311, %v6410
      %v6519 = vsub.f32 %v6312, %v6410
      %v6520 = vsub.f32 %v6313, %v6410
      %v6521 = vsub.f32 %v6314, %v6410
      %v6522 = vsub.f32 %v6315, %v6410
      %v6523 = vsub.f32 %v6316, %v6410
      %v6524 = vsub.f32 %v6317, %v6410
      %v6525 = vsub.f32 %v6318, %v6410
      %v6526 = vsub.f32 %v6319, %v6410
      %v6527 = vsub.f32 %v6320, %v6410
      %v6528 = vsub.f32 %v6321, %v6410
      %v6529 = vsub.f32 %v6322, %v6410
      %v6530 = vsub.f32 %v6323, %v6410
      %v6531 = vsub.f32 %v6324, %v6410
      %v6532 = vsub.f32 %v6325, %v6410
      %v6533 = vsub.f32 %v6326, %v6410
      %v6534 = vsub.f32 %v6327, %v6410
      %v6535 = vsub.f32 %v6328, %v6410
      %v6536 = vsub.f32 %v6329, %v6410
      %v6537 = vsub.f32 %v6330, %v6410
      %v6538 = vsub.f32 %v6331, %v6410
      %v6539 = vsub.f32 %v6332, %v6410
      %v6540 = vsub.f32 %v6333, %v6410
      %v6541 = vsub.f32 %v6334, %v6410
      %v6542 = vsub.f32 %v6335, %v6410
      %v6543 = vsub.f32 %v6336, %v6410
      %v6544 = vsub.f32 %v6337, %v6410
      %v6545 = vsub.f32 %v6338, %v6410
      %v6546 = vsub.f32 %v6339, %v6410
      %v6547 = vsub.f32 %v6340, %v6410
      %v6548 = vadd.f32 %v6515, 1e-05
      %v6549 = vrsqrt.pop %v6548
      %v6550 = vmul.f32 %v6516, %v6549
      %v6551 = vmul.f32 %v6517, %v6549
      %v6552 = vmul.f32 %v6518, %v6549
      %v6553 = vmul.f32 %v6519, %v6549
      %v6554 = vmul.f32 %v6520, %v6549
      %v6555 = vmul.f32 %v6521, %v6549
      %v6556 = vmul.f32 %v6522, %v6549
      %v6557 = vmul.f32 %v6523, %v6549
      %v6558 = vmul.f32 %v6524, %v6549
      %v6559 = vmul.f32 %v6525, %v6549
      %v6560 = vmul.f32 %v6526, %v6549
      %v6561 = vmul.f32 %v6527, %v6549
      %v6562 = vmul.f32 %v6528, %v6549
      %v6563 = vmul.f32 %v6529, %v6549
      %v6564 = vmul.f32 %v6530, %v6549
      %v6565 = vmul.f32 %v6531, %v6549
      %v6566 = vmul.f32 %v6532, %v6549
      %v6567 = vmul.f32 %v6533, %v6549
      %v6568 = vmul.f32 %v6534, %v6549
      %v6569 = vmul.f32 %v6535, %v6549
      %v6570 = vmul.f32 %v6536, %v6549
      %v6571 = vmul.f32 %v6537, %v6549
      %v6572 = vmul.f32 %v6538, %v6549
      %v6573 = vmul.f32 %v6539, %v6549
      %v6574 = vmul.f32 %v6540, %v6549
      %v6575 = vmul.f32 %v6541, %v6549
      %v6576 = vmul.f32 %v6542, %v6549
      %v6577 = vmul.f32 %v6543, %v6549
      %v6578 = vmul.f32 %v6544, %v6549
      %v6579 = vmul.f32 %v6545, %v6549
      %v6580 = vmul.f32 %v6546, %v6549
      %v6581 = vmul.f32 %v6547, %v6549
      %v6582 = vld [vmem:[%s207] sm:$0xff]
      %v6583 = vld [vmem:[%s207 + $0x8] sm:$0xff]
      %v6584 = vld [vmem:[%s207 + $0x10] sm:$0xff]
      %v6585 = vld [vmem:[%s207 + $0x18] sm:$0xff]
      %v6586 = vld [vmem:[%s207 + $0x20] sm:$0xff]
      %v6587 = vld [vmem:[%s207 + $0x28] sm:$0xff]
      %v6588 = vld [vmem:[%s207 + $0x30] sm:$0xff]
      %v6589 = vld [vmem:[%s207 + $0x38] sm:$0xff]
      %v6590 = vld [vmem:[%s207 + $0x40] sm:$0xff]
      %v6591 = vld [vmem:[%s207 + $0x48] sm:$0xff]
      %v6592 = vld [vmem:[%s207 + $0x50] sm:$0xff]
      %v6593 = vld [vmem:[%s207 + $0x58] sm:$0xff]
      %v6594 = vld [vmem:[%s207 + $0x60] sm:$0xff]
      %v6595 = vld [vmem:[%s207 + $0x68] sm:$0xff]
      %v6596 = vld [vmem:[%s207 + $0x70] sm:$0xff]
      %v6597 = vld [vmem:[%s207 + $0x78] sm:$0xff]
      %v6598 = vld [vmem:[%s207 + $0x80] sm:$0xff]
      %v6599 = vld [vmem:[%s207 + $0x88] sm:$0xff]
      %v6600 = vld [vmem:[%s207 + $0x90] sm:$0xff]
      %v6601 = vld [vmem:[%s207 + $0x98] sm:$0xff]
      %v6602 = vld [vmem:[%s207 + $0xa0] sm:$0xff]
      %v6603 = vld [vmem:[%s207 + $0xa8] sm:$0xff]
      %v6604 = vld [vmem:[%s207 + $0xb0] sm:$0xff]
      %v6605 = vld [vmem:[%s207 + $0xb8] sm:$0xff]
      %v6606 = vld [vmem:[%s207 + $0xc0] sm:$0xff]
      %v6607 = vld [vmem:[%s207 + $0xc8] sm:$0xff]
      %v6608 = vld [vmem:[%s207 + $0xd0] sm:$0xff]
      %v6609 = vld [vmem:[%s207 + $0xd8] sm:$0xff]
      %v6610 = vld [vmem:[%s207 + $0xe0] sm:$0xff]
      %v6611 = vld [vmem:[%s207 + $0xe8] sm:$0xff]
      %v6612 = vld [vmem:[%s207 + $0xf0] sm:$0xff]
      %v6613 = vld [vmem:[%s207 + $0xf8] sm:$0xff]
      %v6614 = vadd.f32 %v6582, %v6550
      %v6615 = vadd.f32 %v6583, %v6551
      %v6616 = vadd.f32 %v6584, %v6552
      %v6617 = vadd.f32 %v6585, %v6553
      %v6618 = vadd.f32 %v6586, %v6554
      %v6619 = vadd.f32 %v6587, %v6555
      %v6620 = vadd.f32 %v6588, %v6556
      %v6621 = vadd.f32 %v6589, %v6557
      %v6622 = vadd.f32 %v6590, %v6558
      %v6623 = vadd.f32 %v6591, %v6559
      %v6624 = vadd.f32 %v6592, %v6560
      %v6625 = vadd.f32 %v6593, %v6561
      %v6626 = vadd.f32 %v6594, %v6562
      %v6627 = vadd.f32 %v6595, %v6563
      %v6628 = vadd.f32 %v6596, %v6564
      %v6629 = vadd.f32 %v6597, %v6565
      %v6630 = vadd.f32 %v6598, %v6566
      %v6631 = vadd.f32 %v6599, %v6567
      %v6632 = vadd.f32 %v6600, %v6568
      %v6633 = vadd.f32 %v6601, %v6569
      %v6634 = vadd.f32 %v6602, %v6570
      %v6635 = vadd.f32 %v6603, %v6571
      %v6636 = vadd.f32 %v6604, %v6572
      %v6637 = vadd.f32 %v6605, %v6573
      %v6638 = vadd.f32 %v6606, %v6574
      %v6639 = vadd.f32 %v6607, %v6575
      %v6640 = vadd.f32 %v6608, %v6576
      %v6641 = vadd.f32 %v6609, %v6577
      %v6642 = vadd.f32 %v6610, %v6578
      %v6643 = vadd.f32 %v6611, %v6579
      %v6644 = vadd.f32 %v6612, %v6580
      %v6645 = vadd.f32 %v6613, %v6581
      %6646 = vst.msk [vmem:[%s217] sm:$0xff] %vm701, %v6614
      %6647 = vst.msk [vmem:[%s217 + $0x8] sm:$0xff] %vm701, %v6615
      %6648 = vst.msk [vmem:[%s217 + $0x10] sm:$0xff] %vm701, %v6616
      %6649 = vst.msk [vmem:[%s217 + $0x18] sm:$0xff] %vm701, %v6617
      %6650 = vst.msk [vmem:[%s217 + $0x20] sm:$0xff] %vm701, %v6618
      %6651 = vst.msk [vmem:[%s217 + $0x28] sm:$0xff] %vm701, %v6619
      %6652 = vst.msk [vmem:[%s217 + $0x30] sm:$0xff] %vm701, %v6620
      %6653 = vst.msk [vmem:[%s217 + $0x38] sm:$0xff] %vm701, %v6621
      %6654 = vst.msk [vmem:[%s217 + $0x40] sm:$0xff] %vm701, %v6622
      %6655 = vst.msk [vmem:[%s217 + $0x48] sm:$0xff] %vm701, %v6623
      %6656 = vst.msk [vmem:[%s217 + $0x50] sm:$0xff] %vm701, %v6624
      %6657 = vst.msk [vmem:[%s217 + $0x58] sm:$0xff] %vm701, %v6625
      %6658 = vst.msk [vmem:[%s217 + $0x60] sm:$0xff] %vm701, %v6626
      %6659 = vst.msk [vmem:[%s217 + $0x68] sm:$0xff] %vm701, %v6627
      %6660 = vst.msk [vmem:[%s217 + $0x70] sm:$0xff] %vm701, %v6628
      %6661 = vst.msk [vmem:[%s217 + $0x78] sm:$0xff] %vm701, %v6629
      %6662 = vst.msk [vmem:[%s217 + $0x80] sm:$0xff] %vm701, %v6630
      %6663 = vst.msk [vmem:[%s217 + $0x88] sm:$0xff] %vm701, %v6631
      %6664 = vst.msk [vmem:[%s217 + $0x90] sm:$0xff] %vm701, %v6632
      %6665 = vst.msk [vmem:[%s217 + $0x98] sm:$0xff] %vm701, %v6633
      %6666 = vst.msk [vmem:[%s217 + $0xa0] sm:$0xff] %vm701, %v6634
      %6667 = vst.msk [vmem:[%s217 + $0xa8] sm:$0xff] %vm701, %v6635
      %6668 = vst.msk [vmem:[%s217 + $0xb0] sm:$0xff] %vm701, %v6636
      %6669 = vst.msk [vmem:[%s217 + $0xb8] sm:$0xff] %vm701, %v6637
      %6670 = vst.msk [vmem:[%s217 + $0xc0] sm:$0xff] %vm701, %v6638
      %6671 = vst.msk [vmem:[%s217 + $0xc8] sm:$0xff] %vm701, %v6639
      %6672 = vst.msk [vmem:[%s217 + $0xd0] sm:$0xff] %vm701, %v6640
      %6673 = vst.msk [vmem:[%s217 + $0xd8] sm:$0xff] %vm701, %v6641
      %6674 = vst.msk [vmem:[%s217 + $0xe0] sm:$0xff] %vm701, %v6642
      %6675 = vst.msk [vmem:[%s217 + $0xe8] sm:$0xff] %vm701, %v6643
      %6676 = vst.msk [vmem:[%s217 + $0xf0] sm:$0xff] %vm701, %v6644
      %6677 = vst.msk [vmem:[%s217 + $0xf8] sm:$0xff] %vm701, %v6645
      %p6678 = scmp.lt.s32.totalorder %s15, 1
      %s6679 = scalar_select %p6678, %s15, 1
      %s6680 = smul.addr %s6679, 32
      %s6681 = smul.addr %s6680, 8
      %s6682 = scalar_lea.vmem %s4, %s6681
      // Predicated region
      $region37: #{resnet_block.1} parent=35 // pred_check
        %p6683 = pneg %p127
      $region38: #{resnet_block.1} parent=35 // pred_check_branch
        %6685 = sbr.rel (%p6683) target = $region40
      $region39: #{resnet_block.1} parent=35 // pred_region
        _
      $region40: #{resnet_block.1} parent=35 // pred_fallthru
        _
    $region36: #{resnet_block.1} parent=5 // pred_fallthru
      _
    %p6686 = scmp.le.s32.totalorder 2, %s10
    // Predicated region
    $region41: #{resnet_block.1} parent=5 // pred_check
      %p6687 = pneg %p6686
    $region42: #{resnet_block.1} parent=5 // pred_check_branch
      %6689 = sbr.rel (%p6687) target = $region44
    $region43: #{resnet_block.1} parent=5 // pred_region
      %s6690 = ssub.s32 %s10, 2
      // Predicated region
      $region45: #{resnet_block.1} parent=43 // pred_check
        %p6691 = pneg %p133
      $region46: #{resnet_block.1} parent=43 // pred_check_branch
        %6693 = sbr.rel (%p6691) target = $region48
      $region47: #{resnet_block.1} parent=43 // pred_region
        %p6694 = scmp.lt.s32.totalorder %s16, 1
        %s6695 = scalar_select %p6694, %s16, 1
        %s6696 = smul.addr %s6695, 32
        %s6697 = smul.addr %s6696, 8
        %s6698 = scalar_lea.vmem %s4, %s6697
      $region48: #{resnet_block.1} parent=43 // pred_fallthru
        _
    $region44: #{resnet_block.1} parent=5 // pred_fallthru
      _
  $region6: #{resnet_block.1} parent=0 // loop_footer
    %s14 = sadd.s32 1, %s10
  $region7: #{resnet_block.1} parent=0 // loop_footer_branch
    %9 = sbr.rel target = $region3
  $region8: #{resnet_block.1} parent=0 // loop_exit
    _

</llo_original>
